<compile_context>
chip_gen: v5e
topology: v5e:2x2
jax: 0.10.0
libtpu: 0.0.40
codegen_flags: <defaults>
</compile_context>

<pallas_src>
import functools
import math

import jax
import jax.numpy as jnp
from jax.experimental import pallas as pl
from jax.experimental.pallas import tpu as pltpu


# ----------------------------------------------------------------------------
# Pallas kernel: conv trunk (per-tap accumulating matmuls) + fused noisy head
# with the dueling combine already folded into the output weights.
# ----------------------------------------------------------------------------
def ddqn_kernel(matmul_dtype, *refs):
    (x_ref,
     w1_ref, b1_ref, w2_ref, b2_ref, w3_ref, b3_ref, w4_ref, b4_ref,
     w5_ref, b5_ref, w6_ref, b6_ref, out_ref) = refs

    tb, hin, win, c0 = x_ref.shape

    def mm(a, b):
        # Cast only the dot operands (bf16 on v6e/v7x if requested); keep the
        # f32 accumulate and all elementwise work (bias, ReLU) in f32.
        return jnp.dot(a.astype(matmul_dtype), b.astype(matmul_dtype),
                       preferred_element_type=jnp.float32)

    def conv3x3_relu(h, w_ref, b_ref):
        # h: (tb, hi, wi, cin) value; w_ref: (9, cin, cout); b_ref: (1, cout).
        # Nine accumulating per-tap matmuls (no lane-axis im2col concat).
        tb_, hi, wi, cin = h.shape
        ho, wo = hi - 2, wi - 2
        cout = w_ref.shape[-1]
        acc = None
        for di in range(3):                       # static 3x3 tap loop
            for dj in range(3):
                patch = h[:, di:di + ho, dj:dj + wo, :].reshape(
                    tb_ * ho * wo, cin)
                term = mm(patch, w_ref[3 * di + dj])
                acc = term if acc is None else acc + term
        y = jnp.maximum(acc + b_ref[...], 0.0)
        return y.reshape(tb_, ho, wo, cout)

    # --- conv trunk: batch + spatial folded into the matmul M dimension ----
    # conv1 is 1x1 -> plain matmul over (tb*H*W, c0).
    h = mm(x_ref[...].reshape(tb * hin * win, c0), w1_ref[...]) + b1_ref[...]
    h = jnp.maximum(h, 0.0).reshape(tb, hin, win, w1_ref.shape[-1])
    h = conv3x3_relu(h, w2_ref, b2_ref)           # (tb, 5, 5, c2)
    h = conv3x3_relu(h, w3_ref, b3_ref)           # (tb, 3, 3, c3)
    h = conv3x3_relu(h, w4_ref, b4_ref)           # (tb, 1, 1, c4)
    h = h.reshape(tb, -1)                         # (tb, c4) == flatten(start_dim=1)

    # --- fused noisy head -----------------------------------------------
    # Hidden: ONE matmul for fc5a | fc5v.
    h5 = jnp.maximum(mm(h, w5_ref[...]) + b5_ref[...], 0.0)       # (tb, 2*nf)
    # Output: ONE matmul; dueling combine is pre-folded into w6/b6, so this is
    # the final Q-distribution, stored once (single clean store path).
    out_ref[...] = mm(h5, w6_ref[...]) + b6_ref[...]              # (tb, A*T)


# ----------------------------------------------------------------------------
# Wrapper-side (one-time per call) weight preparation in plain JAX.
# ----------------------------------------------------------------------------
def _mix_noisy(p):
    # NoisyLinear.forward weight mixing with factorized noise, hoisted out of
    # the kernel so it is not re-executed on every grid step.
    f = lambda r: jnp.sign(r) * jnp.sqrt(jnp.abs(r))
    ein = f(p['eps_in'])                              # (ni, 1)
    eout = f(p['eps_out'])                            # (1, no)
    w_t = p['wsig_t'] * (ein * eout) + p['wmu_t']     # (ni, no) == W^T
    bias = p['bsig'] * eout + p['bmu']                # (1, no)
    return w_t, bias


def _prepare_weights(params, num_actions, num_atoms, matmul_dtype):
    def conv_taps(w):   # HWIO -> (kh*kw, cin, cout): one clean block per tap
        kh, kw, cin, cout = w.shape
        return w.reshape(kh * kw, cin, cout)

    w5a, b5a = _mix_noisy(params['fc5a'])
    w5v, b5v = _mix_noisy(params['fc5v'])
    w6a, b6a = _mix_noisy(params['fc6a'])
    w6v, b6v = _mix_noisy(params['fc6v'])

    # Hidden layer: [fc5a | fc5v] as one (nf, 2nf) weight.
    w5 = jnp.concatenate([w5a, w5v], axis=1)
    b5 = jnp.concatenate([b5a, b5v], axis=1)

    # Output layer with the dueling combine folded in.  With out6 = [adv|val]:
    #   y = adv + tile(val - mean_actions(adv)) == out6 @ C
    # where C = [[kron(I_A - 1/A, I_T)], [tile(I_T, (1, A))]].  Fold C into the
    # block-diagonal fc6 weight/bias once, here.
    a, t = num_actions, num_atoms
    c_adv = jnp.kron(jnp.eye(a, dtype=jnp.float32) - 1.0 / a,
                     jnp.eye(t, dtype=jnp.float32))          # (a*t, a*t)
    c_val = jnp.tile(jnp.eye(t, dtype=jnp.float32), (1, a))  # (t, a*t)
    w6 = jnp.concatenate([w6a @ c_adv, w6v @ c_val], axis=0)  # (2nf, a*t)
    b6 = b6a @ c_adv + b6v @ c_val                            # (1, a*t)

    cast = lambda w: w.astype(matmul_dtype)   # weights in matmul dtype, biases f32
    w1 = params['w1']
    return [cast(w1.reshape(w1.shape[2], w1.shape[3])), params['b1'],
            cast(conv_taps(params['w2'])), params['b2'],
            cast(conv_taps(params['w3'])), params['b3'],
            cast(conv_taps(params['w4'])), params['b4'],
            cast(w5), b5, cast(w6), b6]


def _pick_batch_tile(batch, max_tile=256):
    # Largest sublane-aligned (multiple of 8) divisor of batch that is
    # <= max_tile AND leaves >= 2 grid steps (so v7x's two TensorCores both
    # get work).  Tiny/odd batches fall back to a single full-batch step
    # (block == full array, no masked partial-sublane output tiles).
    divisors = [d for d in range(1, batch + 1) if batch % d == 0 and d <= max_tile]
    good = [d for d in divisors if d % 8 == 0 and batch // d >= 2]
    if good:
        return max(good)
    aligned = [d for d in divisors if d % 8 == 0]
    if aligned:
        return max(aligned)
    return batch if batch <= max_tile else max(divisors)


# ----------------------------------------------------------------------------
# Wrapper: layout conversion + pallas_call with a parallel batch grid.
# ----------------------------------------------------------------------------
def ddqn_forward(x_nchw, params, num_actions, num_atoms, *,
                 batch_tile=None, matmul_dtype=jnp.float32):
    single = x_nchw.ndim == 3
    x4 = x_nchw[None] if single else x_nchw
    x = jnp.transpose(x4, (0, 2, 3, 1)).astype(jnp.float32)   # NCHW -> NHWC
    batch, height, width, c0 = x.shape
    assert height == 7 and width == 7, (
        "conv stack (1x1 + three valid 3x3 convs) must reduce spatial to 1x1")

    args = [x] + _prepare_weights(params, num_actions, num_atoms, matmul_dtype)

    if batch_tile is None:
        batch_tile = _pick_batch_tile(batch)
    assert batch % batch_tile == 0
    nb = batch // batch_tile
    na_at = num_actions * num_atoms

    def rep_spec(arr):   # full array, same block every step (stays resident)
        nd = arr.ndim
        return pl.BlockSpec(arr.shape, lambda i, _nd=nd: (0,) * _nd)

    in_specs = [pl.BlockSpec((batch_tile, height, width, c0),
                             lambda i: (i, 0, 0, 0))]
    in_specs += [rep_spec(a) for a in args[1:]]
    out_spec = pl.BlockSpec((batch_tile, na_at), lambda i: (i, 0))

    # Rough advisory cost estimate.
    c1, c2 = params['w1'].shape[3], params['w2'].shape[3]
    c3, c4 = params['w3'].shape[3], params['w4'].shape[3]
    flops = 2 * batch * (49 * c0 * c1 + 25 * 9 * c1 * c2 + 9 * 9 * c2 * c3
                         + 9 * c3 * c4 + c4 * 2 * c4 + 2 * c4 * na_at)
    bytes_accessed = int(sum(a.size * a.dtype.itemsize for a in args)
                         + batch * na_at * 4)

    out_flat = pl.pallas_call(
        functools.partial(ddqn_kernel, matmul_dtype),
        out_shape=jax.ShapeDtypeStruct((batch, na_at), jnp.float32),
        grid=(nb,),
        in_specs=in_specs,
        out_specs=out_spec,
        compiler_params=pltpu.CompilerParams(
            dimension_semantics=("parallel",)),
        cost_estimate=pl.CostEstimate(flops=int(flops), transcendentals=0,
                                      bytes_accessed=bytes_accessed),
    )(*args)

    y = out_flat.reshape(batch, num_actions, num_atoms)
    return y[0] if single else y


# ----------------------------------------------------------------------------
# Deterministic parameter / noise initialization (synthetic, no checkpoint).
# ----------------------------------------------------------------------------
def _conv_init(key, kh, kw, cin, cout):
    k_w, k_b = jax.random.split(key)
    bound = 1.0 / math.sqrt(cin * kh * kw)
    w = jax.random.uniform(k_w, (kh, kw, cin, cout), jnp.float32, -bound, bound)
    b = jax.random.uniform(k_b, (1, cout), jnp.float32, -bound, bound)
    return w, b


def _noisy_init(key, in_features, out_features, num_agents):
    ni, no = in_features * num_agents, out_features * num_agents
    k_mu, k_b, k_eps = jax.random.split(key, 3)
    bound = 1.0 / math.sqrt(in_features)
    w_mu = jax.random.uniform(k_mu, (no, ni), jnp.float32, -bound, bound)
    b_mu = jax.random.uniform(k_b, (no,), jnp.float32, -bound, bound)
    sig = 0.5 / math.sqrt(in_features)
    w_sigma = jnp.full((no, ni), sig, jnp.float32)
    b_sigma = jnp.full((no,), sig, jnp.float32)
    # Zero inter-agent weights (block-diagonal mask); identity for num_agents==1.
    mask = jnp.kron(jnp.eye(num_agents, dtype=jnp.float32),
                    jnp.ones((out_features, in_features), jnp.float32))
    w_mu = w_mu * mask
    w_sigma = w_sigma * mask
    # Factorized-noise vector (the sign*sqrt(|.|) transform and outer product
    # are applied once per forward call in the wrapper, as in NoisyLinear.forward).
    rand = jax.random.normal(k_eps, (ni + no,), jnp.float32)
    return dict(wmu_t=w_mu.T, wsig_t=w_sigma.T,
                bmu=b_mu.reshape(1, no), bsig=b_sigma.reshape(1, no),
                eps_in=rand[:ni].reshape(ni, 1),
                eps_out=rand[ni:].reshape(1, no))


def init_params(key, num_channels, num_actions, num_atoms, num_agents=1):
    assert num_agents == 1, (
        "reference forward's v.view(B, 1, num_atoms) is only valid for 1 agent")
    c0 = num_channels * num_agents
    c1, c2, c3, c4 = (num_channels * m * num_agents for m in (2, 4, 8, 12))
    num_features = num_channels * 12
    keys = jax.random.split(key, 8)
    p = {}
    p['w1'], p['b1'] = _conv_init(keys[0], 1, 1, c0, c1)
    p['w2'], p['b2'] = _conv_init(keys[1], 3, 3, c1, c2)
    p['w3'], p['b3'] = _conv_init(keys[2], 3, 3, c2, c3)
    p['w4'], p['b4'] = _conv_init(keys[3], 3, 3, c3, c4)
    p['fc5a'] = _noisy_init(keys[4], num_features, num_features, num_agents)
    p['fc5v'] = _noisy_init(keys[5], num_features, num_features, num_agents)
    p['fc6a'] = _noisy_init(keys[6], num_features, num_actions * num_atoms, num_agents)
    p['fc6v'] = _noisy_init(keys[7], num_features, num_atoms, num_agents)
    return p


# ----------------------------------------------------------------------------
# Pure-JAX reference (for a sanity check of the kernel).
# ----------------------------------------------------------------------------
def reference_forward(x_nchw, params, num_actions, num_atoms):
    single = x_nchw.ndim == 3
    x4 = x_nchw[None] if single else x_nchw
    x = jnp.transpose(x4, (0, 2, 3, 1)).astype(jnp.float32)

    def conv(h, w, b):
        y = jax.lax.conv_general_dilated(
            h, w, window_strides=(1, 1), padding='VALID',
            dimension_numbers=('NHWC', 'HWIO', 'NHWC'))
        return jax.nn.relu(y + b.reshape(1, 1, 1, -1))

    h = conv(x, params['w1'], params['b1'])
    h = conv(h, params['w2'], params['b2'])
    h = conv(h, params['w3'], params['b3'])
    h = conv(h, params['w4'], params['b4'])
    h = h.reshape(h.shape[0], -1)          # spatial is 1x1 -> order irrelevant

    def noisy(hh, p):
        f = lambda r: jnp.sign(r) * jnp.sqrt(jnp.abs(r))
        ein, eout = f(p['eps_in']), f(p['eps_out'])
        w_t = p['wsig_t'] * (ein * eout) + p['wmu_t']
        bias = p['bsig'] * eout + p['bmu']
        return hh @ w_t + bias

    ha = jax.nn.relu(noisy(h, params['fc5a']))
    hv = jax.nn.relu(noisy(h, params['fc5v']))
    a = noisy(ha, params['fc6a']).reshape(h.shape[0], -1, num_atoms)
    v = noisy(hv, params['fc6v']).reshape(h.shape[0], 1, num_atoms)
    y = v + a - a.mean(axis=1, keepdims=True)
    return y[0] if single else y


if __name__ == "__main__":
    # Small shapes consistent with the module: H=W=7 so the conv stack
    # (1x1 + three valid 3x3 convs) reduces spatial dims to 1x1, which the
    # fully-connected head sizes require.
    num_channels, height, width = 4, 7, 7
    num_actions, num_atoms, num_agents = 3, 5, 1
    batch = 2

    root = jax.random.PRNGKey(0)
    k_params, k_x = jax.random.split(root)
    params = init_params(k_params, num_channels, num_actions, num_atoms, num_agents)

    # PyTorch-style NCHW input (transposed to NHWC inside the wrapper).
    x = jax.random.normal(
        k_x, (batch, num_channels * num_agents, height, width), jnp.float32)

    y_ref = reference_forward(x, params, num_actions, num_atoms)

    # f32 matmul path (default): tight tolerance vs. the pure-JAX reference.
    y = jax.block_until_ready(ddqn_forward(x, params, num_actions, num_atoms))
    assert y.shape == (batch, num_actions, num_atoms)
    assert bool(jnp.all(jnp.isfinite(y))), "non-finite output (f32 path)"
    err_f32 = float(jnp.max(jnp.abs(y - y_ref)))
    assert err_f32 < 2e-3, f"f32 kernel/reference mismatch: max abs err = {err_f32}"

    # bf16 matmul-operand path (native MXU path on v6e/v7x; f32 accumulate).
    y_bf16 = jax.block_until_ready(
        ddqn_forward(x, params, num_actions, num_atoms,
                     matmul_dtype=jnp.bfloat16))
    assert bool(jnp.all(jnp.isfinite(y_bf16))), "non-finite output (bf16 path)"
    err_bf16 = float(jnp.max(jnp.abs(y_bf16 - y_ref)))
    assert err_bf16 < 2e-1, f"bf16 kernel/reference mismatch: max abs err = {err_bf16}"

    # Single-state (3-D) input path, as used by QAgent.step().
    y1 = jax.block_until_ready(ddqn_forward(x[0], params, num_actions, num_atoms))
    assert y1.shape == (num_actions, num_atoms)
    assert float(jnp.max(jnp.abs(y1 - y_ref[0]))) < 2e-3

    print("KERNEL_OK")
</pallas_src>

<mosaic_0001>
module attributes {stable_mosaic.version = 11 : i64} {
  func.func @ddqn_kernel(%arg0: i32, %arg1: memref<2x7x7x4xf32, #tpu.memory_space<vmem>>, %arg2: memref<4x8xf32, #tpu.memory_space<vmem>>, %arg3: memref<1x8xf32, #tpu.memory_space<vmem>>, %arg4: memref<9x8x16xf32, #tpu.memory_space<vmem>>, %arg5: memref<1x16xf32, #tpu.memory_space<vmem>>, %arg6: memref<9x16x32xf32, #tpu.memory_space<vmem>>, %arg7: memref<1x32xf32, #tpu.memory_space<vmem>>, %arg8: memref<9x32x48xf32, #tpu.memory_space<vmem>>, %arg9: memref<1x48xf32, #tpu.memory_space<vmem>>, %arg10: memref<48x96xf32, #tpu.memory_space<vmem>>, %arg11: memref<1x96xf32, #tpu.memory_space<vmem>>, %arg12: memref<96x15xf32, #tpu.memory_space<vmem>>, %arg13: memref<1x15xf32, #tpu.memory_space<vmem>>, %arg14: memref<2x15xf32, #tpu.memory_space<vmem>>) attributes {dimension_semantics = [#tpu.dimension_semantics<parallel>], iteration_bounds = array<i64: 1>, scalar_prefetch = 0 : i64, scratch_operands = 0 : i64, tpu.core_type = #tpu.core_type<tc>, window_params = [{transform_indices = @transform_0, window_bounds = array<i64: 2, 7, 7, 4>}, {pipeline_mode = #tpu.pipeline_mode<synchronous>, transform_indices = @transform_1, window_bounds = array<i64: 4, 8>}, {pipeline_mode = #tpu.pipeline_mode<synchronous>, transform_indices = @transform_2, window_bounds = array<i64: 1, 8>}, {pipeline_mode = #tpu.pipeline_mode<synchronous>, transform_indices = @transform_3, window_bounds = array<i64: 9, 8, 16>}, {pipeline_mode = #tpu.pipeline_mode<synchronous>, transform_indices = @transform_4, window_bounds = array<i64: 1, 16>}, {pipeline_mode = #tpu.pipeline_mode<synchronous>, transform_indices = @transform_5, window_bounds = array<i64: 9, 16, 32>}, {pipeline_mode = #tpu.pipeline_mode<synchronous>, transform_indices = @transform_6, window_bounds = array<i64: 1, 32>}, {pipeline_mode = #tpu.pipeline_mode<synchronous>, transform_indices = @transform_7, window_bounds = array<i64: 9, 32, 48>}, {pipeline_mode = #tpu.pipeline_mode<synchronous>, transform_indices = @transform_8, window_bounds = array<i64: 1, 48>}, {pipeline_mode = #tpu.pipeline_mode<synchronous>, transform_indices = @transform_9, window_bounds = array<i64: 48, 96>}, {pipeline_mode = #tpu.pipeline_mode<synchronous>, transform_indices = @transform_10, window_bounds = array<i64: 1, 96>}, {pipeline_mode = #tpu.pipeline_mode<synchronous>, transform_indices = @transform_11, window_bounds = array<i64: 96, 15>}, {pipeline_mode = #tpu.pipeline_mode<synchronous>, transform_indices = @transform_12, window_bounds = array<i64: 1, 15>}, {transform_indices = @transform_13, window_bounds = array<i64: 2, 15>}]} {
    %c0 = arith.constant 0 : index
    %c0_0 = arith.constant 0 : index
    %c0_1 = arith.constant 0 : index
    %c0_2 = arith.constant 0 : index
    %0 = vector.load %arg1[%c0, %c0_0, %c0_1, %c0_2] : memref<2x7x7x4xf32, #tpu.memory_space<vmem>>, vector<2x7x7x4xf32>
    %1 = vector.shape_cast %0 : vector<2x7x7x4xf32> to vector<98x4xf32>
    %c0_3 = arith.constant 0 : index
    %c0_4 = arith.constant 0 : index
    %2 = vector.load %arg2[%c0_3, %c0_4] : memref<4x8xf32, #tpu.memory_space<vmem>>, vector<4x8xf32>
    %cst = arith.constant dense<0.000000e+00> : vector<98x8xf32>
    %3 = tpu.matmul %1, %2, %cst {dimension_numbers = #tpu.dot_dimension_numbers<[1], [0], [0], [1], [0, 0, 1, 1], [], []>} : vector<98x4xf32>, vector<4x8xf32>, vector<98x8xf32> -> vector<98x8xf32>
    %c0_5 = arith.constant 0 : index
    %c0_6 = arith.constant 0 : index
    %4 = vector.load %arg3[%c0_5, %c0_6] : memref<1x8xf32, #tpu.memory_space<vmem>>, vector<1x8xf32>
    %5 = vector.broadcast %4 : vector<1x8xf32> to vector<98x8xf32>
    %6 = arith.addf %3, %5 : vector<98x8xf32>
    %cst_7 = arith.constant 0.000000e+00 : f32
    %7 = vector.broadcast %cst_7 : f32 to vector<98x8xf32>
    %8 = arith.maximumf %6, %7 : vector<98x8xf32>
    %9 = vector.shape_cast %8 : vector<98x8xf32> to vector<2x7x7x8xf32>
    %10 = vector.extract_strided_slice %9 {offsets = [0, 0, 0, 0], sizes = [2, 5, 5, 8], strides = [1, 1, 1, 1]} : vector<2x7x7x8xf32> to vector<2x5x5x8xf32>
    %11 = vector.shape_cast %10 : vector<2x5x5x8xf32> to vector<50x8xf32>
    %c0_8 = arith.constant 0 : index
    %c0_9 = arith.constant 0 : index
    %c0_10 = arith.constant 0 : index
    %12 = vector.load %arg4[%c0_8, %c0_9, %c0_10] : memref<9x8x16xf32, #tpu.memory_space<vmem>>, vector<1x8x16xf32>
    %13 = vector.shape_cast %12 : vector<1x8x16xf32> to vector<8x16xf32>
    %cst_11 = arith.constant dense<0.000000e+00> : vector<50x16xf32>
    %14 = tpu.matmul %11, %13, %cst_11 {dimension_numbers = #tpu.dot_dimension_numbers<[1], [0], [0], [1], [0, 0, 1, 1], [], []>} : vector<50x8xf32>, vector<8x16xf32>, vector<50x16xf32> -> vector<50x16xf32>
    %15 = vector.extract_strided_slice %9 {offsets = [0, 0, 1, 0], sizes = [2, 5, 5, 8], strides = [1, 1, 1, 1]} : vector<2x7x7x8xf32> to vector<2x5x5x8xf32>
    %16 = vector.shape_cast %15 : vector<2x5x5x8xf32> to vector<50x8xf32>
    %c1 = arith.constant 1 : index
    %c0_12 = arith.constant 0 : index
    %c0_13 = arith.constant 0 : index
    %17 = vector.load %arg4[%c1, %c0_12, %c0_13] : memref<9x8x16xf32, #tpu.memory_space<vmem>>, vector<1x8x16xf32>
    %18 = vector.shape_cast %17 : vector<1x8x16xf32> to vector<8x16xf32>
    %cst_14 = arith.constant dense<0.000000e+00> : vector<50x16xf32>
    %19 = tpu.matmul %16, %18, %cst_14 {dimension_numbers = #tpu.dot_dimension_numbers<[1], [0], [0], [1], [0, 0, 1, 1], [], []>} : vector<50x8xf32>, vector<8x16xf32>, vector<50x16xf32> -> vector<50x16xf32>
    %20 = arith.addf %14, %19 : vector<50x16xf32>
    %21 = vector.extract_strided_slice %9 {offsets = [0, 0, 2, 0], sizes = [2, 5, 5, 8], strides = [1, 1, 1, 1]} : vector<2x7x7x8xf32> to vector<2x5x5x8xf32>
    %22 = vector.shape_cast %21 : vector<2x5x5x8xf32> to vector<50x8xf32>
    %c2 = arith.constant 2 : index
    %c0_15 = arith.constant 0 : index
    %c0_16 = arith.constant 0 : index
    %23 = vector.load %arg4[%c2, %c0_15, %c0_16] : memref<9x8x16xf32, #tpu.memory_space<vmem>>, vector<1x8x16xf32>
    %24 = vector.shape_cast %23 : vector<1x8x16xf32> to vector<8x16xf32>
    %cst_17 = arith.constant dense<0.000000e+00> : vector<50x16xf32>
    %25 = tpu.matmul %22, %24, %cst_17 {dimension_numbers = #tpu.dot_dimension_numbers<[1], [0], [0], [1], [0, 0, 1, 1], [], []>} : vector<50x8xf32>, vector<8x16xf32>, vector<50x16xf32> -> vector<50x16xf32>
    %26 = arith.addf %20, %25 : vector<50x16xf32>
    %27 = vector.extract_strided_slice %9 {offsets = [0, 1, 0, 0], sizes = [2, 5, 5, 8], strides = [1, 1, 1, 1]} : vector<2x7x7x8xf32> to vector<2x5x5x8xf32>
    %28 = vector.shape_cast %27 : vector<2x5x5x8xf32> to vector<50x8xf32>
    %c3 = arith.constant 3 : index
    %c0_18 = arith.constant 0 : index
    %c0_19 = arith.constant 0 : index
    %29 = vector.load %arg4[%c3, %c0_18, %c0_19] : memref<9x8x16xf32, #tpu.memory_space<vmem>>, vector<1x8x16xf32>
    %30 = vector.shape_cast %29 : vector<1x8x16xf32> to vector<8x16xf32>
    %cst_20 = arith.constant dense<0.000000e+00> : vector<50x16xf32>
    %31 = tpu.matmul %28, %30, %cst_20 {dimension_numbers = #tpu.dot_dimension_numbers<[1], [0], [0], [1], [0, 0, 1, 1], [], []>} : vector<50x8xf32>, vector<8x16xf32>, vector<50x16xf32> -> vector<50x16xf32>
    %32 = arith.addf %26, %31 : vector<50x16xf32>
    %33 = vector.extract_strided_slice %9 {offsets = [0, 1, 1, 0], sizes = [2, 5, 5, 8], strides = [1, 1, 1, 1]} : vector<2x7x7x8xf32> to vector<2x5x5x8xf32>
    %34 = vector.shape_cast %33 : vector<2x5x5x8xf32> to vector<50x8xf32>
    %c4 = arith.constant 4 : index
    %c0_21 = arith.constant 0 : index
    %c0_22 = arith.constant 0 : index
    %35 = vector.load %arg4[%c4, %c0_21, %c0_22] : memref<9x8x16xf32, #tpu.memory_space<vmem>>, vector<1x8x16xf32>
    %36 = vector.shape_cast %35 : vector<1x8x16xf32> to vector<8x16xf32>
    %cst_23 = arith.constant dense<0.000000e+00> : vector<50x16xf32>
    %37 = tpu.matmul %34, %36, %cst_23 {dimension_numbers = #tpu.dot_dimension_numbers<[1], [0], [0], [1], [0, 0, 1, 1], [], []>} : vector<50x8xf32>, vector<8x16xf32>, vector<50x16xf32> -> vector<50x16xf32>
    %38 = arith.addf %32, %37 : vector<50x16xf32>
    %39 = vector.extract_strided_slice %9 {offsets = [0, 1, 2, 0], sizes = [2, 5, 5, 8], strides = [1, 1, 1, 1]} : vector<2x7x7x8xf32> to vector<2x5x5x8xf32>
    %40 = vector.shape_cast %39 : vector<2x5x5x8xf32> to vector<50x8xf32>
    %c5 = arith.constant 5 : index
    %c0_24 = arith.constant 0 : index
    %c0_25 = arith.constant 0 : index
    %41 = vector.load %arg4[%c5, %c0_24, %c0_25] : memref<9x8x16xf32, #tpu.memory_space<vmem>>, vector<1x8x16xf32>
    %42 = vector.shape_cast %41 : vector<1x8x16xf32> to vector<8x16xf32>
    %cst_26 = arith.constant dense<0.000000e+00> : vector<50x16xf32>
    %43 = tpu.matmul %40, %42, %cst_26 {dimension_numbers = #tpu.dot_dimension_numbers<[1], [0], [0], [1], [0, 0, 1, 1], [], []>} : vector<50x8xf32>, vector<8x16xf32>, vector<50x16xf32> -> vector<50x16xf32>
    %44 = arith.addf %38, %43 : vector<50x16xf32>
    %45 = vector.extract_strided_slice %9 {offsets = [0, 2, 0, 0], sizes = [2, 5, 5, 8], strides = [1, 1, 1, 1]} : vector<2x7x7x8xf32> to vector<2x5x5x8xf32>
    %46 = vector.shape_cast %45 : vector<2x5x5x8xf32> to vector<50x8xf32>
    %c6 = arith.constant 6 : index
    %c0_27 = arith.constant 0 : index
    %c0_28 = arith.constant 0 : index
    %47 = vector.load %arg4[%c6, %c0_27, %c0_28] : memref<9x8x16xf32, #tpu.memory_space<vmem>>, vector<1x8x16xf32>
    %48 = vector.shape_cast %47 : vector<1x8x16xf32> to vector<8x16xf32>
    %cst_29 = arith.constant dense<0.000000e+00> : vector<50x16xf32>
    %49 = tpu.matmul %46, %48, %cst_29 {dimension_numbers = #tpu.dot_dimension_numbers<[1], [0], [0], [1], [0, 0, 1, 1], [], []>} : vector<50x8xf32>, vector<8x16xf32>, vector<50x16xf32> -> vector<50x16xf32>
    %50 = arith.addf %44, %49 : vector<50x16xf32>
    %51 = vector.extract_strided_slice %9 {offsets = [0, 2, 1, 0], sizes = [2, 5, 5, 8], strides = [1, 1, 1, 1]} : vector<2x7x7x8xf32> to vector<2x5x5x8xf32>
    %52 = vector.shape_cast %51 : vector<2x5x5x8xf32> to vector<50x8xf32>
    %c7 = arith.constant 7 : index
    %c0_30 = arith.constant 0 : index
    %c0_31 = arith.constant 0 : index
    %53 = vector.load %arg4[%c7, %c0_30, %c0_31] : memref<9x8x16xf32, #tpu.memory_space<vmem>>, vector<1x8x16xf32>
    %54 = vector.shape_cast %53 : vector<1x8x16xf32> to vector<8x16xf32>
    %cst_32 = arith.constant dense<0.000000e+00> : vector<50x16xf32>
    %55 = tpu.matmul %52, %54, %cst_32 {dimension_numbers = #tpu.dot_dimension_numbers<[1], [0], [0], [1], [0, 0, 1, 1], [], []>} : vector<50x8xf32>, vector<8x16xf32>, vector<50x16xf32> -> vector<50x16xf32>
    %56 = arith.addf %50, %55 : vector<50x16xf32>
    %57 = vector.extract_strided_slice %9 {offsets = [0, 2, 2, 0], sizes = [2, 5, 5, 8], strides = [1, 1, 1, 1]} : vector<2x7x7x8xf32> to vector<2x5x5x8xf32>
    %58 = vector.shape_cast %57 : vector<2x5x5x8xf32> to vector<50x8xf32>
    %c8 = arith.constant 8 : index
    %c0_33 = arith.constant 0 : index
    %c0_34 = arith.constant 0 : index
    %59 = vector.load %arg4[%c8, %c0_33, %c0_34] : memref<9x8x16xf32, #tpu.memory_space<vmem>>, vector<1x8x16xf32>
    %60 = vector.shape_cast %59 : vector<1x8x16xf32> to vector<8x16xf32>
    %cst_35 = arith.constant dense<0.000000e+00> : vector<50x16xf32>
    %61 = tpu.matmul %58, %60, %cst_35 {dimension_numbers = #tpu.dot_dimension_numbers<[1], [0], [0], [1], [0, 0, 1, 1], [], []>} : vector<50x8xf32>, vector<8x16xf32>, vector<50x16xf32> -> vector<50x16xf32>
    %62 = arith.addf %56, %61 : vector<50x16xf32>
    %c0_36 = arith.constant 0 : index
    %c0_37 = arith.constant 0 : index
    %63 = vector.load %arg5[%c0_36, %c0_37] : memref<1x16xf32, #tpu.memory_space<vmem>>, vector<1x16xf32>
    %64 = vector.broadcast %63 : vector<1x16xf32> to vector<50x16xf32>
    %65 = arith.addf %62, %64 : vector<50x16xf32>
    %cst_38 = arith.constant 0.000000e+00 : f32
    %66 = vector.broadcast %cst_38 : f32 to vector<50x16xf32>
    %67 = arith.maximumf %65, %66 : vector<50x16xf32>
    %68 = vector.shape_cast %67 : vector<50x16xf32> to vector<2x5x5x16xf32>
    %69 = vector.extract_strided_slice %68 {offsets = [0, 0, 0, 0], sizes = [2, 3, 3, 16], strides = [1, 1, 1, 1]} : vector<2x5x5x16xf32> to vector<2x3x3x16xf32>
    %70 = vector.shape_cast %69 : vector<2x3x3x16xf32> to vector<18x16xf32>
    %c0_39 = arith.constant 0 : index
    %c0_40 = arith.constant 0 : index
    %c0_41 = arith.constant 0 : index
    %71 = vector.load %arg6[%c0_39, %c0_40, %c0_41] : memref<9x16x32xf32, #tpu.memory_space<vmem>>, vector<1x16x32xf32>
    %72 = vector.shape_cast %71 : vector<1x16x32xf32> to vector<16x32xf32>
    %cst_42 = arith.constant dense<0.000000e+00> : vector<18x32xf32>
    %73 = tpu.matmul %70, %72, %cst_42 {dimension_numbers = #tpu.dot_dimension_numbers<[1], [0], [0], [1], [0, 0, 1, 1], [], []>} : vector<18x16xf32>, vector<16x32xf32>, vector<18x32xf32> -> vector<18x32xf32>
    %74 = vector.extract_strided_slice %68 {offsets = [0, 0, 1, 0], sizes = [2, 3, 3, 16], strides = [1, 1, 1, 1]} : vector<2x5x5x16xf32> to vector<2x3x3x16xf32>
    %75 = vector.shape_cast %74 : vector<2x3x3x16xf32> to vector<18x16xf32>
    %c1_43 = arith.constant 1 : index
    %c0_44 = arith.constant 0 : index
    %c0_45 = arith.constant 0 : index
    %76 = vector.load %arg6[%c1_43, %c0_44, %c0_45] : memref<9x16x32xf32, #tpu.memory_space<vmem>>, vector<1x16x32xf32>
    %77 = vector.shape_cast %76 : vector<1x16x32xf32> to vector<16x32xf32>
    %cst_46 = arith.constant dense<0.000000e+00> : vector<18x32xf32>
    %78 = tpu.matmul %75, %77, %cst_46 {dimension_numbers = #tpu.dot_dimension_numbers<[1], [0], [0], [1], [0, 0, 1, 1], [], []>} : vector<18x16xf32>, vector<16x32xf32>, vector<18x32xf32> -> vector<18x32xf32>
    %79 = arith.addf %73, %78 : vector<18x32xf32>
    %80 = vector.extract_strided_slice %68 {offsets = [0, 0, 2, 0], sizes = [2, 3, 3, 16], strides = [1, 1, 1, 1]} : vector<2x5x5x16xf32> to vector<2x3x3x16xf32>
    %81 = vector.shape_cast %80 : vector<2x3x3x16xf32> to vector<18x16xf32>
    %c2_47 = arith.constant 2 : index
    %c0_48 = arith.constant 0 : index
    %c0_49 = arith.constant 0 : index
    %82 = vector.load %arg6[%c2_47, %c0_48, %c0_49] : memref<9x16x32xf32, #tpu.memory_space<vmem>>, vector<1x16x32xf32>
    %83 = vector.shape_cast %82 : vector<1x16x32xf32> to vector<16x32xf32>
    %cst_50 = arith.constant dense<0.000000e+00> : vector<18x32xf32>
    %84 = tpu.matmul %81, %83, %cst_50 {dimension_numbers = #tpu.dot_dimension_numbers<[1], [0], [0], [1], [0, 0, 1, 1], [], []>} : vector<18x16xf32>, vector<16x32xf32>, vector<18x32xf32> -> vector<18x32xf32>
    %85 = arith.addf %79, %84 : vector<18x32xf32>
    %86 = vector.extract_strided_slice %68 {offsets = [0, 1, 0, 0], sizes = [2, 3, 3, 16], strides = [1, 1, 1, 1]} : vector<2x5x5x16xf32> to vector<2x3x3x16xf32>
    %87 = vector.shape_cast %86 : vector<2x3x3x16xf32> to vector<18x16xf32>
    %c3_51 = arith.constant 3 : index
    %c0_52 = arith.constant 0 : index
    %c0_53 = arith.constant 0 : index
    %88 = vector.load %arg6[%c3_51, %c0_52, %c0_53] : memref<9x16x32xf32, #tpu.memory_space<vmem>>, vector<1x16x32xf32>
    %89 = vector.shape_cast %88 : vector<1x16x32xf32> to vector<16x32xf32>
    %cst_54 = arith.constant dense<0.000000e+00> : vector<18x32xf32>
    %90 = tpu.matmul %87, %89, %cst_54 {dimension_numbers = #tpu.dot_dimension_numbers<[1], [0], [0], [1], [0, 0, 1, 1], [], []>} : vector<18x16xf32>, vector<16x32xf32>, vector<18x32xf32> -> vector<18x32xf32>
    %91 = arith.addf %85, %90 : vector<18x32xf32>
    %92 = vector.extract_strided_slice %68 {offsets = [0, 1, 1, 0], sizes = [2, 3, 3, 16], strides = [1, 1, 1, 1]} : vector<2x5x5x16xf32> to vector<2x3x3x16xf32>
    %93 = vector.shape_cast %92 : vector<2x3x3x16xf32> to vector<18x16xf32>
    %c4_55 = arith.constant 4 : index
    %c0_56 = arith.constant 0 : index
    %c0_57 = arith.constant 0 : index
    %94 = vector.load %arg6[%c4_55, %c0_56, %c0_57] : memref<9x16x32xf32, #tpu.memory_space<vmem>>, vector<1x16x32xf32>
    %95 = vector.shape_cast %94 : vector<1x16x32xf32> to vector<16x32xf32>
    %cst_58 = arith.constant dense<0.000000e+00> : vector<18x32xf32>
    %96 = tpu.matmul %93, %95, %cst_58 {dimension_numbers = #tpu.dot_dimension_numbers<[1], [0], [0], [1], [0, 0, 1, 1], [], []>} : vector<18x16xf32>, vector<16x32xf32>, vector<18x32xf32> -> vector<18x32xf32>
    %97 = arith.addf %91, %96 : vector<18x32xf32>
    %98 = vector.extract_strided_slice %68 {offsets = [0, 1, 2, 0], sizes = [2, 3, 3, 16], strides = [1, 1, 1, 1]} : vector<2x5x5x16xf32> to vector<2x3x3x16xf32>
    %99 = vector.shape_cast %98 : vector<2x3x3x16xf32> to vector<18x16xf32>
    %c5_59 = arith.constant 5 : index
    %c0_60 = arith.constant 0 : index
    %c0_61 = arith.constant 0 : index
    %100 = vector.load %arg6[%c5_59, %c0_60, %c0_61] : memref<9x16x32xf32, #tpu.memory_space<vmem>>, vector<1x16x32xf32>
    %101 = vector.shape_cast %100 : vector<1x16x32xf32> to vector<16x32xf32>
    %cst_62 = arith.constant dense<0.000000e+00> : vector<18x32xf32>
    %102 = tpu.matmul %99, %101, %cst_62 {dimension_numbers = #tpu.dot_dimension_numbers<[1], [0], [0], [1], [0, 0, 1, 1], [], []>} : vector<18x16xf32>, vector<16x32xf32>, vector<18x32xf32> -> vector<18x32xf32>
    %103 = arith.addf %97, %102 : vector<18x32xf32>
    %104 = vector.extract_strided_slice %68 {offsets = [0, 2, 0, 0], sizes = [2, 3, 3, 16], strides = [1, 1, 1, 1]} : vector<2x5x5x16xf32> to vector<2x3x3x16xf32>
    %105 = vector.shape_cast %104 : vector<2x3x3x16xf32> to vector<18x16xf32>
    %c6_63 = arith.constant 6 : index
    %c0_64 = arith.constant 0 : index
    %c0_65 = arith.constant 0 : index
    %106 = vector.load %arg6[%c6_63, %c0_64, %c0_65] : memref<9x16x32xf32, #tpu.memory_space<vmem>>, vector<1x16x32xf32>
    %107 = vector.shape_cast %106 : vector<1x16x32xf32> to vector<16x32xf32>
    %cst_66 = arith.constant dense<0.000000e+00> : vector<18x32xf32>
    %108 = tpu.matmul %105, %107, %cst_66 {dimension_numbers = #tpu.dot_dimension_numbers<[1], [0], [0], [1], [0, 0, 1, 1], [], []>} : vector<18x16xf32>, vector<16x32xf32>, vector<18x32xf32> -> vector<18x32xf32>
    %109 = arith.addf %103, %108 : vector<18x32xf32>
    %110 = vector.extract_strided_slice %68 {offsets = [0, 2, 1, 0], sizes = [2, 3, 3, 16], strides = [1, 1, 1, 1]} : vector<2x5x5x16xf32> to vector<2x3x3x16xf32>
    %111 = vector.shape_cast %110 : vector<2x3x3x16xf32> to vector<18x16xf32>
    %c7_67 = arith.constant 7 : index
    %c0_68 = arith.constant 0 : index
    %c0_69 = arith.constant 0 : index
    %112 = vector.load %arg6[%c7_67, %c0_68, %c0_69] : memref<9x16x32xf32, #tpu.memory_space<vmem>>, vector<1x16x32xf32>
    %113 = vector.shape_cast %112 : vector<1x16x32xf32> to vector<16x32xf32>
    %cst_70 = arith.constant dense<0.000000e+00> : vector<18x32xf32>
    %114 = tpu.matmul %111, %113, %cst_70 {dimension_numbers = #tpu.dot_dimension_numbers<[1], [0], [0], [1], [0, 0, 1, 1], [], []>} : vector<18x16xf32>, vector<16x32xf32>, vector<18x32xf32> -> vector<18x32xf32>
    %115 = arith.addf %109, %114 : vector<18x32xf32>
    %116 = vector.extract_strided_slice %68 {offsets = [0, 2, 2, 0], sizes = [2, 3, 3, 16], strides = [1, 1, 1, 1]} : vector<2x5x5x16xf32> to vector<2x3x3x16xf32>
    %117 = vector.shape_cast %116 : vector<2x3x3x16xf32> to vector<18x16xf32>
    %c8_71 = arith.constant 8 : index
    %c0_72 = arith.constant 0 : index
    %c0_73 = arith.constant 0 : index
    %118 = vector.load %arg6[%c8_71, %c0_72, %c0_73] : memref<9x16x32xf32, #tpu.memory_space<vmem>>, vector<1x16x32xf32>
    %119 = vector.shape_cast %118 : vector<1x16x32xf32> to vector<16x32xf32>
    %cst_74 = arith.constant dense<0.000000e+00> : vector<18x32xf32>
    %120 = tpu.matmul %117, %119, %cst_74 {dimension_numbers = #tpu.dot_dimension_numbers<[1], [0], [0], [1], [0, 0, 1, 1], [], []>} : vector<18x16xf32>, vector<16x32xf32>, vector<18x32xf32> -> vector<18x32xf32>
    %121 = arith.addf %115, %120 : vector<18x32xf32>
    %c0_75 = arith.constant 0 : index
    %c0_76 = arith.constant 0 : index
    %122 = vector.load %arg7[%c0_75, %c0_76] : memref<1x32xf32, #tpu.memory_space<vmem>>, vector<1x32xf32>
    %123 = vector.broadcast %122 : vector<1x32xf32> to vector<18x32xf32>
    %124 = arith.addf %121, %123 : vector<18x32xf32>
    %cst_77 = arith.constant 0.000000e+00 : f32
    %125 = vector.broadcast %cst_77 : f32 to vector<18x32xf32>
    %126 = arith.maximumf %124, %125 : vector<18x32xf32>
    %127 = vector.shape_cast %126 : vector<18x32xf32> to vector<2x3x3x32xf32>
    %128 = vector.extract_strided_slice %127 {offsets = [0, 0, 0, 0], sizes = [2, 1, 1, 32], strides = [1, 1, 1, 1]} : vector<2x3x3x32xf32> to vector<2x1x1x32xf32>
    %129 = vector.shape_cast %128 : vector<2x1x1x32xf32> to vector<2x32xf32>
    %c0_78 = arith.constant 0 : index
    %c0_79 = arith.constant 0 : index
    %c0_80 = arith.constant 0 : index
    %130 = vector.load %arg8[%c0_78, %c0_79, %c0_80] : memref<9x32x48xf32, #tpu.memory_space<vmem>>, vector<1x32x48xf32>
    %131 = vector.shape_cast %130 : vector<1x32x48xf32> to vector<32x48xf32>
    %cst_81 = arith.constant dense<0.000000e+00> : vector<2x48xf32>
    %132 = tpu.matmul %129, %131, %cst_81 {dimension_numbers = #tpu.dot_dimension_numbers<[1], [0], [0], [1], [0, 0, 1, 1], [], []>} : vector<2x32xf32>, vector<32x48xf32>, vector<2x48xf32> -> vector<2x48xf32>
    %133 = vector.extract_strided_slice %127 {offsets = [0, 0, 1, 0], sizes = [2, 1, 1, 32], strides = [1, 1, 1, 1]} : vector<2x3x3x32xf32> to vector<2x1x1x32xf32>
    %134 = vector.shape_cast %133 : vector<2x1x1x32xf32> to vector<2x32xf32>
    %c1_82 = arith.constant 1 : index
    %c0_83 = arith.constant 0 : index
    %c0_84 = arith.constant 0 : index
    %135 = vector.load %arg8[%c1_82, %c0_83, %c0_84] : memref<9x32x48xf32, #tpu.memory_space<vmem>>, vector<1x32x48xf32>
    %136 = vector.shape_cast %135 : vector<1x32x48xf32> to vector<32x48xf32>
    %cst_85 = arith.constant dense<0.000000e+00> : vector<2x48xf32>
    %137 = tpu.matmul %134, %136, %cst_85 {dimension_numbers = #tpu.dot_dimension_numbers<[1], [0], [0], [1], [0, 0, 1, 1], [], []>} : vector<2x32xf32>, vector<32x48xf32>, vector<2x48xf32> -> vector<2x48xf32>
    %138 = arith.addf %132, %137 : vector<2x48xf32>
    %139 = vector.extract_strided_slice %127 {offsets = [0, 0, 2, 0], sizes = [2, 1, 1, 32], strides = [1, 1, 1, 1]} : vector<2x3x3x32xf32> to vector<2x1x1x32xf32>
    %140 = vector.shape_cast %139 : vector<2x1x1x32xf32> to vector<2x32xf32>
    %c2_86 = arith.constant 2 : index
    %c0_87 = arith.constant 0 : index
    %c0_88 = arith.constant 0 : index
    %141 = vector.load %arg8[%c2_86, %c0_87, %c0_88] : memref<9x32x48xf32, #tpu.memory_space<vmem>>, vector<1x32x48xf32>
    %142 = vector.shape_cast %141 : vector<1x32x48xf32> to vector<32x48xf32>
    %cst_89 = arith.constant dense<0.000000e+00> : vector<2x48xf32>
    %143 = tpu.matmul %140, %142, %cst_89 {dimension_numbers = #tpu.dot_dimension_numbers<[1], [0], [0], [1], [0, 0, 1, 1], [], []>} : vector<2x32xf32>, vector<32x48xf32>, vector<2x48xf32> -> vector<2x48xf32>
    %144 = arith.addf %138, %143 : vector<2x48xf32>
    %145 = vector.extract_strided_slice %127 {offsets = [0, 1, 0, 0], sizes = [2, 1, 1, 32], strides = [1, 1, 1, 1]} : vector<2x3x3x32xf32> to vector<2x1x1x32xf32>
    %146 = vector.shape_cast %145 : vector<2x1x1x32xf32> to vector<2x32xf32>
    %c3_90 = arith.constant 3 : index
    %c0_91 = arith.constant 0 : index
    %c0_92 = arith.constant 0 : index
    %147 = vector.load %arg8[%c3_90, %c0_91, %c0_92] : memref<9x32x48xf32, #tpu.memory_space<vmem>>, vector<1x32x48xf32>
    %148 = vector.shape_cast %147 : vector<1x32x48xf32> to vector<32x48xf32>
    %cst_93 = arith.constant dense<0.000000e+00> : vector<2x48xf32>
    %149 = tpu.matmul %146, %148, %cst_93 {dimension_numbers = #tpu.dot_dimension_numbers<[1], [0], [0], [1], [0, 0, 1, 1], [], []>} : vector<2x32xf32>, vector<32x48xf32>, vector<2x48xf32> -> vector<2x48xf32>
    %150 = arith.addf %144, %149 : vector<2x48xf32>
    %151 = vector.extract_strided_slice %127 {offsets = [0, 1, 1, 0], sizes = [2, 1, 1, 32], strides = [1, 1, 1, 1]} : vector<2x3x3x32xf32> to vector<2x1x1x32xf32>
    %152 = vector.shape_cast %151 : vector<2x1x1x32xf32> to vector<2x32xf32>
    %c4_94 = arith.constant 4 : index
    %c0_95 = arith.constant 0 : index
    %c0_96 = arith.constant 0 : index
    %153 = vector.load %arg8[%c4_94, %c0_95, %c0_96] : memref<9x32x48xf32, #tpu.memory_space<vmem>>, vector<1x32x48xf32>
    %154 = vector.shape_cast %153 : vector<1x32x48xf32> to vector<32x48xf32>
    %cst_97 = arith.constant dense<0.000000e+00> : vector<2x48xf32>
    %155 = tpu.matmul %152, %154, %cst_97 {dimension_numbers = #tpu.dot_dimension_numbers<[1], [0], [0], [1], [0, 0, 1, 1], [], []>} : vector<2x32xf32>, vector<32x48xf32>, vector<2x48xf32> -> vector<2x48xf32>
    %156 = arith.addf %150, %155 : vector<2x48xf32>
    %157 = vector.extract_strided_slice %127 {offsets = [0, 1, 2, 0], sizes = [2, 1, 1, 32], strides = [1, 1, 1, 1]} : vector<2x3x3x32xf32> to vector<2x1x1x32xf32>
    %158 = vector.shape_cast %157 : vector<2x1x1x32xf32> to vector<2x32xf32>
    %c5_98 = arith.constant 5 : index
    %c0_99 = arith.constant 0 : index
    %c0_100 = arith.constant 0 : index
    %159 = vector.load %arg8[%c5_98, %c0_99, %c0_100] : memref<9x32x48xf32, #tpu.memory_space<vmem>>, vector<1x32x48xf32>
    %160 = vector.shape_cast %159 : vector<1x32x48xf32> to vector<32x48xf32>
    %cst_101 = arith.constant dense<0.000000e+00> : vector<2x48xf32>
    %161 = tpu.matmul %158, %160, %cst_101 {dimension_numbers = #tpu.dot_dimension_numbers<[1], [0], [0], [1], [0, 0, 1, 1], [], []>} : vector<2x32xf32>, vector<32x48xf32>, vector<2x48xf32> -> vector<2x48xf32>
    %162 = arith.addf %156, %161 : vector<2x48xf32>
    %163 = vector.extract_strided_slice %127 {offsets = [0, 2, 0, 0], sizes = [2, 1, 1, 32], strides = [1, 1, 1, 1]} : vector<2x3x3x32xf32> to vector<2x1x1x32xf32>
    %164 = vector.shape_cast %163 : vector<2x1x1x32xf32> to vector<2x32xf32>
    %c6_102 = arith.constant 6 : index
    %c0_103 = arith.constant 0 : index
    %c0_104 = arith.constant 0 : index
    %165 = vector.load %arg8[%c6_102, %c0_103, %c0_104] : memref<9x32x48xf32, #tpu.memory_space<vmem>>, vector<1x32x48xf32>
    %166 = vector.shape_cast %165 : vector<1x32x48xf32> to vector<32x48xf32>
    %cst_105 = arith.constant dense<0.000000e+00> : vector<2x48xf32>
    %167 = tpu.matmul %164, %166, %cst_105 {dimension_numbers = #tpu.dot_dimension_numbers<[1], [0], [0], [1], [0, 0, 1, 1], [], []>} : vector<2x32xf32>, vector<32x48xf32>, vector<2x48xf32> -> vector<2x48xf32>
    %168 = arith.addf %162, %167 : vector<2x48xf32>
    %169 = vector.extract_strided_slice %127 {offsets = [0, 2, 1, 0], sizes = [2, 1, 1, 32], strides = [1, 1, 1, 1]} : vector<2x3x3x32xf32> to vector<2x1x1x32xf32>
    %170 = vector.shape_cast %169 : vector<2x1x1x32xf32> to vector<2x32xf32>
    %c7_106 = arith.constant 7 : index
    %c0_107 = arith.constant 0 : index
    %c0_108 = arith.constant 0 : index
    %171 = vector.load %arg8[%c7_106, %c0_107, %c0_108] : memref<9x32x48xf32, #tpu.memory_space<vmem>>, vector<1x32x48xf32>
    %172 = vector.shape_cast %171 : vector<1x32x48xf32> to vector<32x48xf32>
    %cst_109 = arith.constant dense<0.000000e+00> : vector<2x48xf32>
    %173 = tpu.matmul %170, %172, %cst_109 {dimension_numbers = #tpu.dot_dimension_numbers<[1], [0], [0], [1], [0, 0, 1, 1], [], []>} : vector<2x32xf32>, vector<32x48xf32>, vector<2x48xf32> -> vector<2x48xf32>
    %174 = arith.addf %168, %173 : vector<2x48xf32>
    %175 = vector.extract_strided_slice %127 {offsets = [0, 2, 2, 0], sizes = [2, 1, 1, 32], strides = [1, 1, 1, 1]} : vector<2x3x3x32xf32> to vector<2x1x1x32xf32>
    %176 = vector.shape_cast %175 : vector<2x1x1x32xf32> to vector<2x32xf32>
    %c8_110 = arith.constant 8 : index
    %c0_111 = arith.constant 0 : index
    %c0_112 = arith.constant 0 : index
    %177 = vector.load %arg8[%c8_110, %c0_111, %c0_112] : memref<9x32x48xf32, #tpu.memory_space<vmem>>, vector<1x32x48xf32>
    %178 = vector.shape_cast %177 : vector<1x32x48xf32> to vector<32x48xf32>
    %cst_113 = arith.constant dense<0.000000e+00> : vector<2x48xf32>
    %179 = tpu.matmul %176, %178, %cst_113 {dimension_numbers = #tpu.dot_dimension_numbers<[1], [0], [0], [1], [0, 0, 1, 1], [], []>} : vector<2x32xf32>, vector<32x48xf32>, vector<2x48xf32> -> vector<2x48xf32>
    %180 = arith.addf %174, %179 : vector<2x48xf32>
    %c0_114 = arith.constant 0 : index
    %c0_115 = arith.constant 0 : index
    %181 = vector.load %arg9[%c0_114, %c0_115] : memref<1x48xf32, #tpu.memory_space<vmem>>, vector<1x48xf32>
    %182 = vector.broadcast %181 : vector<1x48xf32> to vector<2x48xf32>
    %183 = arith.addf %180, %182 : vector<2x48xf32>
    %cst_116 = arith.constant 0.000000e+00 : f32
    %184 = vector.broadcast %cst_116 : f32 to vector<2x48xf32>
    %185 = arith.maximumf %183, %184 : vector<2x48xf32>
    %186 = vector.shape_cast %185 : vector<2x48xf32> to vector<2x1x1x48xf32>
    %187 = vector.shape_cast %186 : vector<2x1x1x48xf32> to vector<2x48xf32>
    %c0_117 = arith.constant 0 : index
    %c0_118 = arith.constant 0 : index
    %188 = vector.load %arg10[%c0_117, %c0_118] : memref<48x96xf32, #tpu.memory_space<vmem>>, vector<48x96xf32>
    %cst_119 = arith.constant dense<0.000000e+00> : vector<2x96xf32>
    %189 = tpu.matmul %187, %188, %cst_119 {dimension_numbers = #tpu.dot_dimension_numbers<[1], [0], [0], [1], [0, 0, 1, 1], [], []>} : vector<2x48xf32>, vector<48x96xf32>, vector<2x96xf32> -> vector<2x96xf32>
    %c0_120 = arith.constant 0 : index
    %c0_121 = arith.constant 0 : index
    %190 = vector.load %arg11[%c0_120, %c0_121] : memref<1x96xf32, #tpu.memory_space<vmem>>, vector<1x96xf32>
    %191 = vector.broadcast %190 : vector<1x96xf32> to vector<2x96xf32>
    %192 = arith.addf %189, %191 : vector<2x96xf32>
    %cst_122 = arith.constant 0.000000e+00 : f32
    %193 = vector.broadcast %cst_122 : f32 to vector<2x96xf32>
    %194 = arith.maximumf %192, %193 : vector<2x96xf32>
    %c0_123 = arith.constant 0 : index
    %c0_124 = arith.constant 0 : index
    %195 = vector.load %arg12[%c0_123, %c0_124] : memref<96x15xf32, #tpu.memory_space<vmem>>, vector<96x15xf32>
    %cst_125 = arith.constant dense<0.000000e+00> : vector<2x15xf32>
    %196 = tpu.matmul %194, %195, %cst_125 {dimension_numbers = #tpu.dot_dimension_numbers<[1], [0], [0], [1], [0, 0, 1, 1], [], []>} : vector<2x96xf32>, vector<96x15xf32>, vector<2x15xf32> -> vector<2x15xf32>
    %c0_126 = arith.constant 0 : index
    %c0_127 = arith.constant 0 : index
    %197 = vector.load %arg13[%c0_126, %c0_127] : memref<1x15xf32, #tpu.memory_space<vmem>>, vector<1x15xf32>
    %198 = vector.broadcast %197 : vector<1x15xf32> to vector<2x15xf32>
    %199 = arith.addf %196, %198 : vector<2x15xf32>
    %c0_128 = arith.constant 0 : index
    %c0_129 = arith.constant 0 : index
    %200 = vector.load %arg14[%c0_128, %c0_129] : memref<2x15xf32, #tpu.memory_space<vmem>>, vector<2x15xf32>
    tpu.vector_store %arg14[%c0_128, %c0_129], %199 {strides = array<i32>} : memref<2x15xf32, #tpu.memory_space<vmem>>, vector<2x15xf32>,
    return
  }
  func.func @transform_0(%arg0: i32) -> (i32, i32, i32, i32) {
    %c0_i32 = arith.constant 0 : i32
    %c0_i32_0 = arith.constant 0 : i32
    %c0_i32_1 = arith.constant 0 : i32
    %c0_i32_2 = arith.constant 0 : i32
    return %arg0, %c0_i32, %c0_i32_0, %c0_i32_1 : i32, i32, i32, i32
  }
  func.func @transform_1(%arg0: i32) -> (i32, i32) {
    %c0_i32 = arith.constant 0 : i32
    %c0_i32_0 = arith.constant 0 : i32
    %c0_i32_1 = arith.constant 0 : i32
    return %c0_i32, %c0_i32_0 : i32, i32
  }
  func.func @transform_2(%arg0: i32) -> (i32, i32) {
    %c0_i32 = arith.constant 0 : i32
    %c0_i32_0 = arith.constant 0 : i32
    %c0_i32_1 = arith.constant 0 : i32
    return %c0_i32, %c0_i32_0 : i32, i32
  }
  func.func @transform_3(%arg0: i32) -> (i32, i32, i32) {
    %c0_i32 = arith.constant 0 : i32
    %c0_i32_0 = arith.constant 0 : i32
    %c0_i32_1 = arith.constant 0 : i32
    %c0_i32_2 = arith.constant 0 : i32
    return %c0_i32, %c0_i32_0, %c0_i32_1 : i32, i32, i32
  }
  func.func @transform_4(%arg0: i32) -> (i32, i32) {
    %c0_i32 = arith.constant 0 : i32
    %c0_i32_0 = arith.constant 0 : i32
    %c0_i32_1 = arith.constant 0 : i32
    return %c0_i32, %c0_i32_0 : i32, i32
  }
  func.func @transform_5(%arg0: i32) -> (i32, i32, i32) {
    %c0_i32 = arith.constant 0 : i32
    %c0_i32_0 = arith.constant 0 : i32
    %c0_i32_1 = arith.constant 0 : i32
    %c0_i32_2 = arith.constant 0 : i32
    return %c0_i32, %c0_i32_0, %c0_i32_1 : i32, i32, i32
  }
  func.func @transform_6(%arg0: i32) -> (i32, i32) {
    %c0_i32 = arith.constant 0 : i32
    %c0_i32_0 = arith.constant 0 : i32
    %c0_i32_1 = arith.constant 0 : i32
    return %c0_i32, %c0_i32_0 : i32, i32
  }
  func.func @transform_7(%arg0: i32) -> (i32, i32, i32) {
    %c0_i32 = arith.constant 0 : i32
    %c0_i32_0 = arith.constant 0 : i32
    %c0_i32_1 = arith.constant 0 : i32
    %c0_i32_2 = arith.constant 0 : i32
    return %c0_i32, %c0_i32_0, %c0_i32_1 : i32, i32, i32
  }
  func.func @transform_8(%arg0: i32) -> (i32, i32) {
    %c0_i32 = arith.constant 0 : i32
    %c0_i32_0 = arith.constant 0 : i32
    %c0_i32_1 = arith.constant 0 : i32
    return %c0_i32, %c0_i32_0 : i32, i32
  }
  func.func @transform_9(%arg0: i32) -> (i32, i32) {
    %c0_i32 = arith.constant 0 : i32
    %c0_i32_0 = arith.constant 0 : i32
    %c0_i32_1 = arith.constant 0 : i32
    return %c0_i32, %c0_i32_0 : i32, i32
  }
  func.func @transform_10(%arg0: i32) -> (i32, i32) {
    %c0_i32 = arith.constant 0 : i32
    %c0_i32_0 = arith.constant 0 : i32
    %c0_i32_1 = arith.constant 0 : i32
    return %c0_i32, %c0_i32_0 : i32, i32
  }
  func.func @transform_11(%arg0: i32) -> (i32, i32) {
    %c0_i32 = arith.constant 0 : i32
    %c0_i32_0 = arith.constant 0 : i32
    %c0_i32_1 = arith.constant 0 : i32
    return %c0_i32, %c0_i32_0 : i32, i32
  }
  func.func @transform_12(%arg0: i32) -> (i32, i32) {
    %c0_i32 = arith.constant 0 : i32
    %c0_i32_0 = arith.constant 0 : i32
    %c0_i32_1 = arith.constant 0 : i32
    return %c0_i32, %c0_i32_0 : i32, i32
  }
  func.func @transform_13(%arg0: i32) -> (i32, i32) {
    %c0_i32 = arith.constant 0 : i32
    %c0_i32_0 = arith.constant 0 : i32
    return %arg0, %c0_i32 : i32, i32
  }
}

</mosaic_0001>

<llo_original>
// kernel: tpu_custom_call.1
$region0: #{tpu_custom_call.1}
  #allocation0 [shape = 'u32[]', space=smem, size = 0x4, offset = 0x4, fixed_abs, tag = 'smem constant byte address 0x4 - core index']
  #allocation1 [shape = 'u32[72,128]{1,0:T(1,128)}', space=vmem, size = 0x9000, scoped, tag = 'internal scratch']
  %s0 = inlined_call_operand.vmem [shape: f32[2,7,7,4], index: 0, kind: input, shape index: {}]
  %s1 = inlined_call_operand.vmem [shape: f32[4,8], index: 1, kind: input, shape index: {}]
  %s2 = inlined_call_operand.vmem [shape: f32[1,8], index: 2, kind: input, shape index: {}]
  %s3 = inlined_call_operand.vmem [shape: f32[9,8,16], index: 3, kind: input, shape index: {}]
  %s4 = inlined_call_operand.vmem [shape: f32[1,16], index: 4, kind: input, shape index: {}]
  %s5 = inlined_call_operand.vmem [shape: f32[9,16,32], index: 5, kind: input, shape index: {}]
  %s6 = inlined_call_operand.vmem [shape: f32[1,32], index: 6, kind: input, shape index: {}]
  %s7 = inlined_call_operand.hbm [shape: f32[9,32,48], index: 7, kind: input, shape index: {}]
  %s8 = inlined_call_operand.vmem [shape: f32[1,48], index: 8, kind: input, shape index: {}]
  %s9 = inlined_call_operand.vmem [shape: f32[48,96], index: 9, kind: input, shape index: {}]
  %s10 = inlined_call_operand.vmem [shape: f32[1,96], index: 10, kind: input, shape index: {}]
  %s11 = inlined_call_operand.vmem [shape: f32[96,15], index: 11, kind: input, shape index: {}]
  %s12 = inlined_call_operand.vmem [shape: f32[1,15], index: 12, kind: input, shape index: {}]
  %s13 = inlined_call_operand.hbm [shape: f32[2,15], index: 13, kind: output, shape index: {}]
  %s14 = sld [smem:[#allocation0]]
  $region66: #{tpu_custom_call.1} parent=0
    _
  %s16 = ssub.s32 1, %s14
  %s17 = scalar_select 0, %s16, %s14
  $region1: #{tpu_custom_call.1} parent=0
    #allocation2 [shape = 'u8[147456]{0}', space=vmem, size = 0x24000, scoped, tag = 'input window, operand 7, single buffered']
    #allocation3 [shape = 's32[1]{0}', space=sflag, size = 0x4, scoped, tag = 'scoped memory for tpu_custom_call.1']
    #allocation4 [shape = 's32[1]{0}', space=sflag, size = 0x4, scoped, tag = 'scoped memory for tpu_custom_call.1']
    #allocation5 [shape = 'u8[1024]{0}', space=vmem, size = 0x400, scoped, tag = 'output window, operand 0, single buffered']
    %18 = vsyncpa [#allocation3], 0
    %19 = vsyncpa [#allocation4], 0
    // Predicated region
    $region2: #{tpu_custom_call.1} parent=1 // pred_check
      _
    $region3: #{tpu_custom_call.1} parent=1 // pred_check_branch
      %21 = sbr.rel (0) target = $region5
    $region4: #{tpu_custom_call.1} parent=1 // pred_region
      _
    $region5: #{tpu_custom_call.1} parent=1 // pred_fallthru
      _
    // Predicated region
    $region6: #{tpu_custom_call.1} parent=1 // pred_check
      _
    $region7: #{tpu_custom_call.1} parent=1 // pred_check_branch
      %23 = sbr.rel (0) target = $region9
    $region8: #{tpu_custom_call.1} parent=1 // pred_region
      _
    $region9: #{tpu_custom_call.1} parent=1 // pred_fallthru
      _
    // Predicated region
    $region10: #{tpu_custom_call.1} parent=1 // pred_check
      _
    $region11: #{tpu_custom_call.1} parent=1 // pred_check_branch
      %25 = sbr.rel (0) target = $region13
    $region12: #{tpu_custom_call.1} parent=1 // pred_region
      _
    $region13: #{tpu_custom_call.1} parent=1 // pred_fallthru
      _
    // Predicated region
    $region14: #{tpu_custom_call.1} parent=1 // pred_check
      _
    $region15: #{tpu_custom_call.1} parent=1 // pred_check_branch
      %27 = sbr.rel (0) target = $region17
    $region16: #{tpu_custom_call.1} parent=1 // pred_region
      _
    $region17: #{tpu_custom_call.1} parent=1 // pred_fallthru
      _
    // Predicated region
    $region18: #{tpu_custom_call.1} parent=1 // pred_check
      _
    $region19: #{tpu_custom_call.1} parent=1 // pred_check_branch
      %29 = sbr.rel (0) target = $region21
    $region20: #{tpu_custom_call.1} parent=1 // pred_region
      _
    $region21: #{tpu_custom_call.1} parent=1 // pred_fallthru
      _
    // Predicated region
    $region22: #{tpu_custom_call.1} parent=1 // pred_check
      _
    $region23: #{tpu_custom_call.1} parent=1 // pred_check_branch
      %31 = sbr.rel (0) target = $region25
    $region24: #{tpu_custom_call.1} parent=1 // pred_region
      _
    $region25: #{tpu_custom_call.1} parent=1 // pred_fallthru
      _
    // Predicated region
    $region26: #{tpu_custom_call.1} parent=1 // pred_check
      _
    $region27: #{tpu_custom_call.1} parent=1 // pred_check_branch
      %33 = sbr.rel (0) target = $region29
    $region28: #{tpu_custom_call.1} parent=1 // pred_region
      _
    $region29: #{tpu_custom_call.1} parent=1 // pred_fallthru
      _
    // Predicated region
    $region30: #{tpu_custom_call.1} parent=1 // pred_check
      _
    $region31: #{tpu_custom_call.1} parent=1 // pred_check_branch
      %35 = sbr.rel (0) target = $region33
    $region32: #{tpu_custom_call.1} parent=1 // pred_region
      %37 = vsyncadd [#allocation3], 0
      %s38 = sshll.u32 %s7, 4
      %s39 = int_to_ptr.hbm [resolvable:$true] %s38
      %s40 = sshll.u32 [#allocation2], 4
      %s41 = int_to_ptr.vmem [resolvable:$true] %s40
      %46 = dma.hbm_to_vmem [thread:$0]  %s39, 4608, %s41, [#allocation3], 128, 128, 8
    $region33: #{tpu_custom_call.1} parent=1 // pred_fallthru
      _
    // Predicated region
    $region34: #{tpu_custom_call.1} parent=1 // pred_check
      _
    $region35: #{tpu_custom_call.1} parent=1 // pred_check_branch
      %48 = sbr.rel (0) target = $region37
    $region36: #{tpu_custom_call.1} parent=1 // pred_region
      _
    $region37: #{tpu_custom_call.1} parent=1 // pred_fallthru
      _
    // Predicated region
    $region38: #{tpu_custom_call.1} parent=1 // pred_check
      _
    $region39: #{tpu_custom_call.1} parent=1 // pred_check_branch
      %50 = sbr.rel (0) target = $region41
    $region40: #{tpu_custom_call.1} parent=1 // pred_region
      _
    $region41: #{tpu_custom_call.1} parent=1 // pred_fallthru
      _
    // Predicated region
    $region42: #{tpu_custom_call.1} parent=1 // pred_check
      _
    $region43: #{tpu_custom_call.1} parent=1 // pred_check_branch
      %52 = sbr.rel (0) target = $region45
    $region44: #{tpu_custom_call.1} parent=1 // pred_region
      _
    $region45: #{tpu_custom_call.1} parent=1 // pred_fallthru
      _
    // Predicated region
    $region46: #{tpu_custom_call.1} parent=1 // pred_check
      _
    $region47: #{tpu_custom_call.1} parent=1 // pred_check_branch
      %54 = sbr.rel (0) target = $region49
    $region48: #{tpu_custom_call.1} parent=1 // pred_region
      _
    $region49: #{tpu_custom_call.1} parent=1 // pred_fallthru
      _
    // Predicated region
    $region50: #{tpu_custom_call.1} parent=1 // pred_check
      _
    $region51: #{tpu_custom_call.1} parent=1 // pred_check_branch
      %56 = sbr.rel (0) target = $region53
    $region52: #{tpu_custom_call.1} parent=1 // pred_region
      _
    $region53: #{tpu_custom_call.1} parent=1 // pred_fallthru
      _
    // Predicated region
    $region54: #{tpu_custom_call.1} parent=1 // pred_check
      _
    $region55: #{tpu_custom_call.1} parent=1 // pred_check_branch
      %58 = sbr.rel (0) target = $region57
    $region56: #{tpu_custom_call.1} parent=1 // pred_region
      %60 = dma.done [#allocation3], 4608
    $region57: #{tpu_custom_call.1} parent=1 // pred_fallthru
      _
    %v61 = vld [vmem:[%s0] sm:$0x7f]
    %v62 = vld [vmem:[%s0 + $0x8] sm:$0x7f]
    %v63 = vld [vmem:[%s0 + $0x10] sm:$0x7f]
    %v64 = vld [vmem:[%s0 + $0x18] sm:$0x7f]
    %v65 = vld [vmem:[%s0 + $0x20] sm:$0x7f]
    %v66 = vld [vmem:[%s0 + $0x28] sm:$0x7f]
    %v67 = vld [vmem:[%s0 + $0x30] sm:$0x7f]
    %v68 = vld [vmem:[%s0 + $0x38] sm:$0x7f]
    %v69 = vld [vmem:[%s0 + $0x40] sm:$0x7f]
    %v70 = vld [vmem:[%s0 + $0x48] sm:$0x7f]
    %v71 = vld [vmem:[%s0 + $0x50] sm:$0x7f]
    %v72 = vld [vmem:[%s0 + $0x58] sm:$0x7f]
    %v73 = vld [vmem:[%s0 + $0x60] sm:$0x7f]
    %v74 = vld [vmem:[%s0 + $0x68] sm:$0x7f]
    %v89 = vrot.slane %v61, 1
    %v90 = vrot.slane %v61, 2
    %v91 = vrot.slane %v61, 3
    %v92 = vrot.slane %v61, 4
    %v93 = vrot.slane %v61, 5
    %v94 = vrot.slane %v61, 6
    %v95 = vrot.slane %v62, 1
    %v96 = vrot.slane %v62, 2
    %v97 = vrot.slane %v62, 3
    %v98 = vrot.slane %v62, 4
    %v99 = vrot.slane %v62, 5
    %v100 = vrot.slane %v62, 6
    %v101 = vrot.slane %v63, 1
    %v102 = vrot.slane %v63, 2
    %v103 = vrot.slane %v63, 3
    %v104 = vrot.slane %v63, 4
    %v105 = vrot.slane %v63, 5
    %v106 = vrot.slane %v63, 6
    %v107 = vrot.slane %v64, 1
    %v108 = vrot.slane %v64, 2
    %v109 = vrot.slane %v64, 3
    %v110 = vrot.slane %v64, 4
    %v111 = vrot.slane %v64, 5
    %v112 = vrot.slane %v64, 6
    %v113 = vrot.slane %v65, 1
    %v114 = vrot.slane %v65, 2
    %v115 = vrot.slane %v65, 3
    %v116 = vrot.slane %v65, 4
    %v117 = vrot.slane %v65, 5
    %v118 = vrot.slane %v65, 6
    %v119 = vrot.slane %v66, 1
    %v120 = vrot.slane %v66, 2
    %v121 = vrot.slane %v66, 3
    %v122 = vrot.slane %v66, 4
    %v123 = vrot.slane %v66, 5
    %v124 = vrot.slane %v66, 6
    %v125 = vrot.slane %v67, 1
    %v126 = vrot.slane %v67, 2
    %v127 = vrot.slane %v67, 3
    %v128 = vrot.slane %v67, 4
    %v129 = vrot.slane %v67, 5
    %v130 = vrot.slane %v67, 6
    %v131 = vrot.slane %v68, 1
    %v132 = vrot.slane %v68, 2
    %v133 = vrot.slane %v68, 3
    %v134 = vrot.slane %v68, 4
    %v135 = vrot.slane %v68, 5
    %v136 = vrot.slane %v68, 6
    %v137 = vrot.slane %v69, 1
    %v138 = vrot.slane %v69, 2
    %v139 = vrot.slane %v69, 3
    %v140 = vrot.slane %v69, 4
    %v141 = vrot.slane %v69, 5
    %v142 = vrot.slane %v69, 6
    %v143 = vrot.slane %v70, 1
    %v144 = vrot.slane %v70, 2
    %v145 = vrot.slane %v70, 3
    %v146 = vrot.slane %v70, 4
    %v147 = vrot.slane %v70, 5
    %v148 = vrot.slane %v70, 6
    %v149 = vrot.slane %v71, 1
    %v150 = vrot.slane %v71, 2
    %v151 = vrot.slane %v71, 3
    %v152 = vrot.slane %v71, 4
    %v153 = vrot.slane %v71, 5
    %v154 = vrot.slane %v71, 6
    %v155 = vrot.slane %v72, 1
    %v156 = vrot.slane %v72, 2
    %v157 = vrot.slane %v72, 3
    %v158 = vrot.slane %v72, 4
    %v159 = vrot.slane %v72, 5
    %v160 = vrot.slane %v72, 6
    %v161 = vrot.slane %v73, 1
    %v162 = vrot.slane %v73, 2
    %v163 = vrot.slane %v73, 3
    %v164 = vrot.slane %v73, 4
    %v165 = vrot.slane %v73, 5
    %v166 = vrot.slane %v73, 6
    %v167 = vrot.slane %v74, 1
    %v168 = vrot.slane %v74, 2
    %v169 = vrot.slane %v74, 3
    %v170 = vrot.slane %v74, 4
    %v171 = vrot.slane %v74, 5
    %v172 = vrot.slane %v74, 6
    %v173 = vld [vmem:[%s1] sm:$0xf]
    %v174 = vld [vmem:[%s2] sm:$0x1]
    %v176 = vperm.slane %v174, 0
    %178 = vst [vmem:[#allocation1] ss:$9 sm:$0xff] %v61
    %s179 = scalar_lea.vmem [#allocation1], 1
    %180 = vst [vmem:[%s179] ss:$9 sm:$0xff] %v89
    %s181 = scalar_lea.vmem [#allocation1], 2
    %182 = vst [vmem:[%s181] ss:$9 sm:$0xff] %v90
    %s183 = scalar_lea.vmem [#allocation1], 3
    %184 = vst [vmem:[%s183] ss:$9 sm:$0xff] %v91
    %s185 = scalar_lea.vmem [#allocation1], 4
    %186 = vst [vmem:[%s185] ss:$9 sm:$0xff] %v92
    %s187 = scalar_lea.vmem [#allocation1], 5
    %188 = vst [vmem:[%s187] ss:$9 sm:$0xff] %v93
    %s189 = scalar_lea.vmem [#allocation1], 6
    %190 = vst [vmem:[%s189] ss:$9 sm:$0xff] %v94
    %s191 = scalar_lea.vmem [#allocation1], 7
    %192 = vst [vmem:[%s191] ss:$9 sm:$0xff] %v62
    %v193 = vld [vmem:[#allocation1] sm:$0xff]
    %194 = vst [vmem:[#allocation1] ss:$9 sm:$0xff] %v95
    %195 = vst [vmem:[%s179] ss:$9 sm:$0xff] %v96
    %196 = vst [vmem:[%s181] ss:$9 sm:$0xff] %v97
    %197 = vst [vmem:[%s183] ss:$9 sm:$0xff] %v98
    %198 = vst [vmem:[%s185] ss:$9 sm:$0xff] %v99
    %199 = vst [vmem:[%s187] ss:$9 sm:$0xff] %v100
    %200 = vst [vmem:[%s189] ss:$9 sm:$0xff] %v63
    %201 = vst [vmem:[%s191] ss:$9 sm:$0xff] %v101
    %v202 = vld [vmem:[#allocation1] sm:$0xff]
    %203 = vst [vmem:[#allocation1] ss:$9 sm:$0xff] %v102
    %204 = vst [vmem:[%s179] ss:$9 sm:$0xff] %v103
    %205 = vst [vmem:[%s181] ss:$9 sm:$0xff] %v104
    %206 = vst [vmem:[%s183] ss:$9 sm:$0xff] %v105
    %207 = vst [vmem:[%s185] ss:$9 sm:$0xff] %v106
    %208 = vst [vmem:[%s187] ss:$9 sm:$0xff] %v64
    %209 = vst [vmem:[%s189] ss:$9 sm:$0xff] %v107
    %210 = vst [vmem:[%s191] ss:$9 sm:$0xff] %v108
    %v211 = vld [vmem:[#allocation1] sm:$0xff]
    %212 = vst [vmem:[#allocation1] ss:$9 sm:$0xff] %v109
    %213 = vst [vmem:[%s179] ss:$9 sm:$0xff] %v110
    %214 = vst [vmem:[%s181] ss:$9 sm:$0xff] %v111
    %215 = vst [vmem:[%s183] ss:$9 sm:$0xff] %v112
    %216 = vst [vmem:[%s185] ss:$9 sm:$0xff] %v65
    %217 = vst [vmem:[%s187] ss:$9 sm:$0xff] %v113
    %218 = vst [vmem:[%s189] ss:$9 sm:$0xff] %v114
    %219 = vst [vmem:[%s191] ss:$9 sm:$0xff] %v115
    %v220 = vld [vmem:[#allocation1] sm:$0xff]
    %221 = vst [vmem:[#allocation1] ss:$9 sm:$0xff] %v116
    %222 = vst [vmem:[%s179] ss:$9 sm:$0xff] %v117
    %223 = vst [vmem:[%s181] ss:$9 sm:$0xff] %v118
    %224 = vst [vmem:[%s183] ss:$9 sm:$0xff] %v66
    %225 = vst [vmem:[%s185] ss:$9 sm:$0xff] %v119
    %226 = vst [vmem:[%s187] ss:$9 sm:$0xff] %v120
    %227 = vst [vmem:[%s189] ss:$9 sm:$0xff] %v121
    %228 = vst [vmem:[%s191] ss:$9 sm:$0xff] %v122
    %v229 = vld [vmem:[#allocation1] sm:$0xff]
    %230 = vst [vmem:[#allocation1] ss:$9 sm:$0xff] %v123
    %231 = vst [vmem:[%s179] ss:$9 sm:$0xff] %v124
    %232 = vst [vmem:[%s181] ss:$9 sm:$0xff] %v67
    %233 = vst [vmem:[%s183] ss:$9 sm:$0xff] %v125
    %234 = vst [vmem:[%s185] ss:$9 sm:$0xff] %v126
    %235 = vst [vmem:[%s187] ss:$9 sm:$0xff] %v127
    %236 = vst [vmem:[%s189] ss:$9 sm:$0xff] %v128
    %237 = vst [vmem:[%s191] ss:$9 sm:$0xff] %v129
    %v238 = vld [vmem:[#allocation1] sm:$0xff]
    %239 = vst [vmem:[#allocation1] ss:$9 sm:$0xff] %v130
    %240 = vst [vmem:[%s179] ss:$9 sm:$0xff] %v68
    %241 = vst [vmem:[%s181] ss:$9 sm:$0xff] %v131
    %242 = vst [vmem:[%s183] ss:$9 sm:$0xff] %v132
    %243 = vst [vmem:[%s185] ss:$9 sm:$0xff] %v133
    %244 = vst [vmem:[%s187] ss:$9 sm:$0xff] %v134
    %245 = vst [vmem:[%s189] ss:$9 sm:$0xff] %v135
    %246 = vst [vmem:[%s191] ss:$9 sm:$0xff] %v136
    %v247 = vld [vmem:[#allocation1] sm:$0xff]
    %248 = vst [vmem:[#allocation1] ss:$9 sm:$0xff] %v69
    %249 = vst [vmem:[%s179] ss:$9 sm:$0xff] %v137
    %250 = vst [vmem:[%s181] ss:$9 sm:$0xff] %v138
    %251 = vst [vmem:[%s183] ss:$9 sm:$0xff] %v139
    %252 = vst [vmem:[%s185] ss:$9 sm:$0xff] %v140
    %253 = vst [vmem:[%s187] ss:$9 sm:$0xff] %v141
    %254 = vst [vmem:[%s189] ss:$9 sm:$0xff] %v142
    %255 = vst [vmem:[%s191] ss:$9 sm:$0xff] %v70
    %v256 = vld [vmem:[#allocation1] sm:$0xff]
    %257 = vst [vmem:[#allocation1] ss:$9 sm:$0xff] %v143
    %258 = vst [vmem:[%s179] ss:$9 sm:$0xff] %v144
    %259 = vst [vmem:[%s181] ss:$9 sm:$0xff] %v145
    %260 = vst [vmem:[%s183] ss:$9 sm:$0xff] %v146
    %261 = vst [vmem:[%s185] ss:$9 sm:$0xff] %v147
    %262 = vst [vmem:[%s187] ss:$9 sm:$0xff] %v148
    %263 = vst [vmem:[%s189] ss:$9 sm:$0xff] %v71
    %264 = vst [vmem:[%s191] ss:$9 sm:$0xff] %v149
    %v265 = vld [vmem:[#allocation1] sm:$0xff]
    %266 = vst [vmem:[#allocation1] ss:$9 sm:$0xff] %v150
    %267 = vst [vmem:[%s179] ss:$9 sm:$0xff] %v151
    %268 = vst [vmem:[%s181] ss:$9 sm:$0xff] %v152
    %269 = vst [vmem:[%s183] ss:$9 sm:$0xff] %v153
    %270 = vst [vmem:[%s185] ss:$9 sm:$0xff] %v154
    %271 = vst [vmem:[%s187] ss:$9 sm:$0xff] %v72
    %272 = vst [vmem:[%s189] ss:$9 sm:$0xff] %v155
    %273 = vst [vmem:[%s191] ss:$9 sm:$0xff] %v156
    %v274 = vld [vmem:[#allocation1] sm:$0xff]
    %275 = vst [vmem:[#allocation1] ss:$9 sm:$0xff] %v157
    %276 = vst [vmem:[%s179] ss:$9 sm:$0xff] %v158
    %277 = vst [vmem:[%s181] ss:$9 sm:$0xff] %v159
    %278 = vst [vmem:[%s183] ss:$9 sm:$0xff] %v160
    %279 = vst [vmem:[%s185] ss:$9 sm:$0xff] %v73
    %280 = vst [vmem:[%s187] ss:$9 sm:$0xff] %v161
    %281 = vst [vmem:[%s189] ss:$9 sm:$0xff] %v162
    %282 = vst [vmem:[%s191] ss:$9 sm:$0xff] %v163
    %v283 = vld [vmem:[#allocation1] sm:$0xff]
    %284 = vst [vmem:[#allocation1] ss:$9 sm:$0xff] %v164
    %285 = vst [vmem:[%s179] ss:$9 sm:$0xff] %v165
    %286 = vst [vmem:[%s181] ss:$9 sm:$0xff] %v166
    %287 = vst [vmem:[%s183] ss:$9 sm:$0xff] %v74
    %288 = vst [vmem:[%s185] ss:$9 sm:$0xff] %v167
    %289 = vst [vmem:[%s187] ss:$9 sm:$0xff] %v168
    %290 = vst [vmem:[%s189] ss:$9 sm:$0xff] %v169
    %291 = vst [vmem:[%s191] ss:$9 sm:$0xff] %v170
    %v292 = vld [vmem:[#allocation1] sm:$0xff]
    %293 = vst [vmem:[#allocation1] ss:$9 sm:$0xff] %v171
    %294 = vst [vmem:[%s179] ss:$9 sm:$0xff] %v172
    %v295 = vld [vmem:[#allocation1] sm:$0xff]
    %vm296 = vcmask 31744
    %v297 = vsel %vm296, %v193, 0
    %v299 = vsel %vm296, %v202, 0
    %v301 = vsel %vm296, %v211, 0
    %v303 = vsel %vm296, %v220, 0
    %v305 = vsel %vm296, %v229, 0
    %v307 = vsel %vm296, %v238, 0
    %v309 = vsel %vm296, %v247, 0
    %v311 = vsel %vm296, %v256, 0
    %v313 = vsel %vm296, %v265, 0
    %v315 = vsel %vm296, %v274, 0
    %v317 = vsel %vm296, %v283, 0
    %v319 = vsel %vm296, %v292, 0
    %v321 = vsel %vm296, %v295, 0
    %vm323 = vcmask 1043456
    %v325 = vsel %vm323, %v173, 0
    %327 = vmatpush.msra.mxu0 0.0
    %328 = vmatpush.msra.mxu0 0.0
    %329 = vmatpush.msra.mxu0 0.0
    %330 = vmatpush.msra.mxu0 0.0
    %331 = vmatpush.msra.mxu0 0.0
    %332 = vmatpush.msra.mxu0 0.0
    %333 = vmatpush.msra.mxu0 0.0
    %334 = vmatpush.msra.mxu0 0.0
    %335 = vmatpush.msra.mxu0 0.0
    %336 = vmatpush.msra.mxu0 0.0
    %337 = vmatpush.msra.mxu0 0.0
    %338 = vmatpush.msra.mxu0 0.0
    %339 = vmatpush.msra.mxu0 0.0
    %340 = vmatpush.msra.mxu0 0.0
    %341 = vmatpush.msra.mxu0 0.0
    %342 = vmatpush.msra.mxu0 %v325
    %343 = vmatmul.f32.gmra.mxu0 %v297
    %v344 = vpop.f32.mrf.mxu0
    %v345 = vadd.f32 %v176, %v344
    %346 = vmatmul.f32.gmra.mxu0 %v299
    %v347 = vpop.f32.mrf.mxu0
    %v348 = vadd.f32 %v176, %v347
    %349 = vmatmul.f32.gmra.mxu0 %v301
    %v350 = vpop.f32.mrf.mxu0
    %v351 = vadd.f32 %v176, %v350
    %352 = vmatmul.f32.gmra.mxu0 %v303
    %v353 = vpop.f32.mrf.mxu0
    %v354 = vadd.f32 %v176, %v353
    %355 = vmatmul.f32.gmra.mxu0 %v305
    %v356 = vpop.f32.mrf.mxu0
    %v357 = vadd.f32 %v176, %v356
    %358 = vmatmul.f32.gmra.mxu0 %v307
    %v359 = vpop.f32.mrf.mxu0
    %v360 = vadd.f32 %v176, %v359
    %361 = vmatmul.f32.gmra.mxu0 %v309
    %v362 = vpop.f32.mrf.mxu0
    %v363 = vadd.f32 %v176, %v362
    %364 = vmatmul.f32.gmra.mxu0 %v311
    %v365 = vpop.f32.mrf.mxu0
    %v366 = vadd.f32 %v176, %v365
    %367 = vmatmul.f32.gmra.mxu0 %v313
    %v368 = vpop.f32.mrf.mxu0
    %v369 = vadd.f32 %v176, %v368
    %370 = vmatmul.f32.gmra.mxu0 %v315
    %v371 = vpop.f32.mrf.mxu0
    %v372 = vadd.f32 %v176, %v371
    %373 = vmatmul.f32.gmra.mxu0 %v317
    %v374 = vpop.f32.mrf.mxu0
    %v375 = vadd.f32 %v176, %v374
    %376 = vmatmul.f32.gmra.mxu0 %v319
    %v377 = vpop.f32.mrf.mxu0
    %v378 = vadd.f32 %v176, %v377
    %379 = vmatmul.f32.gmra.mxu0 %v321
    %v380 = vpop.f32.mrf.mxu0
    %v381 = vadd.f32 %v176, %v380
    %382 = vdwg.mxu0
    %v383 = vmax.f32 %v345, 0.0
    %v384 = vmax.f32 %v348, 0.0
    %v385 = vmax.f32 %v351, 0.0
    %v386 = vmax.f32 %v354, 0.0
    %v387 = vmax.f32 %v357, 0.0
    %v388 = vmax.f32 %v360, 0.0
    %v389 = vmax.f32 %v363, 0.0
    %v390 = vmax.f32 %v366, 0.0
    %v391 = vmax.f32 %v369, 0.0
    %v392 = vmax.f32 %v372, 0.0
    %v393 = vmax.f32 %v375, 0.0
    %v394 = vmax.f32 %v378, 0.0
    %v395 = vmax.f32 %v381, 0.0
    %v409 = vrot.slane %v383, 1
    %v410 = vrot.slane %v383, 2
    %v411 = vrot.slane %v383, 3
    %v412 = vrot.slane %v383, 4
    %v413 = vrot.slane %v383, 5
    %v414 = vrot.slane %v383, 6
    %v415 = vrot.slane %v383, 7
    %v416 = vrot.slane %v384, 1
    %v417 = vrot.slane %v384, 2
    %v418 = vrot.slane %v384, 3
    %v419 = vrot.slane %v384, 4
    %v420 = vrot.slane %v384, 5
    %v421 = vrot.slane %v384, 6
    %v422 = vrot.slane %v384, 7
    %v423 = vrot.slane %v385, 1
    %v424 = vrot.slane %v385, 2
    %v425 = vrot.slane %v385, 3
    %v426 = vrot.slane %v385, 4
    %v427 = vrot.slane %v385, 5
    %v428 = vrot.slane %v385, 6
    %v429 = vrot.slane %v385, 7
    %v430 = vrot.slane %v386, 1
    %v431 = vrot.slane %v386, 2
    %v432 = vrot.slane %v386, 3
    %v433 = vrot.slane %v386, 4
    %v434 = vrot.slane %v386, 5
    %v435 = vrot.slane %v386, 6
    %v436 = vrot.slane %v386, 7
    %v437 = vrot.slane %v387, 1
    %v438 = vrot.slane %v387, 2
    %v439 = vrot.slane %v387, 3
    %v440 = vrot.slane %v387, 4
    %v441 = vrot.slane %v387, 5
    %v442 = vrot.slane %v387, 6
    %v443 = vrot.slane %v387, 7
    %v444 = vrot.slane %v388, 1
    %v445 = vrot.slane %v388, 2
    %v446 = vrot.slane %v388, 3
    %v447 = vrot.slane %v388, 4
    %v448 = vrot.slane %v388, 5
    %v449 = vrot.slane %v388, 6
    %v450 = vrot.slane %v388, 7
    %v451 = vrot.slane %v389, 1
    %v452 = vrot.slane %v389, 2
    %v453 = vrot.slane %v389, 3
    %v454 = vrot.slane %v389, 4
    %v455 = vrot.slane %v389, 5
    %v456 = vrot.slane %v389, 6
    %v457 = vrot.slane %v389, 7
    %v458 = vrot.slane %v390, 1
    %v459 = vrot.slane %v390, 2
    %v460 = vrot.slane %v390, 3
    %v461 = vrot.slane %v390, 4
    %v462 = vrot.slane %v390, 5
    %v463 = vrot.slane %v390, 6
    %v464 = vrot.slane %v390, 7
    %v465 = vrot.slane %v391, 1
    %v466 = vrot.slane %v391, 2
    %v467 = vrot.slane %v391, 3
    %v468 = vrot.slane %v391, 4
    %v469 = vrot.slane %v391, 5
    %v470 = vrot.slane %v391, 6
    %v471 = vrot.slane %v391, 7
    %v472 = vrot.slane %v392, 1
    %v473 = vrot.slane %v392, 2
    %v474 = vrot.slane %v392, 3
    %v475 = vrot.slane %v392, 4
    %v476 = vrot.slane %v392, 5
    %v477 = vrot.slane %v392, 6
    %v478 = vrot.slane %v392, 7
    %v479 = vrot.slane %v393, 1
    %v480 = vrot.slane %v393, 2
    %v481 = vrot.slane %v393, 3
    %v482 = vrot.slane %v393, 4
    %v483 = vrot.slane %v393, 5
    %v484 = vrot.slane %v393, 6
    %v485 = vrot.slane %v393, 7
    %v486 = vrot.slane %v394, 1
    %v487 = vrot.slane %v394, 2
    %v488 = vrot.slane %v394, 3
    %v489 = vrot.slane %v394, 4
    %v490 = vrot.slane %v394, 5
    %v491 = vrot.slane %v394, 6
    %v492 = vrot.slane %v394, 7
    %v493 = vrot.slane %v395, 1
    %v494 = vld [vmem:[%s3] sm:$0xff]
    %s495 = scalar_lea.vmem %s3, 8
    %v496 = vld [vmem:[%s495] sm:$0xff]
    %497 = vst [vmem:[#allocation1] ss:$9 sm:$0xff] %v409
    %s498 = scalar_lea.vmem [#allocation1], 1
    %499 = vst [vmem:[%s498] ss:$9 sm:$0xff] %v410
    %s500 = scalar_lea.vmem [#allocation1], 2
    %501 = vst [vmem:[%s500] ss:$9 sm:$0xff] %v411
    %s502 = scalar_lea.vmem [#allocation1], 3
    %503 = vst [vmem:[%s502] ss:$9 sm:$0xff] %v412
    %s504 = scalar_lea.vmem [#allocation1], 4
    %505 = vst [vmem:[%s504] ss:$9 sm:$0xff] %v413
    %s506 = scalar_lea.vmem [#allocation1], 5
    %507 = vst [vmem:[%s506] ss:$9 sm:$0xff] %v384
    %s508 = scalar_lea.vmem [#allocation1], 6
    %509 = vst [vmem:[%s508] ss:$9 sm:$0xff] %v416
    %s510 = scalar_lea.vmem [#allocation1], 7
    %511 = vst [vmem:[%s510] ss:$9 sm:$0xff] %v417
    %v512 = vld [vmem:[#allocation1] sm:$0xff]
    %513 = vst [vmem:[#allocation1] ss:$9 sm:$0xff] %v418
    %514 = vst [vmem:[%s498] ss:$9 sm:$0xff] %v419
    %515 = vst [vmem:[%s500] ss:$9 sm:$0xff] %v422
    %516 = vst [vmem:[%s502] ss:$9 sm:$0xff] %v385
    %517 = vst [vmem:[%s504] ss:$9 sm:$0xff] %v423
    %518 = vst [vmem:[%s506] ss:$9 sm:$0xff] %v424
    %519 = vst [vmem:[%s508] ss:$9 sm:$0xff] %v425
    %520 = vst [vmem:[%s510] ss:$9 sm:$0xff] %v428
    %v521 = vld [vmem:[#allocation1] sm:$0xff]
    %522 = vst [vmem:[#allocation1] ss:$9 sm:$0xff] %v429
    %523 = vst [vmem:[%s498] ss:$9 sm:$0xff] %v386
    %524 = vst [vmem:[%s500] ss:$9 sm:$0xff] %v430
    %525 = vst [vmem:[%s502] ss:$9 sm:$0xff] %v431
    %526 = vst [vmem:[%s504] ss:$9 sm:$0xff] %v434
    %527 = vst [vmem:[%s506] ss:$9 sm:$0xff] %v435
    %528 = vst [vmem:[%s508] ss:$9 sm:$0xff] %v436
    %529 = vst [vmem:[%s510] ss:$9 sm:$0xff] %v387
    %v530 = vld [vmem:[#allocation1] sm:$0xff]
    %531 = vst [vmem:[#allocation1] ss:$9 sm:$0xff] %v437
    %532 = vst [vmem:[%s498] ss:$9 sm:$0xff] %v452
    %533 = vst [vmem:[%s500] ss:$9 sm:$0xff] %v453
    %534 = vst [vmem:[%s502] ss:$9 sm:$0xff] %v454
    %535 = vst [vmem:[%s504] ss:$9 sm:$0xff] %v455
    %536 = vst [vmem:[%s506] ss:$9 sm:$0xff] %v456
    %537 = vst [vmem:[%s508] ss:$9 sm:$0xff] %v458
    %538 = vst [vmem:[%s510] ss:$9 sm:$0xff] %v459
    %v539 = vld [vmem:[#allocation1] sm:$0xff]
    %540 = vst [vmem:[#allocation1] ss:$9 sm:$0xff] %v460
    %541 = vst [vmem:[%s498] ss:$9 sm:$0xff] %v461
    %542 = vst [vmem:[%s500] ss:$9 sm:$0xff] %v462
    %543 = vst [vmem:[%s502] ss:$9 sm:$0xff] %v391
    %544 = vst [vmem:[%s504] ss:$9 sm:$0xff] %v465
    %545 = vst [vmem:[%s506] ss:$9 sm:$0xff] %v466
    %546 = vst [vmem:[%s508] ss:$9 sm:$0xff] %v467
    %547 = vst [vmem:[%s510] ss:$9 sm:$0xff] %v468
    %v548 = vld [vmem:[#allocation1] sm:$0xff]
    %549 = vst [vmem:[#allocation1] ss:$9 sm:$0xff] %v471
    %550 = vst [vmem:[%s498] ss:$9 sm:$0xff] %v392
    %551 = vst [vmem:[%s500] ss:$9 sm:$0xff] %v472
    %552 = vst [vmem:[%s502] ss:$9 sm:$0xff] %v473
    %553 = vst [vmem:[%s504] ss:$9 sm:$0xff] %v474
    %554 = vst [vmem:[%s506] ss:$9 sm:$0xff] %v477
    %555 = vst [vmem:[%s508] ss:$9 sm:$0xff] %v478
    %556 = vst [vmem:[%s510] ss:$9 sm:$0xff] %v393
    %v557 = vld [vmem:[#allocation1] sm:$0xff]
    %558 = vst [vmem:[#allocation1] ss:$9 sm:$0xff] %v479
    %559 = vst [vmem:[%s498] ss:$9 sm:$0xff] %v480
    %v560 = vld [vmem:[#allocation1] sm:$0xff]
    %vm561 = vcmask 64512
    %v562 = vsel %vm561, %v512, 0
    %v564 = vsel %vm561, %v521, 0
    %v566 = vsel %vm561, %v530, 0
    %v568 = vsel %vm561, %v539, 0
    %v570 = vsel %vm561, %v548, 0
    %v572 = vsel %vm561, %v557, 0
    %v574 = vsel %vm561, %v560, 0
    %576 = vmatpush.msra.mxu0 0.0
    %577 = vmatpush.msra.mxu0 0.0
    %578 = vmatpush.msra.mxu0 0.0
    %579 = vmatpush.msra.mxu0 0.0
    %580 = vmatpush.msra.mxu0 0.0
    %581 = vmatpush.msra.mxu0 0.0
    %582 = vmatpush.msra.mxu0 0.0
    %583 = vmatpush.msra.mxu0 0.0
    %584 = vmatpush.msra.mxu0 0.0
    %585 = vmatpush.msra.mxu0 0.0
    %586 = vmatpush.msra.mxu0 0.0
    %587 = vmatpush.msra.mxu0 0.0
    %588 = vmatpush.msra.mxu0 0.0
    %589 = vmatpush.msra.mxu0 0.0
    %590 = vmatpush.msra.mxu0 0.0
    %591 = vmatpush.msra.mxu0 %v496
    %592 = vmatmul.f32.gmra.mxu0 %v562
    %v593 = vpop.f32.mrf.mxu0
    %v594 = vadd.f32 0.0, %v593
    %595 = vmatmul.f32.gmra.mxu0 %v564
    %v596 = vpop.f32.mrf.mxu0
    %v597 = vadd.f32 0.0, %v596
    %598 = vmatmul.f32.gmra.mxu0 %v566
    %v599 = vpop.f32.mrf.mxu0
    %v600 = vadd.f32 0.0, %v599
    %601 = vmatmul.f32.gmra.mxu0 %v568
    %v602 = vpop.f32.mrf.mxu0
    %v603 = vadd.f32 0.0, %v602
    %604 = vmatmul.f32.gmra.mxu0 %v570
    %v605 = vpop.f32.mrf.mxu0
    %v606 = vadd.f32 0.0, %v605
    %607 = vmatmul.f32.gmra.mxu0 %v572
    %v608 = vpop.f32.mrf.mxu0
    %v609 = vadd.f32 0.0, %v608
    %610 = vmatmul.f32.gmra.mxu0 %v574
    %v611 = vpop.f32.mrf.mxu0
    %v612 = vadd.f32 0.0, %v611
    %613 = vdwg.mxu0
    %614 = vst [vmem:[#allocation1] ss:$9 sm:$0xff] %v383
    %s615 = scalar_lea.vmem [#allocation1], 1
    %616 = vst [vmem:[%s615] ss:$9 sm:$0xff] %v409
    %s617 = scalar_lea.vmem [#allocation1], 2
    %618 = vst [vmem:[%s617] ss:$9 sm:$0xff] %v410
    %s619 = scalar_lea.vmem [#allocation1], 3
    %620 = vst [vmem:[%s619] ss:$9 sm:$0xff] %v411
    %s621 = scalar_lea.vmem [#allocation1], 4
    %622 = vst [vmem:[%s621] ss:$9 sm:$0xff] %v412
    %s623 = scalar_lea.vmem [#allocation1], 5
    %624 = vst [vmem:[%s623] ss:$9 sm:$0xff] %v415
    %s625 = scalar_lea.vmem [#allocation1], 6
    %626 = vst [vmem:[%s625] ss:$9 sm:$0xff] %v384
    %s627 = scalar_lea.vmem [#allocation1], 7
    %628 = vst [vmem:[%s627] ss:$9 sm:$0xff] %v416
    %v629 = vld [vmem:[#allocation1] sm:$0xff]
    %630 = vst [vmem:[#allocation1] ss:$9 sm:$0xff] %v417
    %631 = vst [vmem:[%s615] ss:$9 sm:$0xff] %v418
    %632 = vst [vmem:[%s617] ss:$9 sm:$0xff] %v421
    %633 = vst [vmem:[%s619] ss:$9 sm:$0xff] %v422
    %634 = vst [vmem:[%s621] ss:$9 sm:$0xff] %v385
    %635 = vst [vmem:[%s623] ss:$9 sm:$0xff] %v423
    %636 = vst [vmem:[%s625] ss:$9 sm:$0xff] %v424
    %637 = vst [vmem:[%s627] ss:$9 sm:$0xff] %v427
    %v638 = vld [vmem:[#allocation1] sm:$0xff]
    %639 = vst [vmem:[#allocation1] ss:$9 sm:$0xff] %v428
    %640 = vst [vmem:[%s615] ss:$9 sm:$0xff] %v429
    %641 = vst [vmem:[%s617] ss:$9 sm:$0xff] %v386
    %642 = vst [vmem:[%s619] ss:$9 sm:$0xff] %v430
    %643 = vst [vmem:[%s621] ss:$9 sm:$0xff] %v433
    %644 = vst [vmem:[%s623] ss:$9 sm:$0xff] %v434
    %645 = vst [vmem:[%s625] ss:$9 sm:$0xff] %v435
    %646 = vst [vmem:[%s627] ss:$9 sm:$0xff] %v436
    %v647 = vld [vmem:[#allocation1] sm:$0xff]
    %648 = vst [vmem:[#allocation1] ss:$9 sm:$0xff] %v387
    %649 = vst [vmem:[%s615] ss:$9 sm:$0xff] %v451
    %650 = vst [vmem:[%s617] ss:$9 sm:$0xff] %v452
    %651 = vst [vmem:[%s619] ss:$9 sm:$0xff] %v453
    %652 = vst [vmem:[%s621] ss:$9 sm:$0xff] %v454
    %653 = vst [vmem:[%s623] ss:$9 sm:$0xff] %v455
    %654 = vst [vmem:[%s625] ss:$9 sm:$0xff] %v390
    %655 = vst [vmem:[%s627] ss:$9 sm:$0xff] %v458
    %v656 = vld [vmem:[#allocation1] sm:$0xff]
    %657 = vst [vmem:[#allocation1] ss:$9 sm:$0xff] %v459
    %658 = vst [vmem:[%s615] ss:$9 sm:$0xff] %v460
    %659 = vst [vmem:[%s617] ss:$9 sm:$0xff] %v461
    %660 = vst [vmem:[%s619] ss:$9 sm:$0xff] %v464
    %661 = vst [vmem:[%s621] ss:$9 sm:$0xff] %v391
    %662 = vst [vmem:[%s623] ss:$9 sm:$0xff] %v465
    %663 = vst [vmem:[%s625] ss:$9 sm:$0xff] %v466
    %664 = vst [vmem:[%s627] ss:$9 sm:$0xff] %v467
    %v665 = vld [vmem:[#allocation1] sm:$0xff]
    %666 = vst [vmem:[#allocation1] ss:$9 sm:$0xff] %v470
    %667 = vst [vmem:[%s615] ss:$9 sm:$0xff] %v471
    %668 = vst [vmem:[%s617] ss:$9 sm:$0xff] %v392
    %669 = vst [vmem:[%s619] ss:$9 sm:$0xff] %v472
    %670 = vst [vmem:[%s621] ss:$9 sm:$0xff] %v473
    %671 = vst [vmem:[%s623] ss:$9 sm:$0xff] %v476
    %672 = vst [vmem:[%s625] ss:$9 sm:$0xff] %v477
    %673 = vst [vmem:[%s627] ss:$9 sm:$0xff] %v478
    %v674 = vld [vmem:[#allocation1] sm:$0xff]
    %675 = vst [vmem:[#allocation1] ss:$9 sm:$0xff] %v393
    %676 = vst [vmem:[%s615] ss:$9 sm:$0xff] %v479
    %v677 = vld [vmem:[#allocation1] sm:$0xff]
    %v678 = vsel %vm561, %v629, 0
    %v680 = vsel %vm561, %v638, 0
    %v682 = vsel %vm561, %v647, 0
    %v684 = vsel %vm561, %v656, 0
    %v686 = vsel %vm561, %v665, 0
    %v688 = vsel %vm561, %v674, 0
    %v690 = vsel %vm561, %v677, 0
    %692 = vmatpush.msra.mxu0 0.0
    %693 = vmatpush.msra.mxu0 0.0
    %694 = vmatpush.msra.mxu0 0.0
    %695 = vmatpush.msra.mxu0 0.0
    %696 = vmatpush.msra.mxu0 0.0
    %697 = vmatpush.msra.mxu0 0.0
    %698 = vmatpush.msra.mxu0 0.0
    %699 = vmatpush.msra.mxu0 0.0
    %700 = vmatpush.msra.mxu0 0.0
    %701 = vmatpush.msra.mxu0 0.0
    %702 = vmatpush.msra.mxu0 0.0
    %703 = vmatpush.msra.mxu0 0.0
    %704 = vmatpush.msra.mxu0 0.0
    %705 = vmatpush.msra.mxu0 0.0
    %706 = vmatpush.msra.mxu0 0.0
    %707 = vmatpush.msra.mxu0 %v494
    %708 = vmatmul.f32.gmra.mxu0 %v678
    %v709 = vpop.f32.mrf.mxu0
    %v710 = vadd.f32 %v594, %v709
    %711 = vmatmul.f32.gmra.mxu0 %v680
    %v712 = vpop.f32.mrf.mxu0
    %v713 = vadd.f32 %v597, %v712
    %714 = vmatmul.f32.gmra.mxu0 %v682
    %v715 = vpop.f32.mrf.mxu0
    %v716 = vadd.f32 %v600, %v715
    %717 = vmatmul.f32.gmra.mxu0 %v684
    %v718 = vpop.f32.mrf.mxu0
    %v719 = vadd.f32 %v603, %v718
    %720 = vmatmul.f32.gmra.mxu0 %v686
    %v721 = vpop.f32.mrf.mxu0
    %v722 = vadd.f32 %v606, %v721
    %723 = vmatmul.f32.gmra.mxu0 %v688
    %v724 = vpop.f32.mrf.mxu0
    %v725 = vadd.f32 %v609, %v724
    %726 = vmatmul.f32.gmra.mxu0 %v690
    %v727 = vpop.f32.mrf.mxu0
    %v728 = vadd.f32 %v612, %v727
    %729 = vdwg.mxu0
    %s730 = scalar_lea.vmem %s3, 16
    %v731 = vld [vmem:[%s730] sm:$0xff]
    %732 = vst [vmem:[#allocation1] ss:$9 sm:$0xff] %v410
    %s733 = scalar_lea.vmem [#allocation1], 1
    %734 = vst [vmem:[%s733] ss:$9 sm:$0xff] %v411
    %s735 = scalar_lea.vmem [#allocation1], 2
    %736 = vst [vmem:[%s735] ss:$9 sm:$0xff] %v412
    %s737 = scalar_lea.vmem [#allocation1], 3
    %738 = vst [vmem:[%s737] ss:$9 sm:$0xff] %v413
    %s739 = scalar_lea.vmem [#allocation1], 4
    %740 = vst [vmem:[%s739] ss:$9 sm:$0xff] %v414
    %s741 = scalar_lea.vmem [#allocation1], 5
    %742 = vst [vmem:[%s741] ss:$9 sm:$0xff] %v416
    %s743 = scalar_lea.vmem [#allocation1], 6
    %744 = vst [vmem:[%s743] ss:$9 sm:$0xff] %v417
    %s745 = scalar_lea.vmem [#allocation1], 7
    %746 = vst [vmem:[%s745] ss:$9 sm:$0xff] %v418
    %v747 = vld [vmem:[#allocation1] sm:$0xff]
    %748 = vst [vmem:[#allocation1] ss:$9 sm:$0xff] %v419
    %749 = vst [vmem:[%s733] ss:$9 sm:$0xff] %v420
    %750 = vst [vmem:[%s735] ss:$9 sm:$0xff] %v385
    %751 = vst [vmem:[%s737] ss:$9 sm:$0xff] %v423
    %752 = vst [vmem:[%s739] ss:$9 sm:$0xff] %v424
    %753 = vst [vmem:[%s741] ss:$9 sm:$0xff] %v425
    %754 = vst [vmem:[%s743] ss:$9 sm:$0xff] %v426
    %755 = vst [vmem:[%s745] ss:$9 sm:$0xff] %v429
    %v756 = vld [vmem:[#allocation1] sm:$0xff]
    %757 = vst [vmem:[#allocation1] ss:$9 sm:$0xff] %v386
    %758 = vst [vmem:[%s733] ss:$9 sm:$0xff] %v430
    %759 = vst [vmem:[%s735] ss:$9 sm:$0xff] %v431
    %760 = vst [vmem:[%s737] ss:$9 sm:$0xff] %v432
    %761 = vst [vmem:[%s739] ss:$9 sm:$0xff] %v435
    %762 = vst [vmem:[%s741] ss:$9 sm:$0xff] %v436
    %763 = vst [vmem:[%s743] ss:$9 sm:$0xff] %v387
    %764 = vst [vmem:[%s745] ss:$9 sm:$0xff] %v437
    %v765 = vld [vmem:[#allocation1] sm:$0xff]
    %766 = vst [vmem:[#allocation1] ss:$9 sm:$0xff] %v438
    %767 = vst [vmem:[%s733] ss:$9 sm:$0xff] %v453
    %768 = vst [vmem:[%s735] ss:$9 sm:$0xff] %v454
    %769 = vst [vmem:[%s737] ss:$9 sm:$0xff] %v455
    %770 = vst [vmem:[%s739] ss:$9 sm:$0xff] %v456
    %771 = vst [vmem:[%s741] ss:$9 sm:$0xff] %v457
    %772 = vst [vmem:[%s743] ss:$9 sm:$0xff] %v459
    %773 = vst [vmem:[%s745] ss:$9 sm:$0xff] %v460
    %v774 = vld [vmem:[#allocation1] sm:$0xff]
    %775 = vst [vmem:[#allocation1] ss:$9 sm:$0xff] %v461
    %776 = vst [vmem:[%s733] ss:$9 sm:$0xff] %v462
    %777 = vst [vmem:[%s735] ss:$9 sm:$0xff] %v463
    %778 = vst [vmem:[%s737] ss:$9 sm:$0xff] %v465
    %779 = vst [vmem:[%s739] ss:$9 sm:$0xff] %v466
    %780 = vst [vmem:[%s741] ss:$9 sm:$0xff] %v467
    %781 = vst [vmem:[%s743] ss:$9 sm:$0xff] %v468
    %782 = vst [vmem:[%s745] ss:$9 sm:$0xff] %v469
    %v783 = vld [vmem:[#allocation1] sm:$0xff]
    %784 = vst [vmem:[#allocation1] ss:$9 sm:$0xff] %v392
    %785 = vst [vmem:[%s733] ss:$9 sm:$0xff] %v472
    %786 = vst [vmem:[%s735] ss:$9 sm:$0xff] %v473
    %787 = vst [vmem:[%s737] ss:$9 sm:$0xff] %v474
    %788 = vst [vmem:[%s739] ss:$9 sm:$0xff] %v475
    %789 = vst [vmem:[%s741] ss:$9 sm:$0xff] %v478
    %790 = vst [vmem:[%s743] ss:$9 sm:$0xff] %v393
    %791 = vst [vmem:[%s745] ss:$9 sm:$0xff] %v479
    %v792 = vld [vmem:[#allocation1] sm:$0xff]
    %793 = vst [vmem:[#allocation1] ss:$9 sm:$0xff] %v480
    %794 = vst [vmem:[%s733] ss:$9 sm:$0xff] %v481
    %v795 = vld [vmem:[#allocation1] sm:$0xff]
    %v796 = vsel %vm561, %v747, 0
    %v798 = vsel %vm561, %v756, 0
    %v800 = vsel %vm561, %v765, 0
    %v802 = vsel %vm561, %v774, 0
    %v804 = vsel %vm561, %v783, 0
    %v806 = vsel %vm561, %v792, 0
    %v808 = vsel %vm561, %v795, 0
    %810 = vmatpush.msra.mxu0 0.0
    %811 = vmatpush.msra.mxu0 0.0
    %812 = vmatpush.msra.mxu0 0.0
    %813 = vmatpush.msra.mxu0 0.0
    %814 = vmatpush.msra.mxu0 0.0
    %815 = vmatpush.msra.mxu0 0.0
    %816 = vmatpush.msra.mxu0 0.0
    %817 = vmatpush.msra.mxu0 0.0
    %818 = vmatpush.msra.mxu0 0.0
    %819 = vmatpush.msra.mxu0 0.0
    %820 = vmatpush.msra.mxu0 0.0
    %821 = vmatpush.msra.mxu0 0.0
    %822 = vmatpush.msra.mxu0 0.0
    %823 = vmatpush.msra.mxu0 0.0
    %824 = vmatpush.msra.mxu0 0.0
    %825 = vmatpush.msra.mxu0 %v731
    %826 = vmatmul.f32.gmra.mxu0 %v796
    %v827 = vpop.f32.mrf.mxu0
    %v828 = vadd.f32 0.0, %v827
    %829 = vmatmul.f32.gmra.mxu0 %v798
    %v830 = vpop.f32.mrf.mxu0
    %v831 = vadd.f32 0.0, %v830
    %832 = vmatmul.f32.gmra.mxu0 %v800
    %v833 = vpop.f32.mrf.mxu0
    %v834 = vadd.f32 0.0, %v833
    %835 = vmatmul.f32.gmra.mxu0 %v802
    %v836 = vpop.f32.mrf.mxu0
    %v837 = vadd.f32 0.0, %v836
    %838 = vmatmul.f32.gmra.mxu0 %v804
    %v839 = vpop.f32.mrf.mxu0
    %v840 = vadd.f32 0.0, %v839
    %841 = vmatmul.f32.gmra.mxu0 %v806
    %v842 = vpop.f32.mrf.mxu0
    %v843 = vadd.f32 0.0, %v842
    %844 = vmatmul.f32.gmra.mxu0 %v808
    %v845 = vpop.f32.mrf.mxu0
    %v846 = vadd.f32 0.0, %v845
    %847 = vdwg.mxu0
    %v848 = vadd.f32 %v710, %v828
    %v849 = vadd.f32 %v713, %v831
    %v850 = vadd.f32 %v716, %v834
    %v851 = vadd.f32 %v719, %v837
    %v852 = vadd.f32 %v722, %v840
    %v853 = vadd.f32 %v725, %v843
    %v854 = vadd.f32 %v728, %v846
    %s855 = scalar_lea.vmem %s3, 24
    %v856 = vld [vmem:[%s855] sm:$0xff]
    %857 = vst [vmem:[#allocation1] ss:$9 sm:$0xff] %v415
    %s858 = scalar_lea.vmem [#allocation1], 1
    %859 = vst [vmem:[%s858] ss:$9 sm:$0xff] %v384
    %s860 = scalar_lea.vmem [#allocation1], 2
    %861 = vst [vmem:[%s860] ss:$9 sm:$0xff] %v416
    %s862 = scalar_lea.vmem [#allocation1], 3
    %863 = vst [vmem:[%s862] ss:$9 sm:$0xff] %v417
    %s864 = scalar_lea.vmem [#allocation1], 4
    %865 = vst [vmem:[%s864] ss:$9 sm:$0xff] %v418
    %s866 = scalar_lea.vmem [#allocation1], 5
    %867 = vst [vmem:[%s866] ss:$9 sm:$0xff] %v421
    %s868 = scalar_lea.vmem [#allocation1], 6
    %869 = vst [vmem:[%s868] ss:$9 sm:$0xff] %v422
    %s870 = scalar_lea.vmem [#allocation1], 7
    %871 = vst [vmem:[%s870] ss:$9 sm:$0xff] %v385
    %v872 = vld [vmem:[#allocation1] sm:$0xff]
    %873 = vst [vmem:[#allocation1] ss:$9 sm:$0xff] %v423
    %874 = vst [vmem:[%s858] ss:$9 sm:$0xff] %v424
    %875 = vst [vmem:[%s860] ss:$9 sm:$0xff] %v427
    %876 = vst [vmem:[%s862] ss:$9 sm:$0xff] %v428
    %877 = vst [vmem:[%s864] ss:$9 sm:$0xff] %v429
    %878 = vst [vmem:[%s866] ss:$9 sm:$0xff] %v386
    %879 = vst [vmem:[%s868] ss:$9 sm:$0xff] %v430
    %880 = vst [vmem:[%s870] ss:$9 sm:$0xff] %v433
    %v881 = vld [vmem:[#allocation1] sm:$0xff]
    %882 = vst [vmem:[#allocation1] ss:$9 sm:$0xff] %v434
    %883 = vst [vmem:[%s858] ss:$9 sm:$0xff] %v435
    %884 = vst [vmem:[%s860] ss:$9 sm:$0xff] %v436
    %885 = vst [vmem:[%s862] ss:$9 sm:$0xff] %v387
    %886 = vst [vmem:[%s864] ss:$9 sm:$0xff] %v439
    %887 = vst [vmem:[%s866] ss:$9 sm:$0xff] %v440
    %888 = vst [vmem:[%s868] ss:$9 sm:$0xff] %v441
    %889 = vst [vmem:[%s870] ss:$9 sm:$0xff] %v442
    %v890 = vld [vmem:[#allocation1] sm:$0xff]
    %891 = vst [vmem:[#allocation1] ss:$9 sm:$0xff] %v443
    %892 = vst [vmem:[%s858] ss:$9 sm:$0xff] %v390
    %893 = vst [vmem:[%s860] ss:$9 sm:$0xff] %v458
    %894 = vst [vmem:[%s862] ss:$9 sm:$0xff] %v459
    %895 = vst [vmem:[%s864] ss:$9 sm:$0xff] %v460
    %896 = vst [vmem:[%s866] ss:$9 sm:$0xff] %v461
    %897 = vst [vmem:[%s868] ss:$9 sm:$0xff] %v464
    %898 = vst [vmem:[%s870] ss:$9 sm:$0xff] %v391
    %v899 = vld [vmem:[#allocation1] sm:$0xff]
    %900 = vst [vmem:[#allocation1] ss:$9 sm:$0xff] %v465
    %901 = vst [vmem:[%s858] ss:$9 sm:$0xff] %v466
    %902 = vst [vmem:[%s860] ss:$9 sm:$0xff] %v467
    %903 = vst [vmem:[%s862] ss:$9 sm:$0xff] %v470
    %904 = vst [vmem:[%s864] ss:$9 sm:$0xff] %v471
    %905 = vst [vmem:[%s866] ss:$9 sm:$0xff] %v392
    %906 = vst [vmem:[%s868] ss:$9 sm:$0xff] %v472
    %907 = vst [vmem:[%s870] ss:$9 sm:$0xff] %v473
    %v908 = vld [vmem:[#allocation1] sm:$0xff]
    %909 = vst [vmem:[#allocation1] ss:$9 sm:$0xff] %v476
    %910 = vst [vmem:[%s858] ss:$9 sm:$0xff] %v477
    %911 = vst [vmem:[%s860] ss:$9 sm:$0xff] %v478
    %912 = vst [vmem:[%s862] ss:$9 sm:$0xff] %v393
    %913 = vst [vmem:[%s864] ss:$9 sm:$0xff] %v479
    %914 = vst [vmem:[%s866] ss:$9 sm:$0xff] %v482
    %915 = vst [vmem:[%s868] ss:$9 sm:$0xff] %v483
    %916 = vst [vmem:[%s870] ss:$9 sm:$0xff] %v484
    %v917 = vld [vmem:[#allocation1] sm:$0xff]
    %918 = vst [vmem:[#allocation1] ss:$9 sm:$0xff] %v485
    %919 = vst [vmem:[%s858] ss:$9 sm:$0xff] %v394
    %v920 = vld [vmem:[#allocation1] sm:$0xff]
    %v921 = vsel %vm561, %v872, 0
    %v923 = vsel %vm561, %v881, 0
    %v925 = vsel %vm561, %v890, 0
    %v927 = vsel %vm561, %v899, 0
    %v929 = vsel %vm561, %v908, 0
    %v931 = vsel %vm561, %v917, 0
    %v933 = vsel %vm561, %v920, 0
    %935 = vmatpush.msra.mxu0 0.0
    %936 = vmatpush.msra.mxu0 0.0
    %937 = vmatpush.msra.mxu0 0.0
    %938 = vmatpush.msra.mxu0 0.0
    %939 = vmatpush.msra.mxu0 0.0
    %940 = vmatpush.msra.mxu0 0.0
    %941 = vmatpush.msra.mxu0 0.0
    %942 = vmatpush.msra.mxu0 0.0
    %943 = vmatpush.msra.mxu0 0.0
    %944 = vmatpush.msra.mxu0 0.0
    %945 = vmatpush.msra.mxu0 0.0
    %946 = vmatpush.msra.mxu0 0.0
    %947 = vmatpush.msra.mxu0 0.0
    %948 = vmatpush.msra.mxu0 0.0
    %949 = vmatpush.msra.mxu0 0.0
    %950 = vmatpush.msra.mxu0 %v856
    %951 = vmatmul.f32.gmra.mxu0 %v921
    %v952 = vpop.f32.mrf.mxu0
    %v953 = vadd.f32 0.0, %v952
    %954 = vmatmul.f32.gmra.mxu0 %v923
    %v955 = vpop.f32.mrf.mxu0
    %v956 = vadd.f32 0.0, %v955
    %957 = vmatmul.f32.gmra.mxu0 %v925
    %v958 = vpop.f32.mrf.mxu0
    %v959 = vadd.f32 0.0, %v958
    %960 = vmatmul.f32.gmra.mxu0 %v927
    %v961 = vpop.f32.mrf.mxu0
    %v962 = vadd.f32 0.0, %v961
    %963 = vmatmul.f32.gmra.mxu0 %v929
    %v964 = vpop.f32.mrf.mxu0
    %v965 = vadd.f32 0.0, %v964
    %966 = vmatmul.f32.gmra.mxu0 %v931
    %v967 = vpop.f32.mrf.mxu0
    %v968 = vadd.f32 0.0, %v967
    %969 = vmatmul.f32.gmra.mxu0 %v933
    %v970 = vpop.f32.mrf.mxu0
    %v971 = vadd.f32 0.0, %v970
    %972 = vdwg.mxu0
    %v973 = vadd.f32 %v848, %v953
    %v974 = vadd.f32 %v849, %v956
    %v975 = vadd.f32 %v850, %v959
    %v976 = vadd.f32 %v851, %v962
    %v977 = vadd.f32 %v852, %v965
    %v978 = vadd.f32 %v853, %v968
    %v979 = vadd.f32 %v854, %v971
    %s980 = scalar_lea.vmem %s3, 32
    %v981 = vld [vmem:[%s980] sm:$0xff]
    %982 = vst [vmem:[#allocation1] ss:$9 sm:$0xff] %v384
    %s983 = scalar_lea.vmem [#allocation1], 1
    %984 = vst [vmem:[%s983] ss:$9 sm:$0xff] %v416
    %s985 = scalar_lea.vmem [#allocation1], 2
    %986 = vst [vmem:[%s985] ss:$9 sm:$0xff] %v417
    %s987 = scalar_lea.vmem [#allocation1], 3
    %988 = vst [vmem:[%s987] ss:$9 sm:$0xff] %v418
    %s989 = scalar_lea.vmem [#allocation1], 4
    %990 = vst [vmem:[%s989] ss:$9 sm:$0xff] %v419
    %s991 = scalar_lea.vmem [#allocation1], 5
    %992 = vst [vmem:[%s991] ss:$9 sm:$0xff] %v422
    %s993 = scalar_lea.vmem [#allocation1], 6
    %994 = vst [vmem:[%s993] ss:$9 sm:$0xff] %v385
    %s995 = scalar_lea.vmem [#allocation1], 7
    %996 = vst [vmem:[%s995] ss:$9 sm:$0xff] %v423
    %v997 = vld [vmem:[#allocation1] sm:$0xff]
    %998 = vst [vmem:[#allocation1] ss:$9 sm:$0xff] %v424
    %999 = vst [vmem:[%s983] ss:$9 sm:$0xff] %v425
    %1000 = vst [vmem:[%s985] ss:$9 sm:$0xff] %v428
    %1001 = vst [vmem:[%s987] ss:$9 sm:$0xff] %v429
    %1002 = vst [vmem:[%s989] ss:$9 sm:$0xff] %v386
    %1003 = vst [vmem:[%s991] ss:$9 sm:$0xff] %v430
    %1004 = vst [vmem:[%s993] ss:$9 sm:$0xff] %v431
    %1005 = vst [vmem:[%s995] ss:$9 sm:$0xff] %v434
    %v1006 = vld [vmem:[#allocation1] sm:$0xff]
    %1007 = vst [vmem:[#allocation1] ss:$9 sm:$0xff] %v435
    %1008 = vst [vmem:[%s983] ss:$9 sm:$0xff] %v436
    %1009 = vst [vmem:[%s985] ss:$9 sm:$0xff] %v387
    %1010 = vst [vmem:[%s987] ss:$9 sm:$0xff] %v437
    %1011 = vst [vmem:[%s989] ss:$9 sm:$0xff] %v440
    %1012 = vst [vmem:[%s991] ss:$9 sm:$0xff] %v441
    %1013 = vst [vmem:[%s993] ss:$9 sm:$0xff] %v442
    %1014 = vst [vmem:[%s995] ss:$9 sm:$0xff] %v443
    %v1015 = vld [vmem:[#allocation1] sm:$0xff]
    %1016 = vst [vmem:[#allocation1] ss:$9 sm:$0xff] %v388
    %1017 = vst [vmem:[%s983] ss:$9 sm:$0xff] %v458
    %1018 = vst [vmem:[%s985] ss:$9 sm:$0xff] %v459
    %1019 = vst [vmem:[%s987] ss:$9 sm:$0xff] %v460
    %1020 = vst [vmem:[%s989] ss:$9 sm:$0xff] %v461
    %1021 = vst [vmem:[%s991] ss:$9 sm:$0xff] %v462
    %1022 = vst [vmem:[%s993] ss:$9 sm:$0xff] %v391
    %1023 = vst [vmem:[%s995] ss:$9 sm:$0xff] %v465
    %v1024 = vld [vmem:[#allocation1] sm:$0xff]
    %1025 = vst [vmem:[#allocation1] ss:$9 sm:$0xff] %v466
    %1026 = vst [vmem:[%s983] ss:$9 sm:$0xff] %v467
    %1027 = vst [vmem:[%s985] ss:$9 sm:$0xff] %v468
    %1028 = vst [vmem:[%s987] ss:$9 sm:$0xff] %v471
    %1029 = vst [vmem:[%s989] ss:$9 sm:$0xff] %v392
    %1030 = vst [vmem:[%s991] ss:$9 sm:$0xff] %v472
    %1031 = vst [vmem:[%s993] ss:$9 sm:$0xff] %v473
    %1032 = vst [vmem:[%s995] ss:$9 sm:$0xff] %v474
    %v1033 = vld [vmem:[#allocation1] sm:$0xff]
    %1034 = vst [vmem:[#allocation1] ss:$9 sm:$0xff] %v477
    %1035 = vst [vmem:[%s983] ss:$9 sm:$0xff] %v478
    %1036 = vst [vmem:[%s985] ss:$9 sm:$0xff] %v393
    %1037 = vst [vmem:[%s987] ss:$9 sm:$0xff] %v479
    %1038 = vst [vmem:[%s989] ss:$9 sm:$0xff] %v480
    %1039 = vst [vmem:[%s991] ss:$9 sm:$0xff] %v483
    %1040 = vst [vmem:[%s993] ss:$9 sm:$0xff] %v484
    %1041 = vst [vmem:[%s995] ss:$9 sm:$0xff] %v485
    %v1042 = vld [vmem:[#allocation1] sm:$0xff]
    %1043 = vst [vmem:[#allocation1] ss:$9 sm:$0xff] %v394
    %1044 = vst [vmem:[%s983] ss:$9 sm:$0xff] %v486
    %v1045 = vld [vmem:[#allocation1] sm:$0xff]
    %v1046 = vsel %vm561, %v997, 0
    %v1048 = vsel %vm561, %v1006, 0
    %v1050 = vsel %vm561, %v1015, 0
    %v1052 = vsel %vm561, %v1024, 0
    %v1054 = vsel %vm561, %v1033, 0
    %v1056 = vsel %vm561, %v1042, 0
    %v1058 = vsel %vm561, %v1045, 0
    %1060 = vmatpush.msra.mxu0 0.0
    %1061 = vmatpush.msra.mxu0 0.0
    %1062 = vmatpush.msra.mxu0 0.0
    %1063 = vmatpush.msra.mxu0 0.0
    %1064 = vmatpush.msra.mxu0 0.0
    %1065 = vmatpush.msra.mxu0 0.0
    %1066 = vmatpush.msra.mxu0 0.0
    %1067 = vmatpush.msra.mxu0 0.0
    %1068 = vmatpush.msra.mxu0 0.0
    %1069 = vmatpush.msra.mxu0 0.0
    %1070 = vmatpush.msra.mxu0 0.0
    %1071 = vmatpush.msra.mxu0 0.0
    %1072 = vmatpush.msra.mxu0 0.0
    %1073 = vmatpush.msra.mxu0 0.0
    %1074 = vmatpush.msra.mxu0 0.0
    %1075 = vmatpush.msra.mxu0 %v981
    %1076 = vmatmul.f32.gmra.mxu0 %v1046
    %v1077 = vpop.f32.mrf.mxu0
    %v1078 = vadd.f32 0.0, %v1077
    %1079 = vmatmul.f32.gmra.mxu0 %v1048
    %v1080 = vpop.f32.mrf.mxu0
    %v1081 = vadd.f32 0.0, %v1080
    %1082 = vmatmul.f32.gmra.mxu0 %v1050
    %v1083 = vpop.f32.mrf.mxu0
    %v1084 = vadd.f32 0.0, %v1083
    %1085 = vmatmul.f32.gmra.mxu0 %v1052
    %v1086 = vpop.f32.mrf.mxu0
    %v1087 = vadd.f32 0.0, %v1086
    %1088 = vmatmul.f32.gmra.mxu0 %v1054
    %v1089 = vpop.f32.mrf.mxu0
    %v1090 = vadd.f32 0.0, %v1089
    %1091 = vmatmul.f32.gmra.mxu0 %v1056
    %v1092 = vpop.f32.mrf.mxu0
    %v1093 = vadd.f32 0.0, %v1092
    %1094 = vmatmul.f32.gmra.mxu0 %v1058
    %v1095 = vpop.f32.mrf.mxu0
    %v1096 = vadd.f32 0.0, %v1095
    %1097 = vdwg.mxu0
    %v1098 = vadd.f32 %v973, %v1078
    %v1099 = vadd.f32 %v974, %v1081
    %v1100 = vadd.f32 %v975, %v1084
    %v1101 = vadd.f32 %v976, %v1087
    %v1102 = vadd.f32 %v977, %v1090
    %v1103 = vadd.f32 %v978, %v1093
    %v1104 = vadd.f32 %v979, %v1096
    %s1105 = scalar_lea.vmem %s3, 40
    %v1106 = vld [vmem:[%s1105] sm:$0xff]
    %1107 = vst [vmem:[#allocation1] ss:$9 sm:$0xff] %v416
    %s1108 = scalar_lea.vmem [#allocation1], 1
    %1109 = vst [vmem:[%s1108] ss:$9 sm:$0xff] %v417
    %s1110 = scalar_lea.vmem [#allocation1], 2
    %1111 = vst [vmem:[%s1110] ss:$9 sm:$0xff] %v418
    %s1112 = scalar_lea.vmem [#allocation1], 3
    %1113 = vst [vmem:[%s1112] ss:$9 sm:$0xff] %v419
    %s1114 = scalar_lea.vmem [#allocation1], 4
    %1115 = vst [vmem:[%s1114] ss:$9 sm:$0xff] %v420
    %s1116 = scalar_lea.vmem [#allocation1], 5
    %1117 = vst [vmem:[%s1116] ss:$9 sm:$0xff] %v385
    %s1118 = scalar_lea.vmem [#allocation1], 6
    %1119 = vst [vmem:[%s1118] ss:$9 sm:$0xff] %v423
    %s1120 = scalar_lea.vmem [#allocation1], 7
    %1121 = vst [vmem:[%s1120] ss:$9 sm:$0xff] %v424
    %v1122 = vld [vmem:[#allocation1] sm:$0xff]
    %1123 = vst [vmem:[#allocation1] ss:$9 sm:$0xff] %v425
    %1124 = vst [vmem:[%s1108] ss:$9 sm:$0xff] %v426
    %1125 = vst [vmem:[%s1110] ss:$9 sm:$0xff] %v429
    %1126 = vst [vmem:[%s1112] ss:$9 sm:$0xff] %v386
    %1127 = vst [vmem:[%s1114] ss:$9 sm:$0xff] %v430
    %1128 = vst [vmem:[%s1116] ss:$9 sm:$0xff] %v431
    %1129 = vst [vmem:[%s1118] ss:$9 sm:$0xff] %v432
    %1130 = vst [vmem:[%s1120] ss:$9 sm:$0xff] %v435
    %v1131 = vld [vmem:[#allocation1] sm:$0xff]
    %1132 = vst [vmem:[#allocation1] ss:$9 sm:$0xff] %v436
    %1133 = vst [vmem:[%s1108] ss:$9 sm:$0xff] %v387
    %1134 = vst [vmem:[%s1110] ss:$9 sm:$0xff] %v437
    %1135 = vst [vmem:[%s1112] ss:$9 sm:$0xff] %v438
    %1136 = vst [vmem:[%s1114] ss:$9 sm:$0xff] %v441
    %1137 = vst [vmem:[%s1116] ss:$9 sm:$0xff] %v442
    %1138 = vst [vmem:[%s1118] ss:$9 sm:$0xff] %v443
    %1139 = vst [vmem:[%s1120] ss:$9 sm:$0xff] %v388
    %v1140 = vld [vmem:[#allocation1] sm:$0xff]
    %1141 = vst [vmem:[#allocation1] ss:$9 sm:$0xff] %v444
    %1142 = vst [vmem:[%s1108] ss:$9 sm:$0xff] %v459
    %1143 = vst [vmem:[%s1110] ss:$9 sm:$0xff] %v460
    %1144 = vst [vmem:[%s1112] ss:$9 sm:$0xff] %v461
    %1145 = vst [vmem:[%s1114] ss:$9 sm:$0xff] %v462
    %1146 = vst [vmem:[%s1116] ss:$9 sm:$0xff] %v463
    %1147 = vst [vmem:[%s1118] ss:$9 sm:$0xff] %v465
    %1148 = vst [vmem:[%s1120] ss:$9 sm:$0xff] %v466
    %v1149 = vld [vmem:[#allocation1] sm:$0xff]
    %1150 = vst [vmem:[#allocation1] ss:$9 sm:$0xff] %v467
    %1151 = vst [vmem:[%s1108] ss:$9 sm:$0xff] %v468
    %1152 = vst [vmem:[%s1110] ss:$9 sm:$0xff] %v469
    %1153 = vst [vmem:[%s1112] ss:$9 sm:$0xff] %v392
    %1154 = vst [vmem:[%s1114] ss:$9 sm:$0xff] %v472
    %1155 = vst [vmem:[%s1116] ss:$9 sm:$0xff] %v473
    %1156 = vst [vmem:[%s1118] ss:$9 sm:$0xff] %v474
    %1157 = vst [vmem:[%s1120] ss:$9 sm:$0xff] %v475
    %v1158 = vld [vmem:[#allocation1] sm:$0xff]
    %1159 = vst [vmem:[#allocation1] ss:$9 sm:$0xff] %v478
    %1160 = vst [vmem:[%s1108] ss:$9 sm:$0xff] %v393
    %1161 = vst [vmem:[%s1110] ss:$9 sm:$0xff] %v479
    %1162 = vst [vmem:[%s1112] ss:$9 sm:$0xff] %v480
    %1163 = vst [vmem:[%s1114] ss:$9 sm:$0xff] %v481
    %1164 = vst [vmem:[%s1116] ss:$9 sm:$0xff] %v484
    %1165 = vst [vmem:[%s1118] ss:$9 sm:$0xff] %v485
    %1166 = vst [vmem:[%s1120] ss:$9 sm:$0xff] %v394
    %v1167 = vld [vmem:[#allocation1] sm:$0xff]
    %1168 = vst [vmem:[#allocation1] ss:$9 sm:$0xff] %v486
    %1169 = vst [vmem:[%s1108] ss:$9 sm:$0xff] %v487
    %v1170 = vld [vmem:[#allocation1] sm:$0xff]
    %v1171 = vsel %vm561, %v1122, 0
    %v1173 = vsel %vm561, %v1131, 0
    %v1175 = vsel %vm561, %v1140, 0
    %v1177 = vsel %vm561, %v1149, 0
    %v1179 = vsel %vm561, %v1158, 0
    %v1181 = vsel %vm561, %v1167, 0
    %v1183 = vsel %vm561, %v1170, 0
    %1185 = vmatpush.msra.mxu0 0.0
    %1186 = vmatpush.msra.mxu0 0.0
    %1187 = vmatpush.msra.mxu0 0.0
    %1188 = vmatpush.msra.mxu0 0.0
    %1189 = vmatpush.msra.mxu0 0.0
    %1190 = vmatpush.msra.mxu0 0.0
    %1191 = vmatpush.msra.mxu0 0.0
    %1192 = vmatpush.msra.mxu0 0.0
    %1193 = vmatpush.msra.mxu0 0.0
    %1194 = vmatpush.msra.mxu0 0.0
    %1195 = vmatpush.msra.mxu0 0.0
    %1196 = vmatpush.msra.mxu0 0.0
    %1197 = vmatpush.msra.mxu0 0.0
    %1198 = vmatpush.msra.mxu0 0.0
    %1199 = vmatpush.msra.mxu0 0.0
    %1200 = vmatpush.msra.mxu0 %v1106
    %1201 = vmatmul.f32.gmra.mxu0 %v1171
    %v1202 = vpop.f32.mrf.mxu0
    %v1203 = vadd.f32 0.0, %v1202
    %1204 = vmatmul.f32.gmra.mxu0 %v1173
    %v1205 = vpop.f32.mrf.mxu0
    %v1206 = vadd.f32 0.0, %v1205
    %1207 = vmatmul.f32.gmra.mxu0 %v1175
    %v1208 = vpop.f32.mrf.mxu0
    %v1209 = vadd.f32 0.0, %v1208
    %1210 = vmatmul.f32.gmra.mxu0 %v1177
    %v1211 = vpop.f32.mrf.mxu0
    %v1212 = vadd.f32 0.0, %v1211
    %1213 = vmatmul.f32.gmra.mxu0 %v1179
    %v1214 = vpop.f32.mrf.mxu0
    %v1215 = vadd.f32 0.0, %v1214
    %1216 = vmatmul.f32.gmra.mxu0 %v1181
    %v1217 = vpop.f32.mrf.mxu0
    %v1218 = vadd.f32 0.0, %v1217
    %1219 = vmatmul.f32.gmra.mxu0 %v1183
    %v1220 = vpop.f32.mrf.mxu0
    %v1221 = vadd.f32 0.0, %v1220
    %1222 = vdwg.mxu0
    %v1223 = vadd.f32 %v1098, %v1203
    %v1224 = vadd.f32 %v1099, %v1206
    %v1225 = vadd.f32 %v1100, %v1209
    %v1226 = vadd.f32 %v1101, %v1212
    %v1227 = vadd.f32 %v1102, %v1215
    %v1228 = vadd.f32 %v1103, %v1218
    %v1229 = vadd.f32 %v1104, %v1221
    %s1230 = scalar_lea.vmem %s3, 48
    %v1231 = vld [vmem:[%s1230] sm:$0xff]
    %1232 = vst [vmem:[#allocation1] ss:$9 sm:$0xff] %v421
    %s1233 = scalar_lea.vmem [#allocation1], 1
    %1234 = vst [vmem:[%s1233] ss:$9 sm:$0xff] %v422
    %s1235 = scalar_lea.vmem [#allocation1], 2
    %1236 = vst [vmem:[%s1235] ss:$9 sm:$0xff] %v385
    %s1237 = scalar_lea.vmem [#allocation1], 3
    %1238 = vst [vmem:[%s1237] ss:$9 sm:$0xff] %v423
    %s1239 = scalar_lea.vmem [#allocation1], 4
    %1240 = vst [vmem:[%s1239] ss:$9 sm:$0xff] %v424
    %s1241 = scalar_lea.vmem [#allocation1], 5
    %1242 = vst [vmem:[%s1241] ss:$9 sm:$0xff] %v427
    %s1243 = scalar_lea.vmem [#allocation1], 6
    %1244 = vst [vmem:[%s1243] ss:$9 sm:$0xff] %v428
    %s1245 = scalar_lea.vmem [#allocation1], 7
    %1246 = vst [vmem:[%s1245] ss:$9 sm:$0xff] %v429
    %v1247 = vld [vmem:[#allocation1] sm:$0xff]
    %1248 = vst [vmem:[#allocation1] ss:$9 sm:$0xff] %v386
    %1249 = vst [vmem:[%s1233] ss:$9 sm:$0xff] %v430
    %1250 = vst [vmem:[%s1235] ss:$9 sm:$0xff] %v433
    %1251 = vst [vmem:[%s1237] ss:$9 sm:$0xff] %v434
    %1252 = vst [vmem:[%s1239] ss:$9 sm:$0xff] %v435
    %1253 = vst [vmem:[%s1241] ss:$9 sm:$0xff] %v436
    %1254 = vst [vmem:[%s1243] ss:$9 sm:$0xff] %v387
    %1255 = vst [vmem:[%s1245] ss:$9 sm:$0xff] %v439
    %v1256 = vld [vmem:[#allocation1] sm:$0xff]
    %1257 = vst [vmem:[#allocation1] ss:$9 sm:$0xff] %v440
    %1258 = vst [vmem:[%s1233] ss:$9 sm:$0xff] %v441
    %1259 = vst [vmem:[%s1235] ss:$9 sm:$0xff] %v442
    %1260 = vst [vmem:[%s1237] ss:$9 sm:$0xff] %v443
    %1261 = vst [vmem:[%s1239] ss:$9 sm:$0xff] %v445
    %1262 = vst [vmem:[%s1241] ss:$9 sm:$0xff] %v446
    %1263 = vst [vmem:[%s1243] ss:$9 sm:$0xff] %v447
    %1264 = vst [vmem:[%s1245] ss:$9 sm:$0xff] %v448
    %v1265 = vld [vmem:[#allocation1] sm:$0xff]
    %1266 = vst [vmem:[#allocation1] ss:$9 sm:$0xff] %v449
    %1267 = vst [vmem:[%s1233] ss:$9 sm:$0xff] %v464
    %1268 = vst [vmem:[%s1235] ss:$9 sm:$0xff] %v391
    %1269 = vst [vmem:[%s1237] ss:$9 sm:$0xff] %v465
    %1270 = vst [vmem:[%s1239] ss:$9 sm:$0xff] %v466
    %1271 = vst [vmem:[%s1241] ss:$9 sm:$0xff] %v467
    %1272 = vst [vmem:[%s1243] ss:$9 sm:$0xff] %v470
    %1273 = vst [vmem:[%s1245] ss:$9 sm:$0xff] %v471
    %v1274 = vld [vmem:[#allocation1] sm:$0xff]
    %1275 = vst [vmem:[#allocation1] ss:$9 sm:$0xff] %v392
    %1276 = vst [vmem:[%s1233] ss:$9 sm:$0xff] %v472
    %1277 = vst [vmem:[%s1235] ss:$9 sm:$0xff] %v473
    %1278 = vst [vmem:[%s1237] ss:$9 sm:$0xff] %v476
    %1279 = vst [vmem:[%s1239] ss:$9 sm:$0xff] %v477
    %1280 = vst [vmem:[%s1241] ss:$9 sm:$0xff] %v478
    %1281 = vst [vmem:[%s1243] ss:$9 sm:$0xff] %v393
    %1282 = vst [vmem:[%s1245] ss:$9 sm:$0xff] %v479
    %v1283 = vld [vmem:[#allocation1] sm:$0xff]
    %1284 = vst [vmem:[#allocation1] ss:$9 sm:$0xff] %v482
    %1285 = vst [vmem:[%s1233] ss:$9 sm:$0xff] %v483
    %1286 = vst [vmem:[%s1235] ss:$9 sm:$0xff] %v484
    %1287 = vst [vmem:[%s1237] ss:$9 sm:$0xff] %v485
    %1288 = vst [vmem:[%s1239] ss:$9 sm:$0xff] %v394
    %1289 = vst [vmem:[%s1241] ss:$9 sm:$0xff] %v488
    %1290 = vst [vmem:[%s1243] ss:$9 sm:$0xff] %v489
    %1291 = vst [vmem:[%s1245] ss:$9 sm:$0xff] %v490
    %v1292 = vld [vmem:[#allocation1] sm:$0xff]
    %1293 = vst [vmem:[#allocation1] ss:$9 sm:$0xff] %v491
    %1294 = vst [vmem:[%s1233] ss:$9 sm:$0xff] %v492
    %v1295 = vld [vmem:[#allocation1] sm:$0xff]
    %v1296 = vsel %vm561, %v1247, 0
    %v1298 = vsel %vm561, %v1256, 0
    %v1300 = vsel %vm561, %v1265, 0
    %v1302 = vsel %vm561, %v1274, 0
    %v1304 = vsel %vm561, %v1283, 0
    %v1306 = vsel %vm561, %v1292, 0
    %v1308 = vsel %vm561, %v1295, 0
    %1310 = vmatpush.msra.mxu0 0.0
    %1311 = vmatpush.msra.mxu0 0.0
    %1312 = vmatpush.msra.mxu0 0.0
    %1313 = vmatpush.msra.mxu0 0.0
    %1314 = vmatpush.msra.mxu0 0.0
    %1315 = vmatpush.msra.mxu0 0.0
    %1316 = vmatpush.msra.mxu0 0.0
    %1317 = vmatpush.msra.mxu0 0.0
    %1318 = vmatpush.msra.mxu0 0.0
    %1319 = vmatpush.msra.mxu0 0.0
    %1320 = vmatpush.msra.mxu0 0.0
    %1321 = vmatpush.msra.mxu0 0.0
    %1322 = vmatpush.msra.mxu0 0.0
    %1323 = vmatpush.msra.mxu0 0.0
    %1324 = vmatpush.msra.mxu0 0.0
    %1325 = vmatpush.msra.mxu0 %v1231
    %1326 = vmatmul.f32.gmra.mxu0 %v1296
    %v1327 = vpop.f32.mrf.mxu0
    %v1328 = vadd.f32 0.0, %v1327
    %1329 = vmatmul.f32.gmra.mxu0 %v1298
    %v1330 = vpop.f32.mrf.mxu0
    %v1331 = vadd.f32 0.0, %v1330
    %1332 = vmatmul.f32.gmra.mxu0 %v1300
    %v1333 = vpop.f32.mrf.mxu0
    %v1334 = vadd.f32 0.0, %v1333
    %1335 = vmatmul.f32.gmra.mxu0 %v1302
    %v1336 = vpop.f32.mrf.mxu0
    %v1337 = vadd.f32 0.0, %v1336
    %1338 = vmatmul.f32.gmra.mxu0 %v1304
    %v1339 = vpop.f32.mrf.mxu0
    %v1340 = vadd.f32 0.0, %v1339
    %1341 = vmatmul.f32.gmra.mxu0 %v1306
    %v1342 = vpop.f32.mrf.mxu0
    %v1343 = vadd.f32 0.0, %v1342
    %1344 = vmatmul.f32.gmra.mxu0 %v1308
    %v1345 = vpop.f32.mrf.mxu0
    %v1346 = vadd.f32 0.0, %v1345
    %1347 = vdwg.mxu0
    %v1348 = vadd.f32 %v1223, %v1328
    %v1349 = vadd.f32 %v1224, %v1331
    %v1350 = vadd.f32 %v1225, %v1334
    %v1351 = vadd.f32 %v1226, %v1337
    %v1352 = vadd.f32 %v1227, %v1340
    %v1353 = vadd.f32 %v1228, %v1343
    %v1354 = vadd.f32 %v1229, %v1346
    %s1355 = scalar_lea.vmem %s3, 56
    %v1356 = vld [vmem:[%s1355] sm:$0xff]
    %1357 = vst [vmem:[#allocation1] ss:$9 sm:$0xff] %v422
    %s1358 = scalar_lea.vmem [#allocation1], 1
    %1359 = vst [vmem:[%s1358] ss:$9 sm:$0xff] %v385
    %s1360 = scalar_lea.vmem [#allocation1], 2
    %1361 = vst [vmem:[%s1360] ss:$9 sm:$0xff] %v423
    %s1362 = scalar_lea.vmem [#allocation1], 3
    %1363 = vst [vmem:[%s1362] ss:$9 sm:$0xff] %v424
    %s1364 = scalar_lea.vmem [#allocation1], 4
    %1365 = vst [vmem:[%s1364] ss:$9 sm:$0xff] %v425
    %s1366 = scalar_lea.vmem [#allocation1], 5
    %1367 = vst [vmem:[%s1366] ss:$9 sm:$0xff] %v428
    %s1368 = scalar_lea.vmem [#allocation1], 6
    %1369 = vst [vmem:[%s1368] ss:$9 sm:$0xff] %v429
    %s1370 = scalar_lea.vmem [#allocation1], 7
    %1371 = vst [vmem:[%s1370] ss:$9 sm:$0xff] %v386
    %v1372 = vld [vmem:[#allocation1] sm:$0xff]
    %1373 = vst [vmem:[#allocation1] ss:$9 sm:$0xff] %v430
    %1374 = vst [vmem:[%s1358] ss:$9 sm:$0xff] %v431
    %1375 = vst [vmem:[%s1360] ss:$9 sm:$0xff] %v434
    %1376 = vst [vmem:[%s1362] ss:$9 sm:$0xff] %v435
    %1377 = vst [vmem:[%s1364] ss:$9 sm:$0xff] %v436
    %1378 = vst [vmem:[%s1366] ss:$9 sm:$0xff] %v387
    %1379 = vst [vmem:[%s1368] ss:$9 sm:$0xff] %v437
    %1380 = vst [vmem:[%s1370] ss:$9 sm:$0xff] %v440
    %v1381 = vld [vmem:[#allocation1] sm:$0xff]
    %1382 = vst [vmem:[#allocation1] ss:$9 sm:$0xff] %v441
    %1383 = vst [vmem:[%s1358] ss:$9 sm:$0xff] %v442
    %1384 = vst [vmem:[%s1360] ss:$9 sm:$0xff] %v443
    %1385 = vst [vmem:[%s1362] ss:$9 sm:$0xff] %v388
    %1386 = vst [vmem:[%s1364] ss:$9 sm:$0xff] %v446
    %1387 = vst [vmem:[%s1366] ss:$9 sm:$0xff] %v447
    %1388 = vst [vmem:[%s1368] ss:$9 sm:$0xff] %v448
    %1389 = vst [vmem:[%s1370] ss:$9 sm:$0xff] %v449
    %v1390 = vld [vmem:[#allocation1] sm:$0xff]
    %1391 = vst [vmem:[#allocation1] ss:$9 sm:$0xff] %v450
    %1392 = vst [vmem:[%s1358] ss:$9 sm:$0xff] %v391
    %1393 = vst [vmem:[%s1360] ss:$9 sm:$0xff] %v465
    %1394 = vst [vmem:[%s1362] ss:$9 sm:$0xff] %v466
    %1395 = vst [vmem:[%s1364] ss:$9 sm:$0xff] %v467
    %1396 = vst [vmem:[%s1366] ss:$9 sm:$0xff] %v468
    %1397 = vst [vmem:[%s1368] ss:$9 sm:$0xff] %v471
    %1398 = vst [vmem:[%s1370] ss:$9 sm:$0xff] %v392
    %v1399 = vld [vmem:[#allocation1] sm:$0xff]
    %1400 = vst [vmem:[#allocation1] ss:$9 sm:$0xff] %v472
    %1401 = vst [vmem:[%s1358] ss:$9 sm:$0xff] %v473
    %1402 = vst [vmem:[%s1360] ss:$9 sm:$0xff] %v474
    %1403 = vst [vmem:[%s1362] ss:$9 sm:$0xff] %v477
    %1404 = vst [vmem:[%s1364] ss:$9 sm:$0xff] %v478
    %1405 = vst [vmem:[%s1366] ss:$9 sm:$0xff] %v393
    %1406 = vst [vmem:[%s1368] ss:$9 sm:$0xff] %v479
    %1407 = vst [vmem:[%s1370] ss:$9 sm:$0xff] %v480
    %v1408 = vld [vmem:[#allocation1] sm:$0xff]
    %1409 = vst [vmem:[#allocation1] ss:$9 sm:$0xff] %v483
    %1410 = vst [vmem:[%s1358] ss:$9 sm:$0xff] %v484
    %1411 = vst [vmem:[%s1360] ss:$9 sm:$0xff] %v485
    %1412 = vst [vmem:[%s1362] ss:$9 sm:$0xff] %v394
    %1413 = vst [vmem:[%s1364] ss:$9 sm:$0xff] %v486
    %1414 = vst [vmem:[%s1366] ss:$9 sm:$0xff] %v489
    %1415 = vst [vmem:[%s1368] ss:$9 sm:$0xff] %v490
    %1416 = vst [vmem:[%s1370] ss:$9 sm:$0xff] %v491
    %v1417 = vld [vmem:[#allocation1] sm:$0xff]
    %1418 = vst [vmem:[#allocation1] ss:$9 sm:$0xff] %v492
    %1419 = vst [vmem:[%s1358] ss:$9 sm:$0xff] %v395
    %v1420 = vld [vmem:[#allocation1] sm:$0xff]
    %v1421 = vsel %vm561, %v1372, 0
    %v1423 = vsel %vm561, %v1381, 0
    %v1425 = vsel %vm561, %v1390, 0
    %v1427 = vsel %vm561, %v1399, 0
    %v1429 = vsel %vm561, %v1408, 0
    %v1431 = vsel %vm561, %v1417, 0
    %v1433 = vsel %vm561, %v1420, 0
    %1435 = vmatpush.msra.mxu0 0.0
    %1436 = vmatpush.msra.mxu0 0.0
    %1437 = vmatpush.msra.mxu0 0.0
    %1438 = vmatpush.msra.mxu0 0.0
    %1439 = vmatpush.msra.mxu0 0.0
    %1440 = vmatpush.msra.mxu0 0.0
    %1441 = vmatpush.msra.mxu0 0.0
    %1442 = vmatpush.msra.mxu0 0.0
    %1443 = vmatpush.msra.mxu0 0.0
    %1444 = vmatpush.msra.mxu0 0.0
    %1445 = vmatpush.msra.mxu0 0.0
    %1446 = vmatpush.msra.mxu0 0.0
    %1447 = vmatpush.msra.mxu0 0.0
    %1448 = vmatpush.msra.mxu0 0.0
    %1449 = vmatpush.msra.mxu0 0.0
    %1450 = vmatpush.msra.mxu0 %v1356
    %1451 = vmatmul.f32.gmra.mxu0 %v1421
    %v1452 = vpop.f32.mrf.mxu0
    %v1453 = vadd.f32 0.0, %v1452
    %1454 = vmatmul.f32.gmra.mxu0 %v1423
    %v1455 = vpop.f32.mrf.mxu0
    %v1456 = vadd.f32 0.0, %v1455
    %1457 = vmatmul.f32.gmra.mxu0 %v1425
    %v1458 = vpop.f32.mrf.mxu0
    %v1459 = vadd.f32 0.0, %v1458
    %1460 = vmatmul.f32.gmra.mxu0 %v1427
    %v1461 = vpop.f32.mrf.mxu0
    %v1462 = vadd.f32 0.0, %v1461
    %1463 = vmatmul.f32.gmra.mxu0 %v1429
    %v1464 = vpop.f32.mrf.mxu0
    %v1465 = vadd.f32 0.0, %v1464
    %1466 = vmatmul.f32.gmra.mxu0 %v1431
    %v1467 = vpop.f32.mrf.mxu0
    %v1468 = vadd.f32 0.0, %v1467
    %1469 = vmatmul.f32.gmra.mxu0 %v1433
    %v1470 = vpop.f32.mrf.mxu0
    %v1471 = vadd.f32 0.0, %v1470
    %1472 = vdwg.mxu0
    %v1473 = vadd.f32 %v1348, %v1453
    %v1474 = vadd.f32 %v1349, %v1456
    %v1475 = vadd.f32 %v1350, %v1459
    %v1476 = vadd.f32 %v1351, %v1462
    %v1477 = vadd.f32 %v1352, %v1465
    %v1478 = vadd.f32 %v1353, %v1468
    %v1479 = vadd.f32 %v1354, %v1471
    %s1480 = scalar_lea.vmem %s3, 64
    %v1481 = vld [vmem:[%s1480] sm:$0xff]
    %1482 = vst [vmem:[#allocation1] ss:$9 sm:$0xff] %v385
    %s1483 = scalar_lea.vmem [#allocation1], 1
    %1484 = vst [vmem:[%s1483] ss:$9 sm:$0xff] %v423
    %s1485 = scalar_lea.vmem [#allocation1], 2
    %1486 = vst [vmem:[%s1485] ss:$9 sm:$0xff] %v424
    %s1487 = scalar_lea.vmem [#allocation1], 3
    %1488 = vst [vmem:[%s1487] ss:$9 sm:$0xff] %v425
    %s1489 = scalar_lea.vmem [#allocation1], 4
    %1490 = vst [vmem:[%s1489] ss:$9 sm:$0xff] %v426
    %s1491 = scalar_lea.vmem [#allocation1], 5
    %1492 = vst [vmem:[%s1491] ss:$9 sm:$0xff] %v429
    %s1493 = scalar_lea.vmem [#allocation1], 6
    %1494 = vst [vmem:[%s1493] ss:$9 sm:$0xff] %v386
    %s1495 = scalar_lea.vmem [#allocation1], 7
    %1496 = vst [vmem:[%s1495] ss:$9 sm:$0xff] %v430
    %v1497 = vld [vmem:[#allocation1] sm:$0xff]
    %1498 = vst [vmem:[#allocation1] ss:$9 sm:$0xff] %v431
    %1499 = vst [vmem:[%s1483] ss:$9 sm:$0xff] %v432
    %1500 = vst [vmem:[%s1485] ss:$9 sm:$0xff] %v435
    %1501 = vst [vmem:[%s1487] ss:$9 sm:$0xff] %v436
    %1502 = vst [vmem:[%s1489] ss:$9 sm:$0xff] %v387
    %1503 = vst [vmem:[%s1491] ss:$9 sm:$0xff] %v437
    %1504 = vst [vmem:[%s1493] ss:$9 sm:$0xff] %v438
    %1505 = vst [vmem:[%s1495] ss:$9 sm:$0xff] %v441
    %v1506 = vld [vmem:[#allocation1] sm:$0xff]
    %1507 = vst [vmem:[#allocation1] ss:$9 sm:$0xff] %v442
    %1508 = vst [vmem:[%s1483] ss:$9 sm:$0xff] %v443
    %1509 = vst [vmem:[%s1485] ss:$9 sm:$0xff] %v388
    %1510 = vst [vmem:[%s1487] ss:$9 sm:$0xff] %v444
    %1511 = vst [vmem:[%s1489] ss:$9 sm:$0xff] %v447
    %1512 = vst [vmem:[%s1491] ss:$9 sm:$0xff] %v448
    %1513 = vst [vmem:[%s1493] ss:$9 sm:$0xff] %v449
    %1514 = vst [vmem:[%s1495] ss:$9 sm:$0xff] %v450
    %v1515 = vld [vmem:[#allocation1] sm:$0xff]
    %1516 = vst [vmem:[#allocation1] ss:$9 sm:$0xff] %v389
    %1517 = vst [vmem:[%s1483] ss:$9 sm:$0xff] %v465
    %1518 = vst [vmem:[%s1485] ss:$9 sm:$0xff] %v466
    %1519 = vst [vmem:[%s1487] ss:$9 sm:$0xff] %v467
    %1520 = vst [vmem:[%s1489] ss:$9 sm:$0xff] %v468
    %1521 = vst [vmem:[%s1491] ss:$9 sm:$0xff] %v469
    %1522 = vst [vmem:[%s1493] ss:$9 sm:$0xff] %v392
    %1523 = vst [vmem:[%s1495] ss:$9 sm:$0xff] %v472
    %v1524 = vld [vmem:[#allocation1] sm:$0xff]
    %1525 = vst [vmem:[#allocation1] ss:$9 sm:$0xff] %v473
    %1526 = vst [vmem:[%s1483] ss:$9 sm:$0xff] %v474
    %1527 = vst [vmem:[%s1485] ss:$9 sm:$0xff] %v475
    %1528 = vst [vmem:[%s1487] ss:$9 sm:$0xff] %v478
    %1529 = vst [vmem:[%s1489] ss:$9 sm:$0xff] %v393
    %1530 = vst [vmem:[%s1491] ss:$9 sm:$0xff] %v479
    %1531 = vst [vmem:[%s1493] ss:$9 sm:$0xff] %v480
    %1532 = vst [vmem:[%s1495] ss:$9 sm:$0xff] %v481
    %v1533 = vld [vmem:[#allocation1] sm:$0xff]
    %1534 = vst [vmem:[#allocation1] ss:$9 sm:$0xff] %v484
    %1535 = vst [vmem:[%s1483] ss:$9 sm:$0xff] %v485
    %1536 = vst [vmem:[%s1485] ss:$9 sm:$0xff] %v394
    %1537 = vst [vmem:[%s1487] ss:$9 sm:$0xff] %v486
    %1538 = vst [vmem:[%s1489] ss:$9 sm:$0xff] %v487
    %1539 = vst [vmem:[%s1491] ss:$9 sm:$0xff] %v490
    %1540 = vst [vmem:[%s1493] ss:$9 sm:$0xff] %v491
    %1541 = vst [vmem:[%s1495] ss:$9 sm:$0xff] %v492
    %v1542 = vld [vmem:[#allocation1] sm:$0xff]
    %1543 = vst [vmem:[#allocation1] ss:$9 sm:$0xff] %v395
    %1544 = vst [vmem:[%s1483] ss:$9 sm:$0xff] %v493
    %v1545 = vld [vmem:[#allocation1] sm:$0xff]
    %v1546 = vsel %vm561, %v1497, 0
    %v1548 = vsel %vm561, %v1506, 0
    %v1550 = vsel %vm561, %v1515, 0
    %v1552 = vsel %vm561, %v1524, 0
    %v1554 = vsel %vm561, %v1533, 0
    %v1556 = vsel %vm561, %v1542, 0
    %v1558 = vsel %vm561, %v1545, 0
    %1560 = vmatpush.msra.mxu0 0.0
    %1561 = vmatpush.msra.mxu0 0.0
    %1562 = vmatpush.msra.mxu0 0.0
    %1563 = vmatpush.msra.mxu0 0.0
    %1564 = vmatpush.msra.mxu0 0.0
    %1565 = vmatpush.msra.mxu0 0.0
    %1566 = vmatpush.msra.mxu0 0.0
    %1567 = vmatpush.msra.mxu0 0.0
    %1568 = vmatpush.msra.mxu0 0.0
    %1569 = vmatpush.msra.mxu0 0.0
    %1570 = vmatpush.msra.mxu0 0.0
    %1571 = vmatpush.msra.mxu0 0.0
    %1572 = vmatpush.msra.mxu0 0.0
    %1573 = vmatpush.msra.mxu0 0.0
    %1574 = vmatpush.msra.mxu0 0.0
    %1575 = vmatpush.msra.mxu0 %v1481
    %1576 = vmatmul.f32.gmra.mxu0 %v1546
    %v1577 = vpop.f32.mrf.mxu0
    %v1578 = vadd.f32 0.0, %v1577
    %1579 = vmatmul.f32.gmra.mxu0 %v1548
    %v1580 = vpop.f32.mrf.mxu0
    %v1581 = vadd.f32 0.0, %v1580
    %1582 = vmatmul.f32.gmra.mxu0 %v1550
    %v1583 = vpop.f32.mrf.mxu0
    %v1584 = vadd.f32 0.0, %v1583
    %1585 = vmatmul.f32.gmra.mxu0 %v1552
    %v1586 = vpop.f32.mrf.mxu0
    %v1587 = vadd.f32 0.0, %v1586
    %1588 = vmatmul.f32.gmra.mxu0 %v1554
    %v1589 = vpop.f32.mrf.mxu0
    %v1590 = vadd.f32 0.0, %v1589
    %1591 = vmatmul.f32.gmra.mxu0 %v1556
    %v1592 = vpop.f32.mrf.mxu0
    %v1593 = vadd.f32 0.0, %v1592
    %1594 = vmatmul.f32.gmra.mxu0 %v1558
    %v1595 = vpop.f32.mrf.mxu0
    %v1596 = vadd.f32 0.0, %v1595
    %1597 = vdwg.mxu0
    %v1598 = vadd.f32 %v1473, %v1578
    %v1599 = vadd.f32 %v1474, %v1581
    %v1600 = vadd.f32 %v1475, %v1584
    %v1601 = vadd.f32 %v1476, %v1587
    %v1602 = vadd.f32 %v1477, %v1590
    %v1603 = vadd.f32 %v1478, %v1593
    %v1604 = vadd.f32 %v1479, %v1596
    %v1605 = vld [vmem:[%s4] sm:$0x1]
    %v1607 = vperm.slane %v1605, 0
    %v1609 = vadd.f32 %v1598, %v1607
    %v1610 = vadd.f32 %v1599, %v1607
    %v1611 = vadd.f32 %v1600, %v1607
    %v1612 = vadd.f32 %v1601, %v1607
    %v1613 = vadd.f32 %v1602, %v1607
    %v1614 = vadd.f32 %v1603, %v1607
    %v1615 = vadd.f32 %v1604, %v1607
    %v1616 = vmax.f32 %v1609, 0.0
    %v1617 = vmax.f32 %v1610, 0.0
    %v1618 = vmax.f32 %v1611, 0.0
    %v1619 = vmax.f32 %v1612, 0.0
    %v1620 = vmax.f32 %v1613, 0.0
    %v1621 = vmax.f32 %v1614, 0.0
    %v1622 = vmax.f32 %v1615, 0.0
    %v1630 = vrot.slane %v1616, 1
    %v1631 = vrot.slane %v1616, 2
    %v1632 = vrot.slane %v1616, 3
    %v1633 = vrot.slane %v1616, 4
    %v1634 = vrot.slane %v1616, 5
    %v1635 = vrot.slane %v1616, 6
    %v1636 = vrot.slane %v1616, 7
    %v1637 = vrot.slane %v1617, 1
    %v1638 = vrot.slane %v1617, 2
    %v1639 = vrot.slane %v1617, 3
    %v1640 = vrot.slane %v1617, 4
    %v1641 = vrot.slane %v1617, 5
    %v1642 = vrot.slane %v1617, 6
    %v1643 = vrot.slane %v1617, 7
    %v1644 = vrot.slane %v1618, 1
    %v1645 = vrot.slane %v1618, 2
    %v1646 = vrot.slane %v1618, 3
    %v1647 = vrot.slane %v1618, 4
    %v1648 = vrot.slane %v1618, 5
    %v1649 = vrot.slane %v1618, 6
    %v1650 = vrot.slane %v1618, 7
    %v1651 = vrot.slane %v1619, 1
    %v1652 = vrot.slane %v1619, 2
    %v1653 = vrot.slane %v1619, 3
    %v1654 = vrot.slane %v1619, 4
    %v1655 = vrot.slane %v1619, 5
    %v1656 = vrot.slane %v1619, 6
    %v1657 = vrot.slane %v1619, 7
    %v1658 = vrot.slane %v1620, 1
    %v1659 = vrot.slane %v1620, 2
    %v1660 = vrot.slane %v1620, 3
    %v1661 = vrot.slane %v1620, 4
    %v1662 = vrot.slane %v1620, 5
    %v1663 = vrot.slane %v1620, 6
    %v1664 = vrot.slane %v1620, 7
    %v1665 = vrot.slane %v1621, 1
    %v1666 = vrot.slane %v1621, 2
    %v1667 = vrot.slane %v1621, 3
    %v1668 = vrot.slane %v1621, 4
    %v1669 = vrot.slane %v1621, 5
    %v1670 = vrot.slane %v1621, 6
    %v1671 = vrot.slane %v1621, 7
    %v1672 = vrot.slane %v1622, 1
    %v1673 = vld [vmem:[%s5] sm:$0xff]
    %v1674 = vld [vmem:[%s5 + $0x8] sm:$0xff]
    %s1675 = scalar_lea.vmem %s5, 16
    %v1676 = vld [vmem:[%s1675] sm:$0xff]
    %v1677 = vld [vmem:[%s1675 + $0x8] sm:$0xff]
    %1678 = vst [vmem:[#allocation1] ss:$9 sm:$0xff] %v1630
    %s1679 = scalar_lea.vmem [#allocation1], 1
    %1680 = vst [vmem:[%s1679] ss:$9 sm:$0xff] %v1631
    %s1681 = scalar_lea.vmem [#allocation1], 2
    %1682 = vst [vmem:[%s1681] ss:$9 sm:$0xff] %v1632
    %s1683 = scalar_lea.vmem [#allocation1], 3
    %1684 = vst [vmem:[%s1683] ss:$9 sm:$0xff] %v1635
    %s1685 = scalar_lea.vmem [#allocation1], 4
    %1686 = vst [vmem:[%s1685] ss:$9 sm:$0xff] %v1636
    %s1687 = scalar_lea.vmem [#allocation1], 5
    %1688 = vst [vmem:[%s1687] ss:$9 sm:$0xff] %v1617
    %s1689 = scalar_lea.vmem [#allocation1], 6
    %1690 = vst [vmem:[%s1689] ss:$9 sm:$0xff] %v1639
    %s1691 = scalar_lea.vmem [#allocation1], 7
    %1692 = vst [vmem:[%s1691] ss:$9 sm:$0xff] %v1640
    %v1693 = vld [vmem:[#allocation1] sm:$0xff]
    %1694 = vst [vmem:[#allocation1] ss:$9 sm:$0xff] %v1641
    %1695 = vst [vmem:[%s1679] ss:$9 sm:$0xff] %v1652
    %1696 = vst [vmem:[%s1681] ss:$9 sm:$0xff] %v1653
    %1697 = vst [vmem:[%s1683] ss:$9 sm:$0xff] %v1654
    %1698 = vst [vmem:[%s1685] ss:$9 sm:$0xff] %v1657
    %1699 = vst [vmem:[%s1687] ss:$9 sm:$0xff] %v1620
    %1700 = vst [vmem:[%s1689] ss:$9 sm:$0xff] %v1658
    %1701 = vst [vmem:[%s1691] ss:$9 sm:$0xff] %v1661
    %v1702 = vld [vmem:[#allocation1] sm:$0xff]
    %1703 = vst [vmem:[#allocation1] ss:$9 sm:$0xff] %v1662
    %1704 = vst [vmem:[%s1679] ss:$9 sm:$0xff] %v1663
    %v1705 = vld [vmem:[#allocation1] sm:$0xff]
    %vm1706 = vcmask 130048
    %v1707 = vsel %vm1706, %v1693, 0
    %v1709 = vsel %vm1706, %v1702, 0
    %v1711 = vsel %vm1706, %v1705, 0
    %1713 = vmatpush.msra.mxu0 0.0
    %1714 = vmatpush.msra.mxu0 0.0
    %1715 = vmatpush.msra.mxu0 0.0
    %1716 = vmatpush.msra.mxu0 0.0
    %1717 = vmatpush.msra.mxu0 0.0
    %1718 = vmatpush.msra.mxu0 0.0
    %1719 = vmatpush.msra.mxu0 0.0
    %1720 = vmatpush.msra.mxu0 0.0
    %1721 = vmatpush.msra.mxu0 0.0
    %1722 = vmatpush.msra.mxu0 0.0
    %1723 = vmatpush.msra.mxu0 0.0
    %1724 = vmatpush.msra.mxu0 0.0
    %1725 = vmatpush.msra.mxu0 0.0
    %1726 = vmatpush.msra.mxu0 0.0
    %1727 = vmatpush.msra.mxu0 %v1677
    %1728 = vmatpush.msra.mxu0 %v1676
    %1729 = vmatmul.f32.gmra.mxu0 %v1707
    %v1730 = vpop.f32.mrf.mxu0
    %v1731 = vadd.f32 0.0, %v1730
    %1732 = vmatmul.f32.gmra.mxu0 %v1709
    %v1733 = vpop.f32.mrf.mxu0
    %v1734 = vadd.f32 0.0, %v1733
    %1735 = vmatmul.f32.gmra.mxu0 %v1711
    %v1736 = vpop.f32.mrf.mxu0
    %v1737 = vadd.f32 0.0, %v1736
    %1738 = vdwg.mxu0
    %1739 = vst [vmem:[#allocation1] ss:$9 sm:$0xff] %v1616
    %s1740 = scalar_lea.vmem [#allocation1], 1
    %1741 = vst [vmem:[%s1740] ss:$9 sm:$0xff] %v1630
    %s1742 = scalar_lea.vmem [#allocation1], 2
    %1743 = vst [vmem:[%s1742] ss:$9 sm:$0xff] %v1631
    %s1744 = scalar_lea.vmem [#allocation1], 3
    %1745 = vst [vmem:[%s1744] ss:$9 sm:$0xff] %v1634
    %s1746 = scalar_lea.vmem [#allocation1], 4
    %1747 = vst [vmem:[%s1746] ss:$9 sm:$0xff] %v1635
    %s1748 = scalar_lea.vmem [#allocation1], 5
    %1749 = vst [vmem:[%s1748] ss:$9 sm:$0xff] %v1636
    %s1750 = scalar_lea.vmem [#allocation1], 6
    %1751 = vst [vmem:[%s1750] ss:$9 sm:$0xff] %v1638
    %s1752 = scalar_lea.vmem [#allocation1], 7
    %1753 = vst [vmem:[%s1752] ss:$9 sm:$0xff] %v1639
    %v1754 = vld [vmem:[#allocation1] sm:$0xff]
    %1755 = vst [vmem:[#allocation1] ss:$9 sm:$0xff] %v1640
    %1756 = vst [vmem:[%s1740] ss:$9 sm:$0xff] %v1651
    %1757 = vst [vmem:[%s1742] ss:$9 sm:$0xff] %v1652
    %1758 = vst [vmem:[%s1744] ss:$9 sm:$0xff] %v1653
    %1759 = vst [vmem:[%s1746] ss:$9 sm:$0xff] %v1656
    %1760 = vst [vmem:[%s1748] ss:$9 sm:$0xff] %v1657
    %1761 = vst [vmem:[%s1750] ss:$9 sm:$0xff] %v1620
    %1762 = vst [vmem:[%s1752] ss:$9 sm:$0xff] %v1660
    %v1763 = vld [vmem:[#allocation1] sm:$0xff]
    %1764 = vst [vmem:[#allocation1] ss:$9 sm:$0xff] %v1661
    %1765 = vst [vmem:[%s1740] ss:$9 sm:$0xff] %v1662
    %v1766 = vld [vmem:[#allocation1] sm:$0xff]
    %v1767 = vsel %vm1706, %v1754, 0
    %v1769 = vsel %vm1706, %v1763, 0
    %v1771 = vsel %vm1706, %v1766, 0
    %1773 = vmatpush.msra.mxu0 0.0
    %1774 = vmatpush.msra.mxu0 0.0
    %1775 = vmatpush.msra.mxu0 0.0
    %1776 = vmatpush.msra.mxu0 0.0
    %1777 = vmatpush.msra.mxu0 0.0
    %1778 = vmatpush.msra.mxu0 0.0
    %1779 = vmatpush.msra.mxu0 0.0
    %1780 = vmatpush.msra.mxu0 0.0
    %1781 = vmatpush.msra.mxu0 0.0
    %1782 = vmatpush.msra.mxu0 0.0
    %1783 = vmatpush.msra.mxu0 0.0
    %1784 = vmatpush.msra.mxu0 0.0
    %1785 = vmatpush.msra.mxu0 0.0
    %1786 = vmatpush.msra.mxu0 0.0
    %1787 = vmatpush.msra.mxu0 %v1674
    %1788 = vmatpush.msra.mxu0 %v1673
    %1789 = vmatmul.f32.gmra.mxu0 %v1767
    %v1790 = vpop.f32.mrf.mxu0
    %v1791 = vadd.f32 %v1731, %v1790
    %1792 = vmatmul.f32.gmra.mxu0 %v1769
    %v1793 = vpop.f32.mrf.mxu0
    %v1794 = vadd.f32 %v1734, %v1793
    %1795 = vmatmul.f32.gmra.mxu0 %v1771
    %v1796 = vpop.f32.mrf.mxu0
    %v1797 = vadd.f32 %v1737, %v1796
    %1798 = vdwg.mxu0
    %s1799 = scalar_lea.vmem %s5, 32
    %v1800 = vld [vmem:[%s1799] sm:$0xff]
    %v1801 = vld [vmem:[%s1799 + $0x8] sm:$0xff]
    %1802 = vst [vmem:[#allocation1] ss:$9 sm:$0xff] %v1631
    %s1803 = scalar_lea.vmem [#allocation1], 1
    %1804 = vst [vmem:[%s1803] ss:$9 sm:$0xff] %v1632
    %s1805 = scalar_lea.vmem [#allocation1], 2
    %1806 = vst [vmem:[%s1805] ss:$9 sm:$0xff] %v1633
    %s1807 = scalar_lea.vmem [#allocation1], 3
    %1808 = vst [vmem:[%s1807] ss:$9 sm:$0xff] %v1636
    %s1809 = scalar_lea.vmem [#allocation1], 4
    %1810 = vst [vmem:[%s1809] ss:$9 sm:$0xff] %v1617
    %s1811 = scalar_lea.vmem [#allocation1], 5
    %1812 = vst [vmem:[%s1811] ss:$9 sm:$0xff] %v1637
    %s1813 = scalar_lea.vmem [#allocation1], 6
    %1814 = vst [vmem:[%s1813] ss:$9 sm:$0xff] %v1640
    %s1815 = scalar_lea.vmem [#allocation1], 7
    %1816 = vst [vmem:[%s1815] ss:$9 sm:$0xff] %v1641
    %v1817 = vld [vmem:[#allocation1] sm:$0xff]
    %1818 = vst [vmem:[#allocation1] ss:$9 sm:$0xff] %v1642
    %1819 = vst [vmem:[%s1803] ss:$9 sm:$0xff] %v1653
    %1820 = vst [vmem:[%s1805] ss:$9 sm:$0xff] %v1654
    %1821 = vst [vmem:[%s1807] ss:$9 sm:$0xff] %v1655
    %1822 = vst [vmem:[%s1809] ss:$9 sm:$0xff] %v1620
    %1823 = vst [vmem:[%s1811] ss:$9 sm:$0xff] %v1658
    %1824 = vst [vmem:[%s1813] ss:$9 sm:$0xff] %v1659
    %1825 = vst [vmem:[%s1815] ss:$9 sm:$0xff] %v1662
    %v1826 = vld [vmem:[#allocation1] sm:$0xff]
    %1827 = vst [vmem:[#allocation1] ss:$9 sm:$0xff] %v1663
    %1828 = vst [vmem:[%s1803] ss:$9 sm:$0xff] %v1664
    %v1829 = vld [vmem:[#allocation1] sm:$0xff]
    %v1830 = vsel %vm1706, %v1817, 0
    %v1832 = vsel %vm1706, %v1826, 0
    %v1834 = vsel %vm1706, %v1829, 0
    %1836 = vmatpush.msra.mxu0 0.0
    %1837 = vmatpush.msra.mxu0 0.0
    %1838 = vmatpush.msra.mxu0 0.0
    %1839 = vmatpush.msra.mxu0 0.0
    %1840 = vmatpush.msra.mxu0 0.0
    %1841 = vmatpush.msra.mxu0 0.0
    %1842 = vmatpush.msra.mxu0 0.0
    %1843 = vmatpush.msra.mxu0 0.0
    %1844 = vmatpush.msra.mxu0 0.0
    %1845 = vmatpush.msra.mxu0 0.0
    %1846 = vmatpush.msra.mxu0 0.0
    %1847 = vmatpush.msra.mxu0 0.0
    %1848 = vmatpush.msra.mxu0 0.0
    %1849 = vmatpush.msra.mxu0 0.0
    %1850 = vmatpush.msra.mxu0 %v1801
    %1851 = vmatpush.msra.mxu0 %v1800
    %1852 = vmatmul.f32.gmra.mxu0 %v1830
    %v1853 = vpop.f32.mrf.mxu0
    %v1854 = vadd.f32 0.0, %v1853
    %1855 = vmatmul.f32.gmra.mxu0 %v1832
    %v1856 = vpop.f32.mrf.mxu0
    %v1857 = vadd.f32 0.0, %v1856
    %1858 = vmatmul.f32.gmra.mxu0 %v1834
    %v1859 = vpop.f32.mrf.mxu0
    %v1860 = vadd.f32 0.0, %v1859
    %1861 = vdwg.mxu0
    %v1862 = vadd.f32 %v1791, %v1854
    %v1863 = vadd.f32 %v1794, %v1857
    %v1864 = vadd.f32 %v1797, %v1860
    %s1865 = scalar_lea.vmem %s5, 48
    %v1866 = vld [vmem:[%s1865] sm:$0xff]
    %v1867 = vld [vmem:[%s1865 + $0x8] sm:$0xff]
    %1868 = vst [vmem:[#allocation1] ss:$9 sm:$0xff] %v1634
    %s1869 = scalar_lea.vmem [#allocation1], 1
    %1870 = vst [vmem:[%s1869] ss:$9 sm:$0xff] %v1635
    %s1871 = scalar_lea.vmem [#allocation1], 2
    %1872 = vst [vmem:[%s1871] ss:$9 sm:$0xff] %v1636
    %s1873 = scalar_lea.vmem [#allocation1], 3
    %1874 = vst [vmem:[%s1873] ss:$9 sm:$0xff] %v1638
    %s1875 = scalar_lea.vmem [#allocation1], 4
    %1876 = vst [vmem:[%s1875] ss:$9 sm:$0xff] %v1639
    %s1877 = scalar_lea.vmem [#allocation1], 5
    %1878 = vst [vmem:[%s1877] ss:$9 sm:$0xff] %v1640
    %s1879 = scalar_lea.vmem [#allocation1], 6
    %1880 = vst [vmem:[%s1879] ss:$9 sm:$0xff] %v1643
    %s1881 = scalar_lea.vmem [#allocation1], 7
    %1882 = vst [vmem:[%s1881] ss:$9 sm:$0xff] %v1618
    %v1883 = vld [vmem:[#allocation1] sm:$0xff]
    %1884 = vst [vmem:[#allocation1] ss:$9 sm:$0xff] %v1644
    %1885 = vst [vmem:[%s1869] ss:$9 sm:$0xff] %v1656
    %1886 = vst [vmem:[%s1871] ss:$9 sm:$0xff] %v1657
    %1887 = vst [vmem:[%s1873] ss:$9 sm:$0xff] %v1620
    %1888 = vst [vmem:[%s1875] ss:$9 sm:$0xff] %v1660
    %1889 = vst [vmem:[%s1877] ss:$9 sm:$0xff] %v1661
    %1890 = vst [vmem:[%s1879] ss:$9 sm:$0xff] %v1662
    %1891 = vst [vmem:[%s1881] ss:$9 sm:$0xff] %v1621
    %v1892 = vld [vmem:[#allocation1] sm:$0xff]
    %1893 = vst [vmem:[#allocation1] ss:$9 sm:$0xff] %v1665
    %1894 = vst [vmem:[%s1869] ss:$9 sm:$0xff] %v1666
    %v1895 = vld [vmem:[#allocation1] sm:$0xff]
    %v1896 = vsel %vm1706, %v1883, 0
    %v1898 = vsel %vm1706, %v1892, 0
    %v1900 = vsel %vm1706, %v1895, 0
    %1902 = vmatpush.msra.mxu0 0.0
    %1903 = vmatpush.msra.mxu0 0.0
    %1904 = vmatpush.msra.mxu0 0.0
    %1905 = vmatpush.msra.mxu0 0.0
    %1906 = vmatpush.msra.mxu0 0.0
    %1907 = vmatpush.msra.mxu0 0.0
    %1908 = vmatpush.msra.mxu0 0.0
    %1909 = vmatpush.msra.mxu0 0.0
    %1910 = vmatpush.msra.mxu0 0.0
    %1911 = vmatpush.msra.mxu0 0.0
    %1912 = vmatpush.msra.mxu0 0.0
    %1913 = vmatpush.msra.mxu0 0.0
    %1914 = vmatpush.msra.mxu0 0.0
    %1915 = vmatpush.msra.mxu0 0.0
    %1916 = vmatpush.msra.mxu0 %v1867
    %1917 = vmatpush.msra.mxu0 %v1866
    %1918 = vmatmul.f32.gmra.mxu0 %v1896
    %v1919 = vpop.f32.mrf.mxu0
    %v1920 = vadd.f32 0.0, %v1919
    %1921 = vmatmul.f32.gmra.mxu0 %v1898
    %v1922 = vpop.f32.mrf.mxu0
    %v1923 = vadd.f32 0.0, %v1922
    %1924 = vmatmul.f32.gmra.mxu0 %v1900
    %v1925 = vpop.f32.mrf.mxu0
    %v1926 = vadd.f32 0.0, %v1925
    %1927 = vdwg.mxu0
    %v1928 = vadd.f32 %v1862, %v1920
    %v1929 = vadd.f32 %v1863, %v1923
    %v1930 = vadd.f32 %v1864, %v1926
    %s1931 = scalar_lea.vmem %s5, 64
    %v1932 = vld [vmem:[%s1931] sm:$0xff]
    %v1933 = vld [vmem:[%s1931 + $0x8] sm:$0xff]
    %1934 = vst [vmem:[#allocation1] ss:$9 sm:$0xff] %v1635
    %s1935 = scalar_lea.vmem [#allocation1], 1
    %1936 = vst [vmem:[%s1935] ss:$9 sm:$0xff] %v1636
    %s1937 = scalar_lea.vmem [#allocation1], 2
    %1938 = vst [vmem:[%s1937] ss:$9 sm:$0xff] %v1617
    %s1939 = scalar_lea.vmem [#allocation1], 3
    %1940 = vst [vmem:[%s1939] ss:$9 sm:$0xff] %v1639
    %s1941 = scalar_lea.vmem [#allocation1], 4
    %1942 = vst [vmem:[%s1941] ss:$9 sm:$0xff] %v1640
    %s1943 = scalar_lea.vmem [#allocation1], 5
    %1944 = vst [vmem:[%s1943] ss:$9 sm:$0xff] %v1641
    %s1945 = scalar_lea.vmem [#allocation1], 6
    %1946 = vst [vmem:[%s1945] ss:$9 sm:$0xff] %v1618
    %s1947 = scalar_lea.vmem [#allocation1], 7
    %1948 = vst [vmem:[%s1947] ss:$9 sm:$0xff] %v1644
    %v1949 = vld [vmem:[#allocation1] sm:$0xff]
    %1950 = vst [vmem:[#allocation1] ss:$9 sm:$0xff] %v1645
    %1951 = vst [vmem:[%s1935] ss:$9 sm:$0xff] %v1657
    %1952 = vst [vmem:[%s1937] ss:$9 sm:$0xff] %v1620
    %1953 = vst [vmem:[%s1939] ss:$9 sm:$0xff] %v1658
    %1954 = vst [vmem:[%s1941] ss:$9 sm:$0xff] %v1661
    %1955 = vst [vmem:[%s1943] ss:$9 sm:$0xff] %v1662
    %1956 = vst [vmem:[%s1945] ss:$9 sm:$0xff] %v1663
    %1957 = vst [vmem:[%s1947] ss:$9 sm:$0xff] %v1665
    %v1958 = vld [vmem:[#allocation1] sm:$0xff]
    %1959 = vst [vmem:[#allocation1] ss:$9 sm:$0xff] %v1666
    %1960 = vst [vmem:[%s1935] ss:$9 sm:$0xff] %v1667
    %v1961 = vld [vmem:[#allocation1] sm:$0xff]
    %v1962 = vsel %vm1706, %v1949, 0
    %v1964 = vsel %vm1706, %v1958, 0
    %v1966 = vsel %vm1706, %v1961, 0
    %1968 = vmatpush.msra.mxu0 0.0
    %1969 = vmatpush.msra.mxu0 0.0
    %1970 = vmatpush.msra.mxu0 0.0
    %1971 = vmatpush.msra.mxu0 0.0
    %1972 = vmatpush.msra.mxu0 0.0
    %1973 = vmatpush.msra.mxu0 0.0
    %1974 = vmatpush.msra.mxu0 0.0
    %1975 = vmatpush.msra.mxu0 0.0
    %1976 = vmatpush.msra.mxu0 0.0
    %1977 = vmatpush.msra.mxu0 0.0
    %1978 = vmatpush.msra.mxu0 0.0
    %1979 = vmatpush.msra.mxu0 0.0
    %1980 = vmatpush.msra.mxu0 0.0
    %1981 = vmatpush.msra.mxu0 0.0
    %1982 = vmatpush.msra.mxu0 %v1933
    %1983 = vmatpush.msra.mxu0 %v1932
    %1984 = vmatmul.f32.gmra.mxu0 %v1962
    %v1985 = vpop.f32.mrf.mxu0
    %v1986 = vadd.f32 0.0, %v1985
    %1987 = vmatmul.f32.gmra.mxu0 %v1964
    %v1988 = vpop.f32.mrf.mxu0
    %v1989 = vadd.f32 0.0, %v1988
    %1990 = vmatmul.f32.gmra.mxu0 %v1966
    %v1991 = vpop.f32.mrf.mxu0
    %v1992 = vadd.f32 0.0, %v1991
    %1993 = vdwg.mxu0
    %v1994 = vadd.f32 %v1928, %v1986
    %v1995 = vadd.f32 %v1929, %v1989
    %v1996 = vadd.f32 %v1930, %v1992
    %s1997 = scalar_lea.vmem %s5, 80
    %v1998 = vld [vmem:[%s1997] sm:$0xff]
    %v1999 = vld [vmem:[%s1997 + $0x8] sm:$0xff]
    %2000 = vst [vmem:[#allocation1] ss:$9 sm:$0xff] %v1636
    %s2001 = scalar_lea.vmem [#allocation1], 1
    %2002 = vst [vmem:[%s2001] ss:$9 sm:$0xff] %v1617
    %s2003 = scalar_lea.vmem [#allocation1], 2
    %2004 = vst [vmem:[%s2003] ss:$9 sm:$0xff] %v1637
    %s2005 = scalar_lea.vmem [#allocation1], 3
    %2006 = vst [vmem:[%s2005] ss:$9 sm:$0xff] %v1640
    %s2007 = scalar_lea.vmem [#allocation1], 4
    %2008 = vst [vmem:[%s2007] ss:$9 sm:$0xff] %v1641
    %s2009 = scalar_lea.vmem [#allocation1], 5
    %2010 = vst [vmem:[%s2009] ss:$9 sm:$0xff] %v1642
    %s2011 = scalar_lea.vmem [#allocation1], 6
    %2012 = vst [vmem:[%s2011] ss:$9 sm:$0xff] %v1644
    %s2013 = scalar_lea.vmem [#allocation1], 7
    %2014 = vst [vmem:[%s2013] ss:$9 sm:$0xff] %v1645
    %v2015 = vld [vmem:[#allocation1] sm:$0xff]
    %2016 = vst [vmem:[#allocation1] ss:$9 sm:$0xff] %v1646
    %2017 = vst [vmem:[%s2001] ss:$9 sm:$0xff] %v1620
    %2018 = vst [vmem:[%s2003] ss:$9 sm:$0xff] %v1658
    %2019 = vst [vmem:[%s2005] ss:$9 sm:$0xff] %v1659
    %2020 = vst [vmem:[%s2007] ss:$9 sm:$0xff] %v1662
    %2021 = vst [vmem:[%s2009] ss:$9 sm:$0xff] %v1663
    %2022 = vst [vmem:[%s2011] ss:$9 sm:$0xff] %v1664
    %2023 = vst [vmem:[%s2013] ss:$9 sm:$0xff] %v1666
    %v2024 = vld [vmem:[#allocation1] sm:$0xff]
    %2025 = vst [vmem:[#allocation1] ss:$9 sm:$0xff] %v1667
    %2026 = vst [vmem:[%s2001] ss:$9 sm:$0xff] %v1668
    %v2027 = vld [vmem:[#allocation1] sm:$0xff]
    %v2028 = vsel %vm1706, %v2015, 0
    %v2030 = vsel %vm1706, %v2024, 0
    %v2032 = vsel %vm1706, %v2027, 0
    %2034 = vmatpush.msra.mxu0 0.0
    %2035 = vmatpush.msra.mxu0 0.0
    %2036 = vmatpush.msra.mxu0 0.0
    %2037 = vmatpush.msra.mxu0 0.0
    %2038 = vmatpush.msra.mxu0 0.0
    %2039 = vmatpush.msra.mxu0 0.0
    %2040 = vmatpush.msra.mxu0 0.0
    %2041 = vmatpush.msra.mxu0 0.0
    %2042 = vmatpush.msra.mxu0 0.0
    %2043 = vmatpush.msra.mxu0 0.0
    %2044 = vmatpush.msra.mxu0 0.0
    %2045 = vmatpush.msra.mxu0 0.0
    %2046 = vmatpush.msra.mxu0 0.0
    %2047 = vmatpush.msra.mxu0 0.0
    %2048 = vmatpush.msra.mxu0 %v1999
    %2049 = vmatpush.msra.mxu0 %v1998
    %2050 = vmatmul.f32.gmra.mxu0 %v2028
    %v2051 = vpop.f32.mrf.mxu0
    %v2052 = vadd.f32 0.0, %v2051
    %2053 = vmatmul.f32.gmra.mxu0 %v2030
    %v2054 = vpop.f32.mrf.mxu0
    %v2055 = vadd.f32 0.0, %v2054
    %2056 = vmatmul.f32.gmra.mxu0 %v2032
    %v2057 = vpop.f32.mrf.mxu0
    %v2058 = vadd.f32 0.0, %v2057
    %2059 = vdwg.mxu0
    %v2060 = vadd.f32 %v1994, %v2052
    %v2061 = vadd.f32 %v1995, %v2055
    %v2062 = vadd.f32 %v1996, %v2058
    %s2063 = scalar_lea.vmem %s5, 96
    %v2064 = vld [vmem:[%s2063] sm:$0xff]
    %v2065 = vld [vmem:[%s2063 + $0x8] sm:$0xff]
    %2066 = vst [vmem:[#allocation1] ss:$9 sm:$0xff] %v1638
    %s2067 = scalar_lea.vmem [#allocation1], 1
    %2068 = vst [vmem:[%s2067] ss:$9 sm:$0xff] %v1639
    %s2069 = scalar_lea.vmem [#allocation1], 2
    %2070 = vst [vmem:[%s2069] ss:$9 sm:$0xff] %v1640
    %s2071 = scalar_lea.vmem [#allocation1], 3
    %2072 = vst [vmem:[%s2071] ss:$9 sm:$0xff] %v1643
    %s2073 = scalar_lea.vmem [#allocation1], 4
    %2074 = vst [vmem:[%s2073] ss:$9 sm:$0xff] %v1618
    %s2075 = scalar_lea.vmem [#allocation1], 5
    %2076 = vst [vmem:[%s2075] ss:$9 sm:$0xff] %v1644
    %s2077 = scalar_lea.vmem [#allocation1], 6
    %2078 = vst [vmem:[%s2077] ss:$9 sm:$0xff] %v1647
    %s2079 = scalar_lea.vmem [#allocation1], 7
    %2080 = vst [vmem:[%s2079] ss:$9 sm:$0xff] %v1648
    %v2081 = vld [vmem:[#allocation1] sm:$0xff]
    %2082 = vst [vmem:[#allocation1] ss:$9 sm:$0xff] %v1649
    %2083 = vst [vmem:[%s2067] ss:$9 sm:$0xff] %v1660
    %2084 = vst [vmem:[%s2069] ss:$9 sm:$0xff] %v1661
    %2085 = vst [vmem:[%s2071] ss:$9 sm:$0xff] %v1662
    %2086 = vst [vmem:[%s2073] ss:$9 sm:$0xff] %v1621
    %2087 = vst [vmem:[%s2075] ss:$9 sm:$0xff] %v1665
    %2088 = vst [vmem:[%s2077] ss:$9 sm:$0xff] %v1666
    %2089 = vst [vmem:[%s2079] ss:$9 sm:$0xff] %v1669
    %v2090 = vld [vmem:[#allocation1] sm:$0xff]
    %2091 = vst [vmem:[#allocation1] ss:$9 sm:$0xff] %v1670
    %2092 = vst [vmem:[%s2067] ss:$9 sm:$0xff] %v1671
    %v2093 = vld [vmem:[#allocation1] sm:$0xff]
    %v2094 = vsel %vm1706, %v2081, 0
    %v2096 = vsel %vm1706, %v2090, 0
    %v2098 = vsel %vm1706, %v2093, 0
    %2100 = vmatpush.msra.mxu0 0.0
    %2101 = vmatpush.msra.mxu0 0.0
    %2102 = vmatpush.msra.mxu0 0.0
    %2103 = vmatpush.msra.mxu0 0.0
    %2104 = vmatpush.msra.mxu0 0.0
    %2105 = vmatpush.msra.mxu0 0.0
    %2106 = vmatpush.msra.mxu0 0.0
    %2107 = vmatpush.msra.mxu0 0.0
    %2108 = vmatpush.msra.mxu0 0.0
    %2109 = vmatpush.msra.mxu0 0.0
    %2110 = vmatpush.msra.mxu0 0.0
    %2111 = vmatpush.msra.mxu0 0.0
    %2112 = vmatpush.msra.mxu0 0.0
    %2113 = vmatpush.msra.mxu0 0.0
    %2114 = vmatpush.msra.mxu0 %v2065
    %2115 = vmatpush.msra.mxu0 %v2064
    %2116 = vmatmul.f32.gmra.mxu0 %v2094
    %v2117 = vpop.f32.mrf.mxu0
    %v2118 = vadd.f32 0.0, %v2117
    %2119 = vmatmul.f32.gmra.mxu0 %v2096
    %v2120 = vpop.f32.mrf.mxu0
    %v2121 = vadd.f32 0.0, %v2120
    %2122 = vmatmul.f32.gmra.mxu0 %v2098
    %v2123 = vpop.f32.mrf.mxu0
    %v2124 = vadd.f32 0.0, %v2123
    %2125 = vdwg.mxu0
    %v2126 = vadd.f32 %v2060, %v2118
    %v2127 = vadd.f32 %v2061, %v2121
    %v2128 = vadd.f32 %v2062, %v2124
    %s2129 = scalar_lea.vmem %s5, 112
    %v2130 = vld [vmem:[%s2129] sm:$0xff]
    %v2131 = vld [vmem:[%s2129 + $0x8] sm:$0xff]
    %2132 = vst [vmem:[#allocation1] ss:$9 sm:$0xff] %v1639
    %s2133 = scalar_lea.vmem [#allocation1], 1
    %2134 = vst [vmem:[%s2133] ss:$9 sm:$0xff] %v1640
    %s2135 = scalar_lea.vmem [#allocation1], 2
    %2136 = vst [vmem:[%s2135] ss:$9 sm:$0xff] %v1641
    %s2137 = scalar_lea.vmem [#allocation1], 3
    %2138 = vst [vmem:[%s2137] ss:$9 sm:$0xff] %v1618
    %s2139 = scalar_lea.vmem [#allocation1], 4
    %2140 = vst [vmem:[%s2139] ss:$9 sm:$0xff] %v1644
    %s2141 = scalar_lea.vmem [#allocation1], 5
    %2142 = vst [vmem:[%s2141] ss:$9 sm:$0xff] %v1645
    %s2143 = scalar_lea.vmem [#allocation1], 6
    %2144 = vst [vmem:[%s2143] ss:$9 sm:$0xff] %v1648
    %s2145 = scalar_lea.vmem [#allocation1], 7
    %2146 = vst [vmem:[%s2145] ss:$9 sm:$0xff] %v1649
    %v2147 = vld [vmem:[#allocation1] sm:$0xff]
    %2148 = vst [vmem:[#allocation1] ss:$9 sm:$0xff] %v1650
    %2149 = vst [vmem:[%s2133] ss:$9 sm:$0xff] %v1661
    %2150 = vst [vmem:[%s2135] ss:$9 sm:$0xff] %v1662
    %2151 = vst [vmem:[%s2137] ss:$9 sm:$0xff] %v1663
    %2152 = vst [vmem:[%s2139] ss:$9 sm:$0xff] %v1665
    %2153 = vst [vmem:[%s2141] ss:$9 sm:$0xff] %v1666
    %2154 = vst [vmem:[%s2143] ss:$9 sm:$0xff] %v1667
    %2155 = vst [vmem:[%s2145] ss:$9 sm:$0xff] %v1670
    %v2156 = vld [vmem:[#allocation1] sm:$0xff]
    %2157 = vst [vmem:[#allocation1] ss:$9 sm:$0xff] %v1671
    %2158 = vst [vmem:[%s2133] ss:$9 sm:$0xff] %v1622
    %v2159 = vld [vmem:[#allocation1] sm:$0xff]
    %v2160 = vsel %vm1706, %v2147, 0
    %v2162 = vsel %vm1706, %v2156, 0
    %v2164 = vsel %vm1706, %v2159, 0
    %2166 = vmatpush.msra.mxu0 0.0
    %2167 = vmatpush.msra.mxu0 0.0
    %2168 = vmatpush.msra.mxu0 0.0
    %2169 = vmatpush.msra.mxu0 0.0
    %2170 = vmatpush.msra.mxu0 0.0
    %2171 = vmatpush.msra.mxu0 0.0
    %2172 = vmatpush.msra.mxu0 0.0
    %2173 = vmatpush.msra.mxu0 0.0
    %2174 = vmatpush.msra.mxu0 0.0
    %2175 = vmatpush.msra.mxu0 0.0
    %2176 = vmatpush.msra.mxu0 0.0
    %2177 = vmatpush.msra.mxu0 0.0
    %2178 = vmatpush.msra.mxu0 0.0
    %2179 = vmatpush.msra.mxu0 0.0
    %2180 = vmatpush.msra.mxu0 %v2131
    %2181 = vmatpush.msra.mxu0 %v2130
    %2182 = vmatmul.f32.gmra.mxu0 %v2160
    %v2183 = vpop.f32.mrf.mxu0
    %v2184 = vadd.f32 0.0, %v2183
    %2185 = vmatmul.f32.gmra.mxu0 %v2162
    %v2186 = vpop.f32.mrf.mxu0
    %v2187 = vadd.f32 0.0, %v2186
    %2188 = vmatmul.f32.gmra.mxu0 %v2164
    %v2189 = vpop.f32.mrf.mxu0
    %v2190 = vadd.f32 0.0, %v2189
    %2191 = vdwg.mxu0
    %v2192 = vadd.f32 %v2126, %v2184
    %v2193 = vadd.f32 %v2127, %v2187
    %v2194 = vadd.f32 %v2128, %v2190
    %s2195 = scalar_lea.vmem %s5, 128
    %v2196 = vld [vmem:[%s2195] sm:$0xff]
    %v2197 = vld [vmem:[%s2195 + $0x8] sm:$0xff]
    %2198 = vst [vmem:[#allocation1] ss:$9 sm:$0xff] %v1640
    %s2199 = scalar_lea.vmem [#allocation1], 1
    %2200 = vst [vmem:[%s2199] ss:$9 sm:$0xff] %v1641
    %s2201 = scalar_lea.vmem [#allocation1], 2
    %2202 = vst [vmem:[%s2201] ss:$9 sm:$0xff] %v1642
    %s2203 = scalar_lea.vmem [#allocation1], 3
    %2204 = vst [vmem:[%s2203] ss:$9 sm:$0xff] %v1644
    %s2205 = scalar_lea.vmem [#allocation1], 4
    %2206 = vst [vmem:[%s2205] ss:$9 sm:$0xff] %v1645
    %s2207 = scalar_lea.vmem [#allocation1], 5
    %2208 = vst [vmem:[%s2207] ss:$9 sm:$0xff] %v1646
    %s2209 = scalar_lea.vmem [#allocation1], 6
    %2210 = vst [vmem:[%s2209] ss:$9 sm:$0xff] %v1649
    %s2211 = scalar_lea.vmem [#allocation1], 7
    %2212 = vst [vmem:[%s2211] ss:$9 sm:$0xff] %v1650
    %v2213 = vld [vmem:[#allocation1] sm:$0xff]
    %2214 = vst [vmem:[#allocation1] ss:$9 sm:$0xff] %v1619
    %2215 = vst [vmem:[%s2199] ss:$9 sm:$0xff] %v1662
    %2216 = vst [vmem:[%s2201] ss:$9 sm:$0xff] %v1663
    %2217 = vst [vmem:[%s2203] ss:$9 sm:$0xff] %v1664
    %2218 = vst [vmem:[%s2205] ss:$9 sm:$0xff] %v1666
    %2219 = vst [vmem:[%s2207] ss:$9 sm:$0xff] %v1667
    %2220 = vst [vmem:[%s2209] ss:$9 sm:$0xff] %v1668
    %2221 = vst [vmem:[%s2211] ss:$9 sm:$0xff] %v1671
    %v2222 = vld [vmem:[#allocation1] sm:$0xff]
    %2223 = vst [vmem:[#allocation1] ss:$9 sm:$0xff] %v1622
    %2224 = vst [vmem:[%s2199] ss:$9 sm:$0xff] %v1672
    %v2225 = vld [vmem:[#allocation1] sm:$0xff]
    %v2226 = vsel %vm1706, %v2213, 0
    %v2228 = vsel %vm1706, %v2222, 0
    %v2230 = vsel %vm1706, %v2225, 0
    %2232 = vmatpush.msra.mxu0 0.0
    %2233 = vmatpush.msra.mxu0 0.0
    %2234 = vmatpush.msra.mxu0 0.0
    %2235 = vmatpush.msra.mxu0 0.0
    %2236 = vmatpush.msra.mxu0 0.0
    %2237 = vmatpush.msra.mxu0 0.0
    %2238 = vmatpush.msra.mxu0 0.0
    %2239 = vmatpush.msra.mxu0 0.0
    %2240 = vmatpush.msra.mxu0 0.0
    %2241 = vmatpush.msra.mxu0 0.0
    %2242 = vmatpush.msra.mxu0 0.0
    %2243 = vmatpush.msra.mxu0 0.0
    %2244 = vmatpush.msra.mxu0 0.0
    %2245 = vmatpush.msra.mxu0 0.0
    %2246 = vmatpush.msra.mxu0 %v2197
    %2247 = vmatpush.msra.mxu0 %v2196
    %2248 = vmatmul.f32.gmra.mxu0 %v2226
    %v2249 = vpop.f32.mrf.mxu0
    %v2250 = vadd.f32 0.0, %v2249
    %2251 = vmatmul.f32.gmra.mxu0 %v2228
    %v2252 = vpop.f32.mrf.mxu0
    %v2253 = vadd.f32 0.0, %v2252
    %2254 = vmatmul.f32.gmra.mxu0 %v2230
    %v2255 = vpop.f32.mrf.mxu0
    %v2256 = vadd.f32 0.0, %v2255
    %2257 = vdwg.mxu0
    %v2258 = vadd.f32 %v2192, %v2250
    %v2259 = vadd.f32 %v2193, %v2253
    %v2260 = vadd.f32 %v2194, %v2256
    %v2261 = vld [vmem:[%s6] sm:$0x1]
    %v2263 = vperm.slane %v2261, 0
    %v2265 = vadd.f32 %v2258, %v2263
    %v2266 = vadd.f32 %v2259, %v2263
    %v2267 = vadd.f32 %v2260, %v2263
    %v2268 = vmax.f32 %v2265, 0.0
    %v2269 = vmax.f32 %v2266, 0.0
    %v2270 = vmax.f32 %v2267, 0.0
    %v2274 = vrot.slane %v2268, 1
    %v2275 = vrot.slane %v2268, 2
    %v2276 = vrot.slane %v2268, 3
    %v2277 = vrot.slane %v2268, 4
    %v2278 = vrot.slane %v2268, 5
    %v2279 = vrot.slane %v2268, 6
    %v2280 = vrot.slane %v2268, 7
    %v2281 = vrot.slane %v2269, 1
    %v2282 = vrot.slane %v2269, 2
    %v2283 = vrot.slane %v2269, 3
    %v2284 = vrot.slane %v2269, 4
    %v2285 = vrot.slane %v2269, 5
    %v2286 = vrot.slane %v2269, 6
    %v2287 = vrot.slane %v2269, 7
    %v2288 = vrot.slane %v2270, 1
    %v2289 = vld [vmem:[#allocation2] sm:$0xff]
    %v2290 = vld [vmem:[#allocation2 + $0x8] sm:$0xff]
    %v2291 = vld [vmem:[#allocation2 + $0x10] sm:$0xff]
    %v2292 = vld [vmem:[#allocation2 + $0x18] sm:$0xff]
    %s2293 = scalar_lea.vmem [#allocation2], 32
    %v2294 = vld [vmem:[%s2293] sm:$0xff]
    %v2295 = vld [vmem:[%s2293 + $0x8] sm:$0xff]
    %v2296 = vld [vmem:[%s2293 + $0x10] sm:$0xff]
    %v2297 = vld [vmem:[%s2293 + $0x18] sm:$0xff]
    %2298 = vst [vmem:[#allocation1] ss:$9 sm:$0xff] %v2274
    %s2299 = scalar_lea.vmem [#allocation1], 1
    %2300 = vst [vmem:[%s2299] ss:$9 sm:$0xff] %v2282
    %v2301 = vld [vmem:[#allocation1] sm:$0xff]
    %vm2302 = vcmask 261120
    %v2303 = vsel %vm2302, %v2301, 0
    %2305 = vmatpush.msra.mxu0 0.0
    %2306 = vmatpush.msra.mxu0 0.0
    %2307 = vmatpush.msra.mxu0 0.0
    %2308 = vmatpush.msra.mxu0 0.0
    %2309 = vmatpush.msra.mxu0 0.0
    %2310 = vmatpush.msra.mxu0 0.0
    %2311 = vmatpush.msra.mxu0 0.0
    %2312 = vmatpush.msra.mxu0 0.0
    %2313 = vmatpush.msra.mxu0 0.0
    %2314 = vmatpush.msra.mxu0 0.0
    %2315 = vmatpush.msra.mxu0 0.0
    %2316 = vmatpush.msra.mxu0 0.0
    %2317 = vmatpush.msra.mxu0 %v2297
    %2318 = vmatpush.msra.mxu0 %v2296
    %2319 = vmatpush.msra.mxu0 %v2295
    %2320 = vmatpush.msra.mxu0 %v2294
    %2321 = vmatmul.f32.gmra.mxu0 %v2303
    %v2322 = vpop.f32.mrf.mxu0
    %v2323 = vadd.f32 0.0, %v2322
    %2324 = vdwg.mxu0
    %2325 = vst [vmem:[#allocation1] ss:$9 sm:$0xff] %v2268
    %s2326 = scalar_lea.vmem [#allocation1], 1
    %2327 = vst [vmem:[%s2326] ss:$9 sm:$0xff] %v2281
    %v2328 = vld [vmem:[#allocation1] sm:$0xff]
    %v2329 = vsel %vm2302, %v2328, 0
    %2331 = vmatpush.msra.mxu0 0.0
    %2332 = vmatpush.msra.mxu0 0.0
    %2333 = vmatpush.msra.mxu0 0.0
    %2334 = vmatpush.msra.mxu0 0.0
    %2335 = vmatpush.msra.mxu0 0.0
    %2336 = vmatpush.msra.mxu0 0.0
    %2337 = vmatpush.msra.mxu0 0.0
    %2338 = vmatpush.msra.mxu0 0.0
    %2339 = vmatpush.msra.mxu0 0.0
    %2340 = vmatpush.msra.mxu0 0.0
    %2341 = vmatpush.msra.mxu0 0.0
    %2342 = vmatpush.msra.mxu0 0.0
    %2343 = vmatpush.msra.mxu0 %v2292
    %2344 = vmatpush.msra.mxu0 %v2291
    %2345 = vmatpush.msra.mxu0 %v2290
    %2346 = vmatpush.msra.mxu0 %v2289
    %2347 = vmatmul.f32.gmra.mxu0 %v2329
    %v2348 = vpop.f32.mrf.mxu0
    %v2349 = vadd.f32 %v2323, %v2348
    %2350 = vdwg.mxu0
    %s2351 = scalar_lea.vmem [#allocation2], 64
    %v2352 = vld [vmem:[%s2351] sm:$0xff]
    %v2353 = vld [vmem:[%s2351 + $0x8] sm:$0xff]
    %v2354 = vld [vmem:[%s2351 + $0x10] sm:$0xff]
    %v2355 = vld [vmem:[%s2351 + $0x18] sm:$0xff]
    %2356 = vst [vmem:[#allocation1] ss:$9 sm:$0xff] %v2275
    %s2357 = scalar_lea.vmem [#allocation1], 1
    %2358 = vst [vmem:[%s2357] ss:$9 sm:$0xff] %v2283
    %v2359 = vld [vmem:[#allocation1] sm:$0xff]
    %v2360 = vsel %vm2302, %v2359, 0
    %2362 = vmatpush.msra.mxu0 0.0
    %2363 = vmatpush.msra.mxu0 0.0
    %2364 = vmatpush.msra.mxu0 0.0
    %2365 = vmatpush.msra.mxu0 0.0
    %2366 = vmatpush.msra.mxu0 0.0
    %2367 = vmatpush.msra.mxu0 0.0
    %2368 = vmatpush.msra.mxu0 0.0
    %2369 = vmatpush.msra.mxu0 0.0
    %2370 = vmatpush.msra.mxu0 0.0
    %2371 = vmatpush.msra.mxu0 0.0
    %2372 = vmatpush.msra.mxu0 0.0
    %2373 = vmatpush.msra.mxu0 0.0
    %2374 = vmatpush.msra.mxu0 %v2355
    %2375 = vmatpush.msra.mxu0 %v2354
    %2376 = vmatpush.msra.mxu0 %v2353
    %2377 = vmatpush.msra.mxu0 %v2352
    %2378 = vmatmul.f32.gmra.mxu0 %v2360
    %v2379 = vpop.f32.mrf.mxu0
    %v2380 = vadd.f32 0.0, %v2379
    %2381 = vdwg.mxu0
    %v2382 = vadd.f32 %v2349, %v2380
    %s2383 = scalar_lea.vmem [#allocation2], 96
    %v2384 = vld [vmem:[%s2383] sm:$0xff]
    %v2385 = vld [vmem:[%s2383 + $0x8] sm:$0xff]
    %v2386 = vld [vmem:[%s2383 + $0x10] sm:$0xff]
    %v2387 = vld [vmem:[%s2383 + $0x18] sm:$0xff]
    %2388 = vst [vmem:[#allocation1] ss:$9 sm:$0xff] %v2276
    %s2389 = scalar_lea.vmem [#allocation1], 1
    %2390 = vst [vmem:[%s2389] ss:$9 sm:$0xff] %v2284
    %v2391 = vld [vmem:[#allocation1] sm:$0xff]
    %v2392 = vsel %vm2302, %v2391, 0
    %2394 = vmatpush.msra.mxu0 0.0
    %2395 = vmatpush.msra.mxu0 0.0
    %2396 = vmatpush.msra.mxu0 0.0
    %2397 = vmatpush.msra.mxu0 0.0
    %2398 = vmatpush.msra.mxu0 0.0
    %2399 = vmatpush.msra.mxu0 0.0
    %2400 = vmatpush.msra.mxu0 0.0
    %2401 = vmatpush.msra.mxu0 0.0
    %2402 = vmatpush.msra.mxu0 0.0
    %2403 = vmatpush.msra.mxu0 0.0
    %2404 = vmatpush.msra.mxu0 0.0
    %2405 = vmatpush.msra.mxu0 0.0
    %2406 = vmatpush.msra.mxu0 %v2387
    %2407 = vmatpush.msra.mxu0 %v2386
    %2408 = vmatpush.msra.mxu0 %v2385
    %2409 = vmatpush.msra.mxu0 %v2384
    %2410 = vmatmul.f32.gmra.mxu0 %v2392
    %v2411 = vpop.f32.mrf.mxu0
    %v2412 = vadd.f32 0.0, %v2411
    %2413 = vdwg.mxu0
    %v2414 = vadd.f32 %v2382, %v2412
    %s2415 = scalar_lea.vmem [#allocation2], 128
    %v2416 = vld [vmem:[%s2415] sm:$0xff]
    %v2417 = vld [vmem:[%s2415 + $0x8] sm:$0xff]
    %v2418 = vld [vmem:[%s2415 + $0x10] sm:$0xff]
    %v2419 = vld [vmem:[%s2415 + $0x18] sm:$0xff]
    %2420 = vst [vmem:[#allocation1] ss:$9 sm:$0xff] %v2277
    %s2421 = scalar_lea.vmem [#allocation1], 1
    %2422 = vst [vmem:[%s2421] ss:$9 sm:$0xff] %v2285
    %v2423 = vld [vmem:[#allocation1] sm:$0xff]
    %v2424 = vsel %vm2302, %v2423, 0
    %2426 = vmatpush.msra.mxu0 0.0
    %2427 = vmatpush.msra.mxu0 0.0
    %2428 = vmatpush.msra.mxu0 0.0
    %2429 = vmatpush.msra.mxu0 0.0
    %2430 = vmatpush.msra.mxu0 0.0
    %2431 = vmatpush.msra.mxu0 0.0
    %2432 = vmatpush.msra.mxu0 0.0
    %2433 = vmatpush.msra.mxu0 0.0
    %2434 = vmatpush.msra.mxu0 0.0
    %2435 = vmatpush.msra.mxu0 0.0
    %2436 = vmatpush.msra.mxu0 0.0
    %2437 = vmatpush.msra.mxu0 0.0
    %2438 = vmatpush.msra.mxu0 %v2419
    %2439 = vmatpush.msra.mxu0 %v2418
    %2440 = vmatpush.msra.mxu0 %v2417
    %2441 = vmatpush.msra.mxu0 %v2416
    %2442 = vmatmul.f32.gmra.mxu0 %v2424
    %v2443 = vpop.f32.mrf.mxu0
    %v2444 = vadd.f32 0.0, %v2443
    %2445 = vdwg.mxu0
    %v2446 = vadd.f32 %v2414, %v2444
    %s2447 = scalar_lea.vmem [#allocation2], 160
    %v2448 = vld [vmem:[%s2447] sm:$0xff]
    %v2449 = vld [vmem:[%s2447 + $0x8] sm:$0xff]
    %v2450 = vld [vmem:[%s2447 + $0x10] sm:$0xff]
    %v2451 = vld [vmem:[%s2447 + $0x18] sm:$0xff]
    %2452 = vst [vmem:[#allocation1] ss:$9 sm:$0xff] %v2278
    %s2453 = scalar_lea.vmem [#allocation1], 1
    %2454 = vst [vmem:[%s2453] ss:$9 sm:$0xff] %v2286
    %v2455 = vld [vmem:[#allocation1] sm:$0xff]
    %v2456 = vsel %vm2302, %v2455, 0
    %2458 = vmatpush.msra.mxu0 0.0
    %2459 = vmatpush.msra.mxu0 0.0
    %2460 = vmatpush.msra.mxu0 0.0
    %2461 = vmatpush.msra.mxu0 0.0
    %2462 = vmatpush.msra.mxu0 0.0
    %2463 = vmatpush.msra.mxu0 0.0
    %2464 = vmatpush.msra.mxu0 0.0
    %2465 = vmatpush.msra.mxu0 0.0
    %2466 = vmatpush.msra.mxu0 0.0
    %2467 = vmatpush.msra.mxu0 0.0
    %2468 = vmatpush.msra.mxu0 0.0
    %2469 = vmatpush.msra.mxu0 0.0
    %2470 = vmatpush.msra.mxu0 %v2451
    %2471 = vmatpush.msra.mxu0 %v2450
    %2472 = vmatpush.msra.mxu0 %v2449
    %2473 = vmatpush.msra.mxu0 %v2448
    %2474 = vmatmul.f32.gmra.mxu0 %v2456
    %v2475 = vpop.f32.mrf.mxu0
    %v2476 = vadd.f32 0.0, %v2475
    %2477 = vdwg.mxu0
    %v2478 = vadd.f32 %v2446, %v2476
    %s2479 = scalar_lea.vmem [#allocation2], 192
    %v2480 = vld [vmem:[%s2479] sm:$0xff]
    %v2481 = vld [vmem:[%s2479 + $0x8] sm:$0xff]
    %v2482 = vld [vmem:[%s2479 + $0x10] sm:$0xff]
    %v2483 = vld [vmem:[%s2479 + $0x18] sm:$0xff]
    %2484 = vst [vmem:[#allocation1] ss:$9 sm:$0xff] %v2279
    %s2485 = scalar_lea.vmem [#allocation1], 1
    %2486 = vst [vmem:[%s2485] ss:$9 sm:$0xff] %v2287
    %v2487 = vld [vmem:[#allocation1] sm:$0xff]
    %v2488 = vsel %vm2302, %v2487, 0
    %2490 = vmatpush.msra.mxu0 0.0
    %2491 = vmatpush.msra.mxu0 0.0
    %2492 = vmatpush.msra.mxu0 0.0
    %2493 = vmatpush.msra.mxu0 0.0
    %2494 = vmatpush.msra.mxu0 0.0
    %2495 = vmatpush.msra.mxu0 0.0
    %2496 = vmatpush.msra.mxu0 0.0
    %2497 = vmatpush.msra.mxu0 0.0
    %2498 = vmatpush.msra.mxu0 0.0
    %2499 = vmatpush.msra.mxu0 0.0
    %2500 = vmatpush.msra.mxu0 0.0
    %2501 = vmatpush.msra.mxu0 0.0
    %2502 = vmatpush.msra.mxu0 %v2483
    %2503 = vmatpush.msra.mxu0 %v2482
    %2504 = vmatpush.msra.mxu0 %v2481
    %2505 = vmatpush.msra.mxu0 %v2480
    %2506 = vmatmul.f32.gmra.mxu0 %v2488
    %v2507 = vpop.f32.mrf.mxu0
    %v2508 = vadd.f32 0.0, %v2507
    %2509 = vdwg.mxu0
    %v2510 = vadd.f32 %v2478, %v2508
    %s2511 = scalar_lea.vmem [#allocation2], 224
    %v2512 = vld [vmem:[%s2511] sm:$0xff]
    %v2513 = vld [vmem:[%s2511 + $0x8] sm:$0xff]
    %v2514 = vld [vmem:[%s2511 + $0x10] sm:$0xff]
    %v2515 = vld [vmem:[%s2511 + $0x18] sm:$0xff]
    %2516 = vst [vmem:[#allocation1] ss:$9 sm:$0xff] %v2280
    %s2517 = scalar_lea.vmem [#allocation1], 1
    %2518 = vst [vmem:[%s2517] ss:$9 sm:$0xff] %v2270
    %v2519 = vld [vmem:[#allocation1] sm:$0xff]
    %v2520 = vsel %vm2302, %v2519, 0
    %2522 = vmatpush.msra.mxu0 0.0
    %2523 = vmatpush.msra.mxu0 0.0
    %2524 = vmatpush.msra.mxu0 0.0
    %2525 = vmatpush.msra.mxu0 0.0
    %2526 = vmatpush.msra.mxu0 0.0
    %2527 = vmatpush.msra.mxu0 0.0
    %2528 = vmatpush.msra.mxu0 0.0
    %2529 = vmatpush.msra.mxu0 0.0
    %2530 = vmatpush.msra.mxu0 0.0
    %2531 = vmatpush.msra.mxu0 0.0
    %2532 = vmatpush.msra.mxu0 0.0
    %2533 = vmatpush.msra.mxu0 0.0
    %2534 = vmatpush.msra.mxu0 %v2515
    %2535 = vmatpush.msra.mxu0 %v2514
    %2536 = vmatpush.msra.mxu0 %v2513
    %2537 = vmatpush.msra.mxu0 %v2512
    %2538 = vmatmul.f32.gmra.mxu0 %v2520
    %v2539 = vpop.f32.mrf.mxu0
    %v2540 = vadd.f32 0.0, %v2539
    %2541 = vdwg.mxu0
    %v2542 = vadd.f32 %v2510, %v2540
    %s2543 = scalar_lea.vmem [#allocation2], 256
    %v2544 = vld [vmem:[%s2543] sm:$0xff]
    %v2545 = vld [vmem:[%s2543 + $0x8] sm:$0xff]
    %v2546 = vld [vmem:[%s2543 + $0x10] sm:$0xff]
    %v2547 = vld [vmem:[%s2543 + $0x18] sm:$0xff]
    %2548 = vst [vmem:[#allocation1] ss:$9 sm:$0xff] %v2269
    %s2549 = scalar_lea.vmem [#allocation1], 1
    %2550 = vst [vmem:[%s2549] ss:$9 sm:$0xff] %v2288
    %v2551 = vld [vmem:[#allocation1] sm:$0xff]
    %v2552 = vsel %vm2302, %v2551, 0
    %2554 = vmatpush.msra.mxu0 0.0
    %2555 = vmatpush.msra.mxu0 0.0
    %2556 = vmatpush.msra.mxu0 0.0
    %2557 = vmatpush.msra.mxu0 0.0
    %2558 = vmatpush.msra.mxu0 0.0
    %2559 = vmatpush.msra.mxu0 0.0
    %2560 = vmatpush.msra.mxu0 0.0
    %2561 = vmatpush.msra.mxu0 0.0
    %2562 = vmatpush.msra.mxu0 0.0
    %2563 = vmatpush.msra.mxu0 0.0
    %2564 = vmatpush.msra.mxu0 0.0
    %2565 = vmatpush.msra.mxu0 0.0
    %2566 = vmatpush.msra.mxu0 %v2547
    %2567 = vmatpush.msra.mxu0 %v2546
    %2568 = vmatpush.msra.mxu0 %v2545
    %2569 = vmatpush.msra.mxu0 %v2544
    %2570 = vmatmul.f32.gmra.mxu0 %v2552
    %v2571 = vpop.f32.mrf.mxu0
    %v2572 = vadd.f32 0.0, %v2571
    %2573 = vdwg.mxu0
    %v2574 = vadd.f32 %v2542, %v2572
    %v2575 = vld [vmem:[%s8] sm:$0x1]
    %v2577 = vperm.slane %v2575, 0
    %v2579 = vadd.f32 %v2574, %v2577
    %v2580 = vmax.f32 %v2579, 0.0
    %v2581 = vld [vmem:[%s9] sm:$0xff]
    %v2582 = vld [vmem:[%s9 + $0x8] sm:$0xff]
    %v2583 = vld [vmem:[%s9 + $0x10] sm:$0xff]
    %v2584 = vld [vmem:[%s9 + $0x18] sm:$0xff]
    %v2585 = vld [vmem:[%s9 + $0x20] sm:$0xff]
    %v2586 = vld [vmem:[%s9 + $0x28] sm:$0xff]
    %v2587 = vld [vmem:[%s10] sm:$0x1]
    %v2589 = vperm.slane %v2587, 0
    %vm2591 = vcmask 392192
    %v2593 = vsel %vm2591, %v2580, 0
    %2595 = vmatpush.msra.mxu0 0.0
    %2596 = vmatpush.msra.mxu0 0.0
    %2597 = vmatpush.msra.mxu0 0.0
    %2598 = vmatpush.msra.mxu0 0.0
    %2599 = vmatpush.msra.mxu0 0.0
    %2600 = vmatpush.msra.mxu0 0.0
    %2601 = vmatpush.msra.mxu0 0.0
    %2602 = vmatpush.msra.mxu0 0.0
    %2603 = vmatpush.msra.mxu0 0.0
    %2604 = vmatpush.msra.mxu0 0.0
    %2605 = vmatpush.msra.mxu0 %v2586
    %2606 = vmatpush.msra.mxu0 %v2585
    %2607 = vmatpush.msra.mxu0 %v2584
    %2608 = vmatpush.msra.mxu0 %v2583
    %2609 = vmatpush.msra.mxu0 %v2582
    %2610 = vmatpush.msra.mxu0 %v2581
    %2611 = vmatmul.f32.gmra.mxu0 %v2593
    %v2612 = vpop.f32.mrf.mxu0
    %v2613 = vadd.f32 %v2589, %v2612
    %2614 = vdwg.mxu0
    %v2615 = vmax.f32 %v2613, 0.0
    %v2616 = vld [vmem:[%s11] sm:$0xff]
    %v2617 = vld [vmem:[%s11 + $0x8] sm:$0xff]
    %v2618 = vld [vmem:[%s11 + $0x10] sm:$0xff]
    %v2619 = vld [vmem:[%s11 + $0x18] sm:$0xff]
    %v2620 = vld [vmem:[%s11 + $0x20] sm:$0xff]
    %v2621 = vld [vmem:[%s11 + $0x28] sm:$0xff]
    %v2622 = vld [vmem:[%s11 + $0x30] sm:$0xff]
    %v2623 = vld [vmem:[%s11 + $0x38] sm:$0xff]
    %v2624 = vld [vmem:[%s11 + $0x40] sm:$0xff]
    %v2625 = vld [vmem:[%s11 + $0x48] sm:$0xff]
    %v2626 = vld [vmem:[%s11 + $0x50] sm:$0xff]
    %v2627 = vld [vmem:[%s11 + $0x58] sm:$0xff]
    %v2628 = vld [vmem:[%s12] sm:$0x1]
    %v2630 = vperm.slane %v2628, 0
    %vm2632 = vcmask 785408
    %v2634 = vsel %vm2632, %v2615, 0
    %2636 = vmatpush.msra.mxu0 0.0
    %2637 = vmatpush.msra.mxu0 0.0
    %2638 = vmatpush.msra.mxu0 0.0
    %2639 = vmatpush.msra.mxu0 0.0
    %2640 = vmatpush.msra.mxu0 %v2627
    %2641 = vmatpush.msra.mxu0 %v2626
    %2642 = vmatpush.msra.mxu0 %v2625
    %2643 = vmatpush.msra.mxu0 %v2624
    %2644 = vmatpush.msra.mxu0 %v2623
    %2645 = vmatpush.msra.mxu0 %v2622
    %2646 = vmatpush.msra.mxu0 %v2621
    %2647 = vmatpush.msra.mxu0 %v2620
    %2648 = vmatpush.msra.mxu0 %v2619
    %2649 = vmatpush.msra.mxu0 %v2618
    %2650 = vmatpush.msra.mxu0 %v2617
    %2651 = vmatpush.msra.mxu0 %v2616
    %2652 = vmatmul.f32.gmra.mxu0 %v2634
    %v2653 = vpop.f32.mrf.mxu0
    %v2654 = vadd.f32 %v2630, %v2653
    %2655 = vdwg.mxu0
    %vm2656 = vcmask 115712
    %2657 = vst.msk [vmem:[#allocation5] sm:$0x3] %vm2656, %v2654
    // Predicated region
    $region58: #{tpu_custom_call.1} parent=1 // pred_check
      _
    $region59: #{tpu_custom_call.1} parent=1 // pred_check_branch
      %2659 = sbr.rel (0) target = $region61
    $region60: #{tpu_custom_call.1} parent=1 // pred_region
      %2661 = vsyncadd [#allocation4], 0
      %s2663 = sshll.u32 [#allocation5], 4
      %s2664 = int_to_ptr.vmem [resolvable:$true] %s2663
      %s2665 = sshll.u32 %s13, 4
      %s2666 = int_to_ptr.hbm [resolvable:$true] %s2665
      %2668 = dma.vmem_to_hbm [thread:$0]  %s2664, 32, %s2666, [#allocation4]
    $region61: #{tpu_custom_call.1} parent=1 // pred_fallthru
      _
    // Predicated region
    $region62: #{tpu_custom_call.1} parent=1 // pred_check
      _
    $region63: #{tpu_custom_call.1} parent=1 // pred_check_branch
      %2670 = sbr.rel (0) target = $region65
    $region64: #{tpu_custom_call.1} parent=1 // pred_region
      %2672 = dma.done [#allocation4], 32
    $region65: #{tpu_custom_call.1} parent=1 // pred_fallthru
      _
    %2673 = vsyncpa [#allocation3], 1
    %2674 = vsyncpa [#allocation4], 1

</llo_original>
